<compile_context>
chip_gen: v7x
topology: tpu7x:2x2x1
jax: 0.10.0
libtpu: 0.0.40
codegen_flags: <defaults>
</compile_context>

<pallas_src>
import functools

import jax
import jax.numpy as jnp
from jax.experimental import pallas as pl
from jax.experimental.pallas import tpu as pltpu

# ----------------------- small hyper-parameters -----------------------
WORD_DIM = 32           # args.word_embedding_dim
TITLE_WORD_SIZE = 16    # args.title_word_size
CATEGORY_DIM = 16       # args.category_embedding_dim
SUBCATEGORY_DIM = 16    # args.subcategory_embedding_dim
QUERY_VECTOR_DIM = 32   # args.query_vector_dim
NUM_FILTERS = 32        # args.cnn_num_filters
WINDOW_SIZE = 3         # args.cnn_window_sizes
CATEGORY_SIZE = 10      # args.category_num
SUBCATEGORY_SIZE = 12   # args.subcategory_num
USER_SIZE = 8           # args.user_num
VOCAB_SIZE = 50
BATCH_SIZE = 2          # args.batch_size
SAMPLE_SIZE = 2         # args.sample_size (candidate news per user)
CLICKED_NEWS = 4        # clicked-news history length
NEWS_NUM = 20           # size of the synthetic news corpus

NEWS_REP_DIM = NUM_FILTERS * 3   # 96 = word_rep | category_rep | subcategory_rep
REP_PAD_DIM = 128                # lane-dense padded representation width (96 -> 128)
BATCH_PAD = 8                    # sublane-aligned batch for the fused GRU/score kernel
# long_short_term_method == 'ini': GRU hidden size == NEWS_REP_DIM, h0 = user embedding.


# ----------------------- parameter initialization -----------------------
def init_params(key):
    ks = jax.random.split(key, 16)

    def rnd(k, shape, scale=0.1):
        return jax.random.normal(k, shape, jnp.float32) * scale

    F, Q, W, D = NUM_FILTERS, QUERY_VECTOR_DIM, WINDOW_SIZE, WORD_DIM
    H, HP = NEWS_REP_DIM, REP_PAD_DIM
    CS = CATEGORY_DIM + SUBCATEGORY_DIM

    p = {}
    p["cat_emb"] = rnd(ks[0], (CATEGORY_SIZE, CATEGORY_DIM))
    p["subcat_emb"] = rnd(ks[1], (SUBCATEGORY_SIZE, SUBCATEGORY_DIM))

    # fc1 / fc2 fused into ONE (32, 128) projection whose outputs land directly in the
    # final rep lanes:  lanes 32..63 = fc1(cat_emb), lanes 64..95 = fc2(sub_emb).
    fc1_w = rnd(ks[2], (CATEGORY_DIM, F))
    fc1_b = rnd(ks[3], (1, F))
    fc2_w = rnd(ks[4], (SUBCATEGORY_DIM, F))
    fc2_b = rnd(ks[5], (1, F))
    fc12_w = jnp.zeros((CS, HP), jnp.float32)
    fc12_w = fc12_w.at[:CATEGORY_DIM, F:2 * F].set(fc1_w)
    fc12_w = fc12_w.at[CATEGORY_DIM:, 2 * F:3 * F].set(fc2_w)
    p["fc12_w"] = fc12_w
    fc12_b = jnp.zeros((1, HP), jnp.float32)
    fc12_b = fc12_b.at[:, F:2 * F].set(fc1_b)
    fc12_b = fc12_b.at[:, 2 * F:3 * F].set(fc2_b)
    p["fc12_b"] = fc12_b

    # Conv1d(word_dim -> num_filters, window W) as an im2col weight, padded K 96->128
    # and N 32->128 so the conv matmul is fully 128-lane aligned (zero rows/cols).
    conv_w = rnd(ks[6], (W, D, F))
    conv_w_p = jnp.zeros((HP, HP), jnp.float32)
    conv_w_p = conv_w_p.at[:W * D, :F].set(conv_w.reshape(W * D, F))
    p["conv_w_p"] = conv_w_p
    p["conv_b_p"] = jnp.zeros((1, HP), jnp.float32).at[:, :F].set(rnd(ks[7], (1, F)))

    # additive attention over title positions; K padded 32->128 (conv real lanes 0..31).
    p["attn_w_p"] = jnp.zeros((HP, Q), jnp.float32).at[:F, :].set(rnd(ks[8], (F, Q)))
    p["attn_b"] = rnd(ks[9], (1, Q))
    p["attn_q_col"] = rnd(ks[10], (Q, 1))        # query vector as a column -> MXU score

    # user embedding (padding_idx = 0), padded to 128 lanes
    user_emb = rnd(ks[11], (USER_SIZE, H)).at[0].set(0.0)
    p["user_emb_pad"] = jnp.pad(user_emb, ((0, 0), (0, HP - H)))

    # GRU (PyTorch gate order r, z, n), weights stored transposed and padded so that
    # each gate block is 128-lane aligned.  Padded rows/cols/biases are zero, so padded
    # hidden lanes stay exactly zero through the recurrence (z=0.5, n=0 there).
    wih = rnd(ks[12], (H, 3 * H))
    whh = rnd(ks[13], (H, 3 * H))
    bih = rnd(ks[14], (1, 3 * H))
    bhh = rnd(ks[15], (1, 3 * H))

    def pad_w(w):
        wp = jnp.zeros((HP, 3 * HP), jnp.float32)
        for g in range(3):
            wp = wp.at[:H, g * HP:g * HP + H].set(w[:, g * H:(g + 1) * H])
        return wp

    def pad_b(b):
        bp = jnp.zeros((1, 3 * HP), jnp.float32)
        for g in range(3):
            bp = bp.at[:, g * HP:g * HP + H].set(b[:, g * H:(g + 1) * H])
        return bp

    p["gru_wih_p"] = pad_w(wih)
    p["gru_whh_p"] = pad_w(whh)
    p["gru_bih_p"] = pad_b(bih)
    p["gru_bhh_p"] = pad_b(bhh)
    return p


# ----------------------- news-encoder Pallas kernel (whole padded corpus, grid-less) -----------------------
def _news_encoder_kernel(cols_ref, catsub_ref, group_ref,
                         convw_ref, convb_ref, attnw_ref, attnb_ref, attnq_ref,
                         fc12w_ref, fc12b_ref, out_ref):
    # cols: (N_pad*T, 128) lane-dense im2col rows (K padded 96->128 in the wrapper)
    x = cols_ref[...]

    # Conv1d(window) + ReLU as ONE 128x128 MXU pass; padded filter lanes stay zero.
    conv = jnp.dot(x, convw_ref[...], preferred_element_type=jnp.float32) + convb_ref[...]
    conv = jnp.maximum(conv, 0.0)                                        # (N_pad*T, 128)

    # additive attention scores; final reduction done on the MXU via a (Q,1) column.
    att_h = jnp.tanh(jnp.dot(conv, attnw_ref[...],
                             preferred_element_type=jnp.float32) + attnb_ref[...])   # (N_pad*T, Q)
    att_s = jnp.dot(att_h, attnq_ref[...], preferred_element_type=jnp.float32)       # (N_pad*T, 1)

    # per-news softmax over title positions, expressed via the one-hot group matrix so
    # that pooling & normalization stay 2-D matmuls (no reshapes / sublane reductions).
    # (softmax is shift-invariant per group, so a single global max is sufficient.)
    e = jnp.exp(att_s - jnp.max(att_s))                                  # (N_pad*T, 1)
    g = group_ref[...]                                                   # (N_pad, N_pad*T)
    pooled = jnp.dot(g, e * conv, preferred_element_type=jnp.float32)    # (N_pad, 128)
    denom = jnp.dot(g, e, preferred_element_type=jnp.float32)            # (N_pad, 1)
    word_rep = pooled * pl.reciprocal(denom, approx=True)                # (N_pad, 128), lanes 32.. zero

    # fused category|subcategory projection lands in lanes 32..95; lanes 0..31/96.. zero.
    catsub_rep = jnp.dot(catsub_ref[...], fc12w_ref[...],
                         preferred_element_type=jnp.float32) + fc12b_ref[...]          # (N_pad, 128)

    # lane-dense unmasked 128-lane store: word | cat | sub | zero-pad via a single add.
    out_ref[...] = word_rep + catsub_rep


def encode_news_corpus(params, word_table, news_title, news_cat, news_sub):
    """Encode every news id once -> (N_pad, REP_PAD_DIM) padded representations."""
    N, T = news_title.shape
    D = word_table.shape[1]
    W, HP = WINDOW_SIZE, REP_PAD_DIM
    N_pad = ((N + 7) // 8) * 8
    pad_n = N_pad - N

    title_p = jnp.pad(news_title, ((0, pad_n), (0, 0)))
    cat_p = jnp.pad(news_cat, (0, pad_n))
    sub_p = jnp.pad(news_sub, (0, pad_n))

    # word-embedding gather + wrapper-side im2col / K-padding (pure layout plumbing)
    we = word_table[title_p]                                             # (N_pad, T, D)
    pad_l = (W - 1) // 2
    pad_r = W - 1 - pad_l
    we_p = jnp.pad(we, ((0, 0), (pad_l, pad_r), (0, 0)))                 # same padding over T
    cols = jnp.concatenate([we_p[:, w:w + T, :] for w in range(W)], axis=-1)   # (N_pad, T, W*D)
    cols = jnp.pad(cols, ((0, 0), (0, 0), (0, HP - W * D)))              # K 96 -> 128
    cols2d = cols.reshape(N_pad * T, HP)                                 # (N_pad*T, 128)

    catsub = jnp.concatenate([params["cat_emb"][cat_p],
                              params["subcat_emb"][sub_p]], axis=-1)     # (N_pad, 32)

    # one-hot group matrix: row n has ones over its T im2col rows
    group = jnp.repeat(jnp.eye(N_pad, dtype=jnp.float32), T, axis=1)     # (N_pad, N_pad*T)

    reps = pl.pallas_call(
        _news_encoder_kernel,
        out_shape=jax.ShapeDtypeStruct((N_pad, HP), jnp.float32),
    )(cols2d, catsub, group,
      params["conv_w_p"], params["conv_b_p"],
      params["attn_w_p"], params["attn_b"], params["attn_q_col"],
      params["fc12_w"], params["fc12_b"])
    return reps


# ----------------------- fused gather + GRU ('ini') + scoring Pallas kernel -----------------------
def _user_score_kernel(user_idx_ref, click_idx_ref, cand_idx_ref,       # SMEM index tables
                       reps_ref, uemb_ref,                               # VMEM tables
                       wih_ref, whh_ref, bih_ref, bhh_ref,
                       out_ref,
                       click_buf, cand_buf, h0_buf,
                       *, BP, L, S, HP):
    # 1. in-kernel gathers: dynamic first-axis row reads from VMEM-resident tables,
    #    static row writes into VMEM scratch (time-major for the hoisted projection).
    for b in range(BP):
        h0_buf[b, :] = uemb_ref[user_idx_ref[b], :]
        for t in range(L):
            click_buf[t * BP + b, :] = reps_ref[click_idx_ref[b, t], :]
        for s in range(S):
            cand_buf[b, s, :] = reps_ref[cand_idx_ref[b, s], :]

    wih = wih_ref[...]
    whh = whh_ref[...]
    bih = bih_ref[...]
    bhh = bhh_ref[...]

    # 2. input-side projection for ALL timesteps at once (hoisted out of the recurrence)
    gi_all = jnp.dot(click_buf[...], wih, preferred_element_type=jnp.float32) + bih   # (L*BP, 3*HP)

    # 3. GRU recurrence, statically unrolled; BP=8 keeps every slice sublane-aligned.
    h = h0_buf[...]                                                      # (BP, HP), h0 = user embedding
    for t in range(L):
        gi = gi_all[t * BP:(t + 1) * BP, :]                              # 8-row aligned slice
        gh = jnp.dot(h, whh, preferred_element_type=jnp.float32) + bhh   # (BP, 3*HP)
        r = jax.nn.sigmoid(gi[:, 0:HP] + gh[:, 0:HP])                    # 128-aligned gate slices
        z = jax.nn.sigmoid(gi[:, HP:2 * HP] + gh[:, HP:2 * HP])
        n = jnp.tanh(gi[:, 2 * HP:3 * HP] + r * gh[:, 2 * HP:3 * HP])
        h = (1.0 - z) * n + z * h

    # 4. scoring fused in: score[b, s] = sum(cand_rep[b, s] * user_rep[b])
    #    (padded lanes are zero in both operands, so the padded dot equals the 96-dim dot)
    out_ref[...] = jnp.sum(cand_buf[...] * h[:, None, :], axis=-1)       # (BP, S)


def user_score_apply(params, reps, user_idx_p, click_idx_p, cand_idx_p):
    BP, L = click_idx_p.shape
    _, S = cand_idx_p.shape
    HP = REP_PAD_DIM
    kernel = functools.partial(_user_score_kernel, BP=BP, L=L, S=S, HP=HP)
    return pl.pallas_call(
        kernel,
        out_shape=jax.ShapeDtypeStruct((BP, S), jnp.float32),
        in_specs=[
            pl.BlockSpec(memory_space=pltpu.MemorySpace.SMEM),   # user_idx  (BP,)
            pl.BlockSpec(memory_space=pltpu.MemorySpace.SMEM),   # click_idx (BP, L)
            pl.BlockSpec(memory_space=pltpu.MemorySpace.SMEM),   # cand_idx  (BP, S)
            pl.BlockSpec(memory_space=pltpu.MemorySpace.VMEM),   # reps      (N_pad, 128)
            pl.BlockSpec(memory_space=pltpu.MemorySpace.VMEM),   # user_emb  (USER_SIZE, 128)
            pl.BlockSpec(memory_space=pltpu.MemorySpace.VMEM),   # wih
            pl.BlockSpec(memory_space=pltpu.MemorySpace.VMEM),   # whh
            pl.BlockSpec(memory_space=pltpu.MemorySpace.VMEM),   # bih
            pl.BlockSpec(memory_space=pltpu.MemorySpace.VMEM),   # bhh
        ],
        out_specs=pl.BlockSpec(memory_space=pltpu.MemorySpace.VMEM),
        scratch_shapes=[
            pltpu.VMEM((L * BP, HP), jnp.float32),   # time-major clicked reps
            pltpu.VMEM((BP, S, HP), jnp.float32),    # candidate reps
            pltpu.VMEM((BP, HP), jnp.float32),       # h0 = gathered user embeddings
        ],
    )(user_idx_p, click_idx_p, cand_idx_p, reps, params["user_emb_pad"],
      params["gru_wih_p"], params["gru_whh_p"],
      params["gru_bih_p"], params["gru_bhh_p"])


# ----------------------- full LSTUR forward -----------------------
def lstur_forward(params, user_index, candidate_news_index, user_clicked_news_index,
                  *, word_table, news_title, news_cat, news_sub):
    B, S = candidate_news_index.shape
    _, L = user_clicked_news_index.shape

    # 1. encode every news id once (deterministic encoder in eval mode -> dedup is exact)
    reps = encode_news_corpus(params, word_table, news_title, news_cat, news_sub)  # (N_pad, 128)

    # 2. pad batch to a sublane-aligned BP; padded index rows point at id 0 / user 0 and
    #    their scores are sliced away below.
    BP = max(BATCH_PAD, ((B + 7) // 8) * 8)
    pad_b = BP - B
    user_idx_p = jnp.pad(user_index.astype(jnp.int32), (0, pad_b))
    cand_idx_p = jnp.pad(candidate_news_index.astype(jnp.int32), ((0, pad_b), (0, 0)))
    click_idx_p = jnp.pad(user_clicked_news_index.astype(jnp.int32), ((0, pad_b), (0, 0)))

    # 3. fused gather + GRU ('ini', h0 = user embedding) + scoring kernel
    scores = user_score_apply(params, reps, user_idx_p, click_idx_p, cand_idx_p)   # (BP, S)
    return scores[:B]


# ----------------------- main -----------------------
if __name__ == "__main__":
    key = jax.random.PRNGKey(0)
    k_param, k_data = jax.random.split(key)
    params = init_params(k_param)

    kd = jax.random.split(k_data, 7)
    word_table = jax.random.normal(kd[0], (VOCAB_SIZE, WORD_DIM), jnp.float32)
    news_title = jax.random.randint(kd[1], (NEWS_NUM, TITLE_WORD_SIZE), 0, VOCAB_SIZE, jnp.int32)
    news_cat = jax.random.randint(kd[2], (NEWS_NUM,), 0, CATEGORY_SIZE, jnp.int32)
    news_sub = jax.random.randint(kd[3], (NEWS_NUM,), 0, SUBCATEGORY_SIZE, jnp.int32)
    cand_idx = jax.random.randint(kd[4], (BATCH_SIZE, SAMPLE_SIZE), 0, NEWS_NUM, jnp.int32)
    clicked_idx = jax.random.randint(kd[5], (BATCH_SIZE, CLICKED_NEWS), 0, NEWS_NUM, jnp.int32)
    user_idx = jax.random.randint(kd[6], (BATCH_SIZE,), 0, USER_SIZE, jnp.int32)

    fwd = jax.jit(functools.partial(
        lstur_forward, params,
        word_table=word_table, news_title=news_title,
        news_cat=news_cat, news_sub=news_sub))

    score = fwd(user_idx, cand_idx, clicked_idx)
    score = jax.block_until_ready(score)

    assert score.shape == (BATCH_SIZE, SAMPLE_SIZE)
    assert bool(jnp.all(jnp.isfinite(score)))
    print("KERNEL_OK")
</pallas_src>

<mosaic_0001>
module attributes {stable_mosaic.version = 11 : i64} {
  func.func @_news_encoder_kernel(%arg0: memref<384x128xf32, #tpu.memory_space<vmem>>, %arg1: memref<24x32xf32, #tpu.memory_space<vmem>>, %arg2: memref<24x384xf32, #tpu.memory_space<vmem>>, %arg3: memref<128x128xf32, #tpu.memory_space<vmem>>, %arg4: memref<1x128xf32, #tpu.memory_space<vmem>>, %arg5: memref<128x32xf32, #tpu.memory_space<vmem>>, %arg6: memref<1x32xf32, #tpu.memory_space<vmem>>, %arg7: memref<32x1xf32, #tpu.memory_space<vmem>>, %arg8: memref<32x128xf32, #tpu.memory_space<vmem>>, %arg9: memref<1x128xf32, #tpu.memory_space<vmem>>, %arg10: memref<24x128xf32, #tpu.memory_space<vmem>>) attributes {dimension_semantics = [], scalar_prefetch = 0 : i64, scratch_operands = 0 : i64, tpu.core_type = #tpu.core_type<tc>} {
    %c0 = arith.constant 0 : index
    %c0_0 = arith.constant 0 : index
    %0 = vector.load %arg0[%c0, %c0_0] : memref<384x128xf32, #tpu.memory_space<vmem>>, vector<384x128xf32>
    %c0_1 = arith.constant 0 : index
    %c0_2 = arith.constant 0 : index
    %1 = vector.load %arg3[%c0_1, %c0_2] : memref<128x128xf32, #tpu.memory_space<vmem>>, vector<128x128xf32>
    %cst = arith.constant dense<0.000000e+00> : vector<384x128xf32>
    %2 = tpu.matmul %0, %1, %cst {dimension_numbers = #tpu.dot_dimension_numbers<[1], [0], [0], [1], [0, 0, 1, 1], [], []>} : vector<384x128xf32>, vector<128x128xf32>, vector<384x128xf32> -> vector<384x128xf32>
    %c0_3 = arith.constant 0 : index
    %c0_4 = arith.constant 0 : index
    %3 = vector.load %arg4[%c0_3, %c0_4] : memref<1x128xf32, #tpu.memory_space<vmem>>, vector<1x128xf32>
    %4 = vector.broadcast %3 : vector<1x128xf32> to vector<384x128xf32>
    %5 = arith.addf %2, %4 : vector<384x128xf32>
    %cst_5 = arith.constant 0.000000e+00 : f32
    %6 = vector.broadcast %cst_5 : f32 to vector<384x128xf32>
    %7 = arith.maximumf %5, %6 : vector<384x128xf32>
    %c0_6 = arith.constant 0 : index
    %c0_7 = arith.constant 0 : index
    %8 = vector.load %arg5[%c0_6, %c0_7] : memref<128x32xf32, #tpu.memory_space<vmem>>, vector<128x32xf32>
    %cst_8 = arith.constant dense<0.000000e+00> : vector<384x32xf32>
    %9 = tpu.matmul %7, %8, %cst_8 {dimension_numbers = #tpu.dot_dimension_numbers<[1], [0], [0], [1], [0, 0, 1, 1], [], []>} : vector<384x128xf32>, vector<128x32xf32>, vector<384x32xf32> -> vector<384x32xf32>
    %c0_9 = arith.constant 0 : index
    %c0_10 = arith.constant 0 : index
    %10 = vector.load %arg6[%c0_9, %c0_10] : memref<1x32xf32, #tpu.memory_space<vmem>>, vector<1x32xf32>
    %11 = vector.broadcast %10 : vector<1x32xf32> to vector<384x32xf32>
    %12 = arith.addf %9, %11 : vector<384x32xf32>
    %13 = math.tanh %12 : vector<384x32xf32>
    %c0_11 = arith.constant 0 : index
    %c0_12 = arith.constant 0 : index
    %14 = vector.load %arg7[%c0_11, %c0_12] : memref<32x1xf32, #tpu.memory_space<vmem>>, vector<32x1xf32>
    %cst_13 = arith.constant dense<0.000000e+00> : vector<384x1xf32>
    %15 = tpu.matmul %13, %14, %cst_13 {dimension_numbers = #tpu.dot_dimension_numbers<[1], [0], [0], [1], [0, 0, 1, 1], [], []>} : vector<384x32xf32>, vector<32x1xf32>, vector<384x1xf32> -> vector<384x1xf32>
    %16 = vector.shape_cast %15 : vector<384x1xf32> to vector<1x384x1xf32>
    %cst_14 = arith.constant dense<0xFF800000> : vector<1xf32>
    %17 = vector.multi_reduction <maximumf>, %16, %cst_14 [1, 2] : vector<1x384x1xf32> to vector<1xf32>
    %18 = vector.shape_cast %17 : vector<1xf32> to vector<1x1x1xf32>
    %19 = vector.extract %18[0, 0, 0] : f32 from vector<1x1x1xf32>
    %20 = vector.broadcast %19 : f32 to vector<384x1xf32>
    %21 = arith.subf %15, %20 : vector<384x1xf32>
    %22 = math.exp %21 : vector<384x1xf32>
    %c0_15 = arith.constant 0 : index
    %c0_16 = arith.constant 0 : index
    %23 = vector.load %arg2[%c0_15, %c0_16] : memref<24x384xf32, #tpu.memory_space<vmem>>, vector<24x384xf32>
    %24 = vector.broadcast %22 : vector<384x1xf32> to vector<384x128xf32>
    %25 = arith.mulf %24, %7 : vector<384x128xf32>
    %cst_17 = arith.constant dense<0.000000e+00> : vector<24x128xf32>
    %26 = tpu.matmul %23, %25, %cst_17 {dimension_numbers = #tpu.dot_dimension_numbers<[1], [0], [0], [1], [0, 0, 1, 1], [], []>} : vector<24x384xf32>, vector<384x128xf32>, vector<24x128xf32> -> vector<24x128xf32>
    %cst_18 = arith.constant dense<0.000000e+00> : vector<24x1xf32>
    %27 = tpu.matmul %23, %22, %cst_18 {dimension_numbers = #tpu.dot_dimension_numbers<[1], [0], [0], [1], [0, 0, 1, 1], [], []>} : vector<24x384xf32>, vector<384x1xf32>, vector<24x1xf32> -> vector<24x1xf32>
    %28 = tpu.reciprocal %27 {approx = true} : vector<24x1xf32> -> vector<24x1xf32>
    %29 = vector.broadcast %28 : vector<24x1xf32> to vector<24x128xf32>
    %30 = arith.mulf %26, %29 : vector<24x128xf32>
    %c0_19 = arith.constant 0 : index
    %c0_20 = arith.constant 0 : index
    %31 = vector.load %arg1[%c0_19, %c0_20] : memref<24x32xf32, #tpu.memory_space<vmem>>, vector<24x32xf32>
    %c0_21 = arith.constant 0 : index
    %c0_22 = arith.constant 0 : index
    %32 = vector.load %arg8[%c0_21, %c0_22] : memref<32x128xf32, #tpu.memory_space<vmem>>, vector<32x128xf32>
    %cst_23 = arith.constant dense<0.000000e+00> : vector<24x128xf32>
    %33 = tpu.matmul %31, %32, %cst_23 {dimension_numbers = #tpu.dot_dimension_numbers<[1], [0], [0], [1], [0, 0, 1, 1], [], []>} : vector<24x32xf32>, vector<32x128xf32>, vector<24x128xf32> -> vector<24x128xf32>
    %c0_24 = arith.constant 0 : index
    %c0_25 = arith.constant 0 : index
    %34 = vector.load %arg9[%c0_24, %c0_25] : memref<1x128xf32, #tpu.memory_space<vmem>>, vector<1x128xf32>
    %35 = vector.broadcast %34 : vector<1x128xf32> to vector<24x128xf32>
    %36 = arith.addf %33, %35 : vector<24x128xf32>
    %37 = arith.addf %30, %36 : vector<24x128xf32>
    %c0_26 = arith.constant 0 : index
    %c0_27 = arith.constant 0 : index
    %38 = vector.load %arg10[%c0_26, %c0_27] : memref<24x128xf32, #tpu.memory_space<vmem>>, vector<24x128xf32>
    tpu.vector_store %arg10[%c0_26, %c0_27], %37 {strides = array<i32>} : memref<24x128xf32, #tpu.memory_space<vmem>>, vector<24x128xf32>,
    return
  }
}

module attributes {stable_mosaic.version = 11 : i64} {
  func.func @_user_score_kernel(%arg0: memref<8xi32, #tpu.memory_space<smem>>, %arg1: memref<8x4xi32, #tpu.memory_space<smem>>, %arg2: memref<8x2xi32, #tpu.memory_space<smem>>, %arg3: memref<24x128xf32, #tpu.memory_space<vmem>>, %arg4: memref<8x128xf32, #tpu.memory_space<vmem>>, %arg5: memref<128x384xf32, #tpu.memory_space<vmem>>, %arg6: memref<128x384xf32, #tpu.memory_space<vmem>>, %arg7: memref<1x384xf32, #tpu.memory_space<vmem>>, %arg8: memref<1x384xf32, #tpu.memory_space<vmem>>, %arg9: memref<8x2xf32, #tpu.memory_space<vmem>>, %arg10: memref<32x128xf32, #tpu.memory_space<vmem>>, %arg11: memref<8x2x128xf32, #tpu.memory_space<vmem>>, %arg12: memref<8x128xf32, #tpu.memory_space<vmem>>) attributes {dimension_semantics = [], scalar_prefetch = 0 : i64, scratch_operands = 3 : i64, tpu.core_type = #tpu.core_type<tc>} {
    %c0 = arith.constant 0 : index
    %0 = memref.load %arg0[%c0] : memref<8xi32, #tpu.memory_space<smem>>
    %1 = arith.index_cast %0 : i32 to index
    %c0_0 = arith.constant 0 : index
    %2 = vector.load %arg4[%1, %c0_0] : memref<8x128xf32, #tpu.memory_space<vmem>>, vector<1x128xf32>
    %3 = vector.shape_cast %2 : vector<1x128xf32> to vector<128xf32>
    %c0_1 = arith.constant 0 : index
    %c0_2 = arith.constant 0 : index
    %4 = vector.load %arg12[%c0_1, %c0_2] : memref<8x128xf32, #tpu.memory_space<vmem>>, vector<1x128xf32>
    %5 = vector.shape_cast %4 : vector<1x128xf32> to vector<128xf32>
    %6 = vector.shape_cast %3 : vector<128xf32> to vector<1x128xf32>
    tpu.vector_store %arg12[%c0_1, %c0_2], %6 {strides = array<i32>} : memref<8x128xf32, #tpu.memory_space<vmem>>, vector<1x128xf32>,
    %c0_3 = arith.constant 0 : index
    %c0_4 = arith.constant 0 : index
    %7 = memref.load %arg1[%c0_3, %c0_4] : memref<8x4xi32, #tpu.memory_space<smem>>
    %8 = arith.index_cast %7 : i32 to index
    %c0_5 = arith.constant 0 : index
    %9 = vector.load %arg3[%8, %c0_5] : memref<24x128xf32, #tpu.memory_space<vmem>>, vector<1x128xf32>
    %10 = vector.shape_cast %9 : vector<1x128xf32> to vector<128xf32>
    %c0_6 = arith.constant 0 : index
    %c0_7 = arith.constant 0 : index
    %11 = vector.load %arg10[%c0_6, %c0_7] : memref<32x128xf32, #tpu.memory_space<vmem>>, vector<1x128xf32>
    %12 = vector.shape_cast %11 : vector<1x128xf32> to vector<128xf32>
    %13 = vector.shape_cast %10 : vector<128xf32> to vector<1x128xf32>
    tpu.vector_store %arg10[%c0_6, %c0_7], %13 {strides = array<i32>} : memref<32x128xf32, #tpu.memory_space<vmem>>, vector<1x128xf32>,
    %c0_8 = arith.constant 0 : index
    %c1 = arith.constant 1 : index
    %14 = memref.load %arg1[%c0_8, %c1] : memref<8x4xi32, #tpu.memory_space<smem>>
    %15 = arith.index_cast %14 : i32 to index
    %c0_9 = arith.constant 0 : index
    %16 = vector.load %arg3[%15, %c0_9] : memref<24x128xf32, #tpu.memory_space<vmem>>, vector<1x128xf32>
    %17 = vector.shape_cast %16 : vector<1x128xf32> to vector<128xf32>
    %c8 = arith.constant 8 : index
    %c0_10 = arith.constant 0 : index
    %18 = vector.load %arg10[%c8, %c0_10] : memref<32x128xf32, #tpu.memory_space<vmem>>, vector<1x128xf32>
    %19 = vector.shape_cast %18 : vector<1x128xf32> to vector<128xf32>
    %20 = vector.shape_cast %17 : vector<128xf32> to vector<1x128xf32>
    tpu.vector_store %arg10[%c8, %c0_10], %20 {strides = array<i32>} : memref<32x128xf32, #tpu.memory_space<vmem>>, vector<1x128xf32>,
    %c0_11 = arith.constant 0 : index
    %c2 = arith.constant 2 : index
    %21 = memref.load %arg1[%c0_11, %c2] : memref<8x4xi32, #tpu.memory_space<smem>>
    %22 = arith.index_cast %21 : i32 to index
    %c0_12 = arith.constant 0 : index
    %23 = vector.load %arg3[%22, %c0_12] : memref<24x128xf32, #tpu.memory_space<vmem>>, vector<1x128xf32>
    %24 = vector.shape_cast %23 : vector<1x128xf32> to vector<128xf32>
    %c16 = arith.constant 16 : index
    %c0_13 = arith.constant 0 : index
    %25 = vector.load %arg10[%c16, %c0_13] : memref<32x128xf32, #tpu.memory_space<vmem>>, vector<1x128xf32>
    %26 = vector.shape_cast %25 : vector<1x128xf32> to vector<128xf32>
    %27 = vector.shape_cast %24 : vector<128xf32> to vector<1x128xf32>
    tpu.vector_store %arg10[%c16, %c0_13], %27 {strides = array<i32>} : memref<32x128xf32, #tpu.memory_space<vmem>>, vector<1x128xf32>,
    %c0_14 = arith.constant 0 : index
    %c3 = arith.constant 3 : index
    %28 = memref.load %arg1[%c0_14, %c3] : memref<8x4xi32, #tpu.memory_space<smem>>
    %29 = arith.index_cast %28 : i32 to index
    %c0_15 = arith.constant 0 : index
    %30 = vector.load %arg3[%29, %c0_15] : memref<24x128xf32, #tpu.memory_space<vmem>>, vector<1x128xf32>
    %31 = vector.shape_cast %30 : vector<1x128xf32> to vector<128xf32>
    %c24 = arith.constant 24 : index
    %c0_16 = arith.constant 0 : index
    %32 = vector.load %arg10[%c24, %c0_16] : memref<32x128xf32, #tpu.memory_space<vmem>>, vector<1x128xf32>
    %33 = vector.shape_cast %32 : vector<1x128xf32> to vector<128xf32>
    %34 = vector.shape_cast %31 : vector<128xf32> to vector<1x128xf32>
    tpu.vector_store %arg10[%c24, %c0_16], %34 {strides = array<i32>} : memref<32x128xf32, #tpu.memory_space<vmem>>, vector<1x128xf32>,
    %c0_17 = arith.constant 0 : index
    %c0_18 = arith.constant 0 : index
    %35 = memref.load %arg2[%c0_17, %c0_18] : memref<8x2xi32, #tpu.memory_space<smem>>
    %36 = arith.index_cast %35 : i32 to index
    %c0_19 = arith.constant 0 : index
    %37 = vector.load %arg3[%36, %c0_19] : memref<24x128xf32, #tpu.memory_space<vmem>>, vector<1x128xf32>
    %38 = vector.shape_cast %37 : vector<1x128xf32> to vector<128xf32>
    %c0_20 = arith.constant 0 : index
    %c0_21 = arith.constant 0 : index
    %c0_22 = arith.constant 0 : index
    %39 = vector.load %arg11[%c0_20, %c0_21, %c0_22] : memref<8x2x128xf32, #tpu.memory_space<vmem>>, vector<1x1x128xf32>
    %40 = vector.shape_cast %39 : vector<1x1x128xf32> to vector<128xf32>
    %41 = vector.shape_cast %38 : vector<128xf32> to vector<1x1x128xf32>
    tpu.vector_store %arg11[%c0_20, %c0_21, %c0_22], %41 {strides = array<i32>} : memref<8x2x128xf32, #tpu.memory_space<vmem>>, vector<1x1x128xf32>,
    %c0_23 = arith.constant 0 : index
    %c1_24 = arith.constant 1 : index
    %42 = memref.load %arg2[%c0_23, %c1_24] : memref<8x2xi32, #tpu.memory_space<smem>>
    %43 = arith.index_cast %42 : i32 to index
    %c0_25 = arith.constant 0 : index
    %44 = vector.load %arg3[%43, %c0_25] : memref<24x128xf32, #tpu.memory_space<vmem>>, vector<1x128xf32>
    %45 = vector.shape_cast %44 : vector<1x128xf32> to vector<128xf32>
    %c0_26 = arith.constant 0 : index
    %c1_27 = arith.constant 1 : index
    %c0_28 = arith.constant 0 : index
    %46 = vector.load %arg11[%c0_26, %c1_27, %c0_28] : memref<8x2x128xf32, #tpu.memory_space<vmem>>, vector<1x1x128xf32>
    %47 = vector.shape_cast %46 : vector<1x1x128xf32> to vector<128xf32>
    %48 = vector.shape_cast %45 : vector<128xf32> to vector<1x1x128xf32>
    tpu.vector_store %arg11[%c0_26, %c1_27, %c0_28], %48 {strides = array<i32>} : memref<8x2x128xf32, #tpu.memory_space<vmem>>, vector<1x1x128xf32>,
    %c1_29 = arith.constant 1 : index
    %49 = memref.load %arg0[%c1_29] : memref<8xi32, #tpu.memory_space<smem>>
    %50 = arith.index_cast %49 : i32 to index
    %c0_30 = arith.constant 0 : index
    %51 = vector.load %arg4[%50, %c0_30] : memref<8x128xf32, #tpu.memory_space<vmem>>, vector<1x128xf32>
    %52 = vector.shape_cast %51 : vector<1x128xf32> to vector<128xf32>
    %c1_31 = arith.constant 1 : index
    %c0_32 = arith.constant 0 : index
    %53 = vector.load %arg12[%c1_31, %c0_32] : memref<8x128xf32, #tpu.memory_space<vmem>>, vector<1x128xf32>
    %54 = vector.shape_cast %53 : vector<1x128xf32> to vector<128xf32>
    %55 = vector.shape_cast %52 : vector<128xf32> to vector<1x128xf32>
    tpu.vector_store %arg12[%c1_31, %c0_32], %55 {strides = array<i32>} : memref<8x128xf32, #tpu.memory_space<vmem>>, vector<1x128xf32>,
    %c1_33 = arith.constant 1 : index
    %c0_34 = arith.constant 0 : index
    %56 = memref.load %arg1[%c1_33, %c0_34] : memref<8x4xi32, #tpu.memory_space<smem>>
    %57 = arith.index_cast %56 : i32 to index
    %c0_35 = arith.constant 0 : index
    %58 = vector.load %arg3[%57, %c0_35] : memref<24x128xf32, #tpu.memory_space<vmem>>, vector<1x128xf32>
    %59 = vector.shape_cast %58 : vector<1x128xf32> to vector<128xf32>
    %c1_36 = arith.constant 1 : index
    %c0_37 = arith.constant 0 : index
    %60 = vector.load %arg10[%c1_36, %c0_37] : memref<32x128xf32, #tpu.memory_space<vmem>>, vector<1x128xf32>
    %61 = vector.shape_cast %60 : vector<1x128xf32> to vector<128xf32>
    %62 = vector.shape_cast %59 : vector<128xf32> to vector<1x128xf32>
    tpu.vector_store %arg10[%c1_36, %c0_37], %62 {strides = array<i32>} : memref<32x128xf32, #tpu.memory_space<vmem>>, vector<1x128xf32>,
    %c1_38 = arith.constant 1 : index
    %c1_39 = arith.constant 1 : index
    %63 = memref.load %arg1[%c1_38, %c1_39] : memref<8x4xi32, #tpu.memory_space<smem>>
    %64 = arith.index_cast %63 : i32 to index
    %c0_40 = arith.constant 0 : index
    %65 = vector.load %arg3[%64, %c0_40] : memref<24x128xf32, #tpu.memory_space<vmem>>, vector<1x128xf32>
    %66 = vector.shape_cast %65 : vector<1x128xf32> to vector<128xf32>
    %c9 = arith.constant 9 : index
    %c0_41 = arith.constant 0 : index
    %67 = vector.load %arg10[%c9, %c0_41] : memref<32x128xf32, #tpu.memory_space<vmem>>, vector<1x128xf32>
    %68 = vector.shape_cast %67 : vector<1x128xf32> to vector<128xf32>
    %69 = vector.shape_cast %66 : vector<128xf32> to vector<1x128xf32>
    tpu.vector_store %arg10[%c9, %c0_41], %69 {strides = array<i32>} : memref<32x128xf32, #tpu.memory_space<vmem>>, vector<1x128xf32>,
    %c1_42 = arith.constant 1 : index
    %c2_43 = arith.constant 2 : index
    %70 = memref.load %arg1[%c1_42, %c2_43] : memref<8x4xi32, #tpu.memory_space<smem>>
    %71 = arith.index_cast %70 : i32 to index
    %c0_44 = arith.constant 0 : index
    %72 = vector.load %arg3[%71, %c0_44] : memref<24x128xf32, #tpu.memory_space<vmem>>, vector<1x128xf32>
    %73 = vector.shape_cast %72 : vector<1x128xf32> to vector<128xf32>
    %c17 = arith.constant 17 : index
    %c0_45 = arith.constant 0 : index
    %74 = vector.load %arg10[%c17, %c0_45] : memref<32x128xf32, #tpu.memory_space<vmem>>, vector<1x128xf32>
    %75 = vector.shape_cast %74 : vector<1x128xf32> to vector<128xf32>
    %76 = vector.shape_cast %73 : vector<128xf32> to vector<1x128xf32>
    tpu.vector_store %arg10[%c17, %c0_45], %76 {strides = array<i32>} : memref<32x128xf32, #tpu.memory_space<vmem>>, vector<1x128xf32>,
    %c1_46 = arith.constant 1 : index
    %c3_47 = arith.constant 3 : index
    %77 = memref.load %arg1[%c1_46, %c3_47] : memref<8x4xi32, #tpu.memory_space<smem>>
    %78 = arith.index_cast %77 : i32 to index
    %c0_48 = arith.constant 0 : index
    %79 = vector.load %arg3[%78, %c0_48] : memref<24x128xf32, #tpu.memory_space<vmem>>, vector<1x128xf32>
    %80 = vector.shape_cast %79 : vector<1x128xf32> to vector<128xf32>
    %c25 = arith.constant 25 : index
    %c0_49 = arith.constant 0 : index
    %81 = vector.load %arg10[%c25, %c0_49] : memref<32x128xf32, #tpu.memory_space<vmem>>, vector<1x128xf32>
    %82 = vector.shape_cast %81 : vector<1x128xf32> to vector<128xf32>
    %83 = vector.shape_cast %80 : vector<128xf32> to vector<1x128xf32>
    tpu.vector_store %arg10[%c25, %c0_49], %83 {strides = array<i32>} : memref<32x128xf32, #tpu.memory_space<vmem>>, vector<1x128xf32>,
    %c1_50 = arith.constant 1 : index
    %c0_51 = arith.constant 0 : index
    %84 = memref.load %arg2[%c1_50, %c0_51] : memref<8x2xi32, #tpu.memory_space<smem>>
    %85 = arith.index_cast %84 : i32 to index
    %c0_52 = arith.constant 0 : index
    %86 = vector.load %arg3[%85, %c0_52] : memref<24x128xf32, #tpu.memory_space<vmem>>, vector<1x128xf32>
    %87 = vector.shape_cast %86 : vector<1x128xf32> to vector<128xf32>
    %c1_53 = arith.constant 1 : index
    %c0_54 = arith.constant 0 : index
    %c0_55 = arith.constant 0 : index
    %88 = vector.load %arg11[%c1_53, %c0_54, %c0_55] : memref<8x2x128xf32, #tpu.memory_space<vmem>>, vector<1x1x128xf32>
    %89 = vector.shape_cast %88 : vector<1x1x128xf32> to vector<128xf32>
    %90 = vector.shape_cast %87 : vector<128xf32> to vector<1x1x128xf32>
    tpu.vector_store %arg11[%c1_53, %c0_54, %c0_55], %90 {strides = array<i32>} : memref<8x2x128xf32, #tpu.memory_space<vmem>>, vector<1x1x128xf32>,
    %c1_56 = arith.constant 1 : index
    %c1_57 = arith.constant 1 : index
    %91 = memref.load %arg2[%c1_56, %c1_57] : memref<8x2xi32, #tpu.memory_space<smem>>
    %92 = arith.index_cast %91 : i32 to index
    %c0_58 = arith.constant 0 : index
    %93 = vector.load %arg3[%92, %c0_58] : memref<24x128xf32, #tpu.memory_space<vmem>>, vector<1x128xf32>
    %94 = vector.shape_cast %93 : vector<1x128xf32> to vector<128xf32>
    %c1_59 = arith.constant 1 : index
    %c1_60 = arith.constant 1 : index
    %c0_61 = arith.constant 0 : index
    %95 = vector.load %arg11[%c1_59, %c1_60, %c0_61] : memref<8x2x128xf32, #tpu.memory_space<vmem>>, vector<1x1x128xf32>
    %96 = vector.shape_cast %95 : vector<1x1x128xf32> to vector<128xf32>
    %97 = vector.shape_cast %94 : vector<128xf32> to vector<1x1x128xf32>
    tpu.vector_store %arg11[%c1_59, %c1_60, %c0_61], %97 {strides = array<i32>} : memref<8x2x128xf32, #tpu.memory_space<vmem>>, vector<1x1x128xf32>,
    %c2_62 = arith.constant 2 : index
    %98 = memref.load %arg0[%c2_62] : memref<8xi32, #tpu.memory_space<smem>>
    %99 = arith.index_cast %98 : i32 to index
    %c0_63 = arith.constant 0 : index
    %100 = vector.load %arg4[%99, %c0_63] : memref<8x128xf32, #tpu.memory_space<vmem>>, vector<1x128xf32>
    %101 = vector.shape_cast %100 : vector<1x128xf32> to vector<128xf32>
    %c2_64 = arith.constant 2 : index
    %c0_65 = arith.constant 0 : index
    %102 = vector.load %arg12[%c2_64, %c0_65] : memref<8x128xf32, #tpu.memory_space<vmem>>, vector<1x128xf32>
    %103 = vector.shape_cast %102 : vector<1x128xf32> to vector<128xf32>
    %104 = vector.shape_cast %101 : vector<128xf32> to vector<1x128xf32>
    tpu.vector_store %arg12[%c2_64, %c0_65], %104 {strides = array<i32>} : memref<8x128xf32, #tpu.memory_space<vmem>>, vector<1x128xf32>,
    %c2_66 = arith.constant 2 : index
    %c0_67 = arith.constant 0 : index
    %105 = memref.load %arg1[%c2_66, %c0_67] : memref<8x4xi32, #tpu.memory_space<smem>>
    %106 = arith.index_cast %105 : i32 to index
    %c0_68 = arith.constant 0 : index
    %107 = vector.load %arg3[%106, %c0_68] : memref<24x128xf32, #tpu.memory_space<vmem>>, vector<1x128xf32>
    %108 = vector.shape_cast %107 : vector<1x128xf32> to vector<128xf32>
    %c2_69 = arith.constant 2 : index
    %c0_70 = arith.constant 0 : index
    %109 = vector.load %arg10[%c2_69, %c0_70] : memref<32x128xf32, #tpu.memory_space<vmem>>, vector<1x128xf32>
    %110 = vector.shape_cast %109 : vector<1x128xf32> to vector<128xf32>
    %111 = vector.shape_cast %108 : vector<128xf32> to vector<1x128xf32>
    tpu.vector_store %arg10[%c2_69, %c0_70], %111 {strides = array<i32>} : memref<32x128xf32, #tpu.memory_space<vmem>>, vector<1x128xf32>,
    %c2_71 = arith.constant 2 : index
    %c1_72 = arith.constant 1 : index
    %112 = memref.load %arg1[%c2_71, %c1_72] : memref<8x4xi32, #tpu.memory_space<smem>>
    %113 = arith.index_cast %112 : i32 to index
    %c0_73 = arith.constant 0 : index
    %114 = vector.load %arg3[%113, %c0_73] : memref<24x128xf32, #tpu.memory_space<vmem>>, vector<1x128xf32>
    %115 = vector.shape_cast %114 : vector<1x128xf32> to vector<128xf32>
    %c10 = arith.constant 10 : index
    %c0_74 = arith.constant 0 : index
    %116 = vector.load %arg10[%c10, %c0_74] : memref<32x128xf32, #tpu.memory_space<vmem>>, vector<1x128xf32>
    %117 = vector.shape_cast %116 : vector<1x128xf32> to vector<128xf32>
    %118 = vector.shape_cast %115 : vector<128xf32> to vector<1x128xf32>
    tpu.vector_store %arg10[%c10, %c0_74], %118 {strides = array<i32>} : memref<32x128xf32, #tpu.memory_space<vmem>>, vector<1x128xf32>,
    %c2_75 = arith.constant 2 : index
    %c2_76 = arith.constant 2 : index
    %119 = memref.load %arg1[%c2_75, %c2_76] : memref<8x4xi32, #tpu.memory_space<smem>>
    %120 = arith.index_cast %119 : i32 to index
    %c0_77 = arith.constant 0 : index
    %121 = vector.load %arg3[%120, %c0_77] : memref<24x128xf32, #tpu.memory_space<vmem>>, vector<1x128xf32>
    %122 = vector.shape_cast %121 : vector<1x128xf32> to vector<128xf32>
    %c18 = arith.constant 18 : index
    %c0_78 = arith.constant 0 : index
    %123 = vector.load %arg10[%c18, %c0_78] : memref<32x128xf32, #tpu.memory_space<vmem>>, vector<1x128xf32>
    %124 = vector.shape_cast %123 : vector<1x128xf32> to vector<128xf32>
    %125 = vector.shape_cast %122 : vector<128xf32> to vector<1x128xf32>
    tpu.vector_store %arg10[%c18, %c0_78], %125 {strides = array<i32>} : memref<32x128xf32, #tpu.memory_space<vmem>>, vector<1x128xf32>,
    %c2_79 = arith.constant 2 : index
    %c3_80 = arith.constant 3 : index
    %126 = memref.load %arg1[%c2_79, %c3_80] : memref<8x4xi32, #tpu.memory_space<smem>>
    %127 = arith.index_cast %126 : i32 to index
    %c0_81 = arith.constant 0 : index
    %128 = vector.load %arg3[%127, %c0_81] : memref<24x128xf32, #tpu.memory_space<vmem>>, vector<1x128xf32>
    %129 = vector.shape_cast %128 : vector<1x128xf32> to vector<128xf32>
    %c26 = arith.constant 26 : index
    %c0_82 = arith.constant 0 : index
    %130 = vector.load %arg10[%c26, %c0_82] : memref<32x128xf32, #tpu.memory_space<vmem>>, vector<1x128xf32>
    %131 = vector.shape_cast %130 : vector<1x128xf32> to vector<128xf32>
    %132 = vector.shape_cast %129 : vector<128xf32> to vector<1x128xf32>
    tpu.vector_store %arg10[%c26, %c0_82], %132 {strides = array<i32>} : memref<32x128xf32, #tpu.memory_space<vmem>>, vector<1x128xf32>,
    %c2_83 = arith.constant 2 : index
    %c0_84 = arith.constant 0 : index
    %133 = memref.load %arg2[%c2_83, %c0_84] : memref<8x2xi32, #tpu.memory_space<smem>>
    %134 = arith.index_cast %133 : i32 to index
    %c0_85 = arith.constant 0 : index
    %135 = vector.load %arg3[%134, %c0_85] : memref<24x128xf32, #tpu.memory_space<vmem>>, vector<1x128xf32>
    %136 = vector.shape_cast %135 : vector<1x128xf32> to vector<128xf32>
    %c2_86 = arith.constant 2 : index
    %c0_87 = arith.constant 0 : index
    %c0_88 = arith.constant 0 : index
    %137 = vector.load %arg11[%c2_86, %c0_87, %c0_88] : memref<8x2x128xf32, #tpu.memory_space<vmem>>, vector<1x1x128xf32>
    %138 = vector.shape_cast %137 : vector<1x1x128xf32> to vector<128xf32>
    %139 = vector.shape_cast %136 : vector<128xf32> to vector<1x1x128xf32>
    tpu.vector_store %arg11[%c2_86, %c0_87, %c0_88], %139 {strides = array<i32>} : memref<8x2x128xf32, #tpu.memory_space<vmem>>, vector<1x1x128xf32>,
    %c2_89 = arith.constant 2 : index
    %c1_90 = arith.constant 1 : index
    %140 = memref.load %arg2[%c2_89, %c1_90] : memref<8x2xi32, #tpu.memory_space<smem>>
    %141 = arith.index_cast %140 : i32 to index
    %c0_91 = arith.constant 0 : index
    %142 = vector.load %arg3[%141, %c0_91] : memref<24x128xf32, #tpu.memory_space<vmem>>, vector<1x128xf32>
    %143 = vector.shape_cast %142 : vector<1x128xf32> to vector<128xf32>
    %c2_92 = arith.constant 2 : index
    %c1_93 = arith.constant 1 : index
    %c0_94 = arith.constant 0 : index
    %144 = vector.load %arg11[%c2_92, %c1_93, %c0_94] : memref<8x2x128xf32, #tpu.memory_space<vmem>>, vector<1x1x128xf32>
    %145 = vector.shape_cast %144 : vector<1x1x128xf32> to vector<128xf32>
    %146 = vector.shape_cast %143 : vector<128xf32> to vector<1x1x128xf32>
    tpu.vector_store %arg11[%c2_92, %c1_93, %c0_94], %146 {strides = array<i32>} : memref<8x2x128xf32, #tpu.memory_space<vmem>>, vector<1x1x128xf32>,
    %c3_95 = arith.constant 3 : index
    %147 = memref.load %arg0[%c3_95] : memref<8xi32, #tpu.memory_space<smem>>
    %148 = arith.index_cast %147 : i32 to index
    %c0_96 = arith.constant 0 : index
    %149 = vector.load %arg4[%148, %c0_96] : memref<8x128xf32, #tpu.memory_space<vmem>>, vector<1x128xf32>
    %150 = vector.shape_cast %149 : vector<1x128xf32> to vector<128xf32>
    %c3_97 = arith.constant 3 : index
    %c0_98 = arith.constant 0 : index
    %151 = vector.load %arg12[%c3_97, %c0_98] : memref<8x128xf32, #tpu.memory_space<vmem>>, vector<1x128xf32>
    %152 = vector.shape_cast %151 : vector<1x128xf32> to vector<128xf32>
    %153 = vector.shape_cast %150 : vector<128xf32> to vector<1x128xf32>
    tpu.vector_store %arg12[%c3_97, %c0_98], %153 {strides = array<i32>} : memref<8x128xf32, #tpu.memory_space<vmem>>, vector<1x128xf32>,
    %c3_99 = arith.constant 3 : index
    %c0_100 = arith.constant 0 : index
    %154 = memref.load %arg1[%c3_99, %c0_100] : memref<8x4xi32, #tpu.memory_space<smem>>
    %155 = arith.index_cast %154 : i32 to index
    %c0_101 = arith.constant 0 : index
    %156 = vector.load %arg3[%155, %c0_101] : memref<24x128xf32, #tpu.memory_space<vmem>>, vector<1x128xf32>
    %157 = vector.shape_cast %156 : vector<1x128xf32> to vector<128xf32>
    %c3_102 = arith.constant 3 : index
    %c0_103 = arith.constant 0 : index
    %158 = vector.load %arg10[%c3_102, %c0_103] : memref<32x128xf32, #tpu.memory_space<vmem>>, vector<1x128xf32>
    %159 = vector.shape_cast %158 : vector<1x128xf32> to vector<128xf32>
    %160 = vector.shape_cast %157 : vector<128xf32> to vector<1x128xf32>
    tpu.vector_store %arg10[%c3_102, %c0_103], %160 {strides = array<i32>} : memref<32x128xf32, #tpu.memory_space<vmem>>, vector<1x128xf32>,
    %c3_104 = arith.constant 3 : index
    %c1_105 = arith.constant 1 : index
    %161 = memref.load %arg1[%c3_104, %c1_105] : memref<8x4xi32, #tpu.memory_space<smem>>
    %162 = arith.index_cast %161 : i32 to index
    %c0_106 = arith.constant 0 : index
    %163 = vector.load %arg3[%162, %c0_106] : memref<24x128xf32, #tpu.memory_space<vmem>>, vector<1x128xf32>
    %164 = vector.shape_cast %163 : vector<1x128xf32> to vector<128xf32>
    %c11 = arith.constant 11 : index
    %c0_107 = arith.constant 0 : index
    %165 = vector.load %arg10[%c11, %c0_107] : memref<32x128xf32, #tpu.memory_space<vmem>>, vector<1x128xf32>
    %166 = vector.shape_cast %165 : vector<1x128xf32> to vector<128xf32>
    %167 = vector.shape_cast %164 : vector<128xf32> to vector<1x128xf32>
    tpu.vector_store %arg10[%c11, %c0_107], %167 {strides = array<i32>} : memref<32x128xf32, #tpu.memory_space<vmem>>, vector<1x128xf32>,
    %c3_108 = arith.constant 3 : index
    %c2_109 = arith.constant 2 : index
    %168 = memref.load %arg1[%c3_108, %c2_109] : memref<8x4xi32, #tpu.memory_space<smem>>
    %169 = arith.index_cast %168 : i32 to index
    %c0_110 = arith.constant 0 : index
    %170 = vector.load %arg3[%169, %c0_110] : memref<24x128xf32, #tpu.memory_space<vmem>>, vector<1x128xf32>
    %171 = vector.shape_cast %170 : vector<1x128xf32> to vector<128xf32>
    %c19 = arith.constant 19 : index
    %c0_111 = arith.constant 0 : index
    %172 = vector.load %arg10[%c19, %c0_111] : memref<32x128xf32, #tpu.memory_space<vmem>>, vector<1x128xf32>
    %173 = vector.shape_cast %172 : vector<1x128xf32> to vector<128xf32>
    %174 = vector.shape_cast %171 : vector<128xf32> to vector<1x128xf32>
    tpu.vector_store %arg10[%c19, %c0_111], %174 {strides = array<i32>} : memref<32x128xf32, #tpu.memory_space<vmem>>, vector<1x128xf32>,
    %c3_112 = arith.constant 3 : index
    %c3_113 = arith.constant 3 : index
    %175 = memref.load %arg1[%c3_112, %c3_113] : memref<8x4xi32, #tpu.memory_space<smem>>
    %176 = arith.index_cast %175 : i32 to index
    %c0_114 = arith.constant 0 : index
    %177 = vector.load %arg3[%176, %c0_114] : memref<24x128xf32, #tpu.memory_space<vmem>>, vector<1x128xf32>
    %178 = vector.shape_cast %177 : vector<1x128xf32> to vector<128xf32>
    %c27 = arith.constant 27 : index
    %c0_115 = arith.constant 0 : index
    %179 = vector.load %arg10[%c27, %c0_115] : memref<32x128xf32, #tpu.memory_space<vmem>>, vector<1x128xf32>
    %180 = vector.shape_cast %179 : vector<1x128xf32> to vector<128xf32>
    %181 = vector.shape_cast %178 : vector<128xf32> to vector<1x128xf32>
    tpu.vector_store %arg10[%c27, %c0_115], %181 {strides = array<i32>} : memref<32x128xf32, #tpu.memory_space<vmem>>, vector<1x128xf32>,
    %c3_116 = arith.constant 3 : index
    %c0_117 = arith.constant 0 : index
    %182 = memref.load %arg2[%c3_116, %c0_117] : memref<8x2xi32, #tpu.memory_space<smem>>
    %183 = arith.index_cast %182 : i32 to index
    %c0_118 = arith.constant 0 : index
    %184 = vector.load %arg3[%183, %c0_118] : memref<24x128xf32, #tpu.memory_space<vmem>>, vector<1x128xf32>
    %185 = vector.shape_cast %184 : vector<1x128xf32> to vector<128xf32>
    %c3_119 = arith.constant 3 : index
    %c0_120 = arith.constant 0 : index
    %c0_121 = arith.constant 0 : index
    %186 = vector.load %arg11[%c3_119, %c0_120, %c0_121] : memref<8x2x128xf32, #tpu.memory_space<vmem>>, vector<1x1x128xf32>
    %187 = vector.shape_cast %186 : vector<1x1x128xf32> to vector<128xf32>
    %188 = vector.shape_cast %185 : vector<128xf32> to vector<1x1x128xf32>
    tpu.vector_store %arg11[%c3_119, %c0_120, %c0_121], %188 {strides = array<i32>} : memref<8x2x128xf32, #tpu.memory_space<vmem>>, vector<1x1x128xf32>,
    %c3_122 = arith.constant 3 : index
    %c1_123 = arith.constant 1 : index
    %189 = memref.load %arg2[%c3_122, %c1_123] : memref<8x2xi32, #tpu.memory_space<smem>>
    %190 = arith.index_cast %189 : i32 to index
    %c0_124 = arith.constant 0 : index
    %191 = vector.load %arg3[%190, %c0_124] : memref<24x128xf32, #tpu.memory_space<vmem>>, vector<1x128xf32>
    %192 = vector.shape_cast %191 : vector<1x128xf32> to vector<128xf32>
    %c3_125 = arith.constant 3 : index
    %c1_126 = arith.constant 1 : index
    %c0_127 = arith.constant 0 : index
    %193 = vector.load %arg11[%c3_125, %c1_126, %c0_127] : memref<8x2x128xf32, #tpu.memory_space<vmem>>, vector<1x1x128xf32>
    %194 = vector.shape_cast %193 : vector<1x1x128xf32> to vector<128xf32>
    %195 = vector.shape_cast %192 : vector<128xf32> to vector<1x1x128xf32>
    tpu.vector_store %arg11[%c3_125, %c1_126, %c0_127], %195 {strides = array<i32>} : memref<8x2x128xf32, #tpu.memory_space<vmem>>, vector<1x1x128xf32>,
    %c4 = arith.constant 4 : index
    %196 = memref.load %arg0[%c4] : memref<8xi32, #tpu.memory_space<smem>>
    %197 = arith.index_cast %196 : i32 to index
    %c0_128 = arith.constant 0 : index
    %198 = vector.load %arg4[%197, %c0_128] : memref<8x128xf32, #tpu.memory_space<vmem>>, vector<1x128xf32>
    %199 = vector.shape_cast %198 : vector<1x128xf32> to vector<128xf32>
    %c4_129 = arith.constant 4 : index
    %c0_130 = arith.constant 0 : index
    %200 = vector.load %arg12[%c4_129, %c0_130] : memref<8x128xf32, #tpu.memory_space<vmem>>, vector<1x128xf32>
    %201 = vector.shape_cast %200 : vector<1x128xf32> to vector<128xf32>
    %202 = vector.shape_cast %199 : vector<128xf32> to vector<1x128xf32>
    tpu.vector_store %arg12[%c4_129, %c0_130], %202 {strides = array<i32>} : memref<8x128xf32, #tpu.memory_space<vmem>>, vector<1x128xf32>,
    %c4_131 = arith.constant 4 : index
    %c0_132 = arith.constant 0 : index
    %203 = memref.load %arg1[%c4_131, %c0_132] : memref<8x4xi32, #tpu.memory_space<smem>>
    %204 = arith.index_cast %203 : i32 to index
    %c0_133 = arith.constant 0 : index
    %205 = vector.load %arg3[%204, %c0_133] : memref<24x128xf32, #tpu.memory_space<vmem>>, vector<1x128xf32>
    %206 = vector.shape_cast %205 : vector<1x128xf32> to vector<128xf32>
    %c4_134 = arith.constant 4 : index
    %c0_135 = arith.constant 0 : index
    %207 = vector.load %arg10[%c4_134, %c0_135] : memref<32x128xf32, #tpu.memory_space<vmem>>, vector<1x128xf32>
    %208 = vector.shape_cast %207 : vector<1x128xf32> to vector<128xf32>
    %209 = vector.shape_cast %206 : vector<128xf32> to vector<1x128xf32>
    tpu.vector_store %arg10[%c4_134, %c0_135], %209 {strides = array<i32>} : memref<32x128xf32, #tpu.memory_space<vmem>>, vector<1x128xf32>,
    %c4_136 = arith.constant 4 : index
    %c1_137 = arith.constant 1 : index
    %210 = memref.load %arg1[%c4_136, %c1_137] : memref<8x4xi32, #tpu.memory_space<smem>>
    %211 = arith.index_cast %210 : i32 to index
    %c0_138 = arith.constant 0 : index
    %212 = vector.load %arg3[%211, %c0_138] : memref<24x128xf32, #tpu.memory_space<vmem>>, vector<1x128xf32>
    %213 = vector.shape_cast %212 : vector<1x128xf32> to vector<128xf32>
    %c12 = arith.constant 12 : index
    %c0_139 = arith.constant 0 : index
    %214 = vector.load %arg10[%c12, %c0_139] : memref<32x128xf32, #tpu.memory_space<vmem>>, vector<1x128xf32>
    %215 = vector.shape_cast %214 : vector<1x128xf32> to vector<128xf32>
    %216 = vector.shape_cast %213 : vector<128xf32> to vector<1x128xf32>
    tpu.vector_store %arg10[%c12, %c0_139], %216 {strides = array<i32>} : memref<32x128xf32, #tpu.memory_space<vmem>>, vector<1x128xf32>,
    %c4_140 = arith.constant 4 : index
    %c2_141 = arith.constant 2 : index
    %217 = memref.load %arg1[%c4_140, %c2_141] : memref<8x4xi32, #tpu.memory_space<smem>>
    %218 = arith.index_cast %217 : i32 to index
    %c0_142 = arith.constant 0 : index
    %219 = vector.load %arg3[%218, %c0_142] : memref<24x128xf32, #tpu.memory_space<vmem>>, vector<1x128xf32>
    %220 = vector.shape_cast %219 : vector<1x128xf32> to vector<128xf32>
    %c20 = arith.constant 20 : index
    %c0_143 = arith.constant 0 : index
    %221 = vector.load %arg10[%c20, %c0_143] : memref<32x128xf32, #tpu.memory_space<vmem>>, vector<1x128xf32>
    %222 = vector.shape_cast %221 : vector<1x128xf32> to vector<128xf32>
    %223 = vector.shape_cast %220 : vector<128xf32> to vector<1x128xf32>
    tpu.vector_store %arg10[%c20, %c0_143], %223 {strides = array<i32>} : memref<32x128xf32, #tpu.memory_space<vmem>>, vector<1x128xf32>,
    %c4_144 = arith.constant 4 : index
    %c3_145 = arith.constant 3 : index
    %224 = memref.load %arg1[%c4_144, %c3_145] : memref<8x4xi32, #tpu.memory_space<smem>>
    %225 = arith.index_cast %224 : i32 to index
    %c0_146 = arith.constant 0 : index
    %226 = vector.load %arg3[%225, %c0_146] : memref<24x128xf32, #tpu.memory_space<vmem>>, vector<1x128xf32>
    %227 = vector.shape_cast %226 : vector<1x128xf32> to vector<128xf32>
    %c28 = arith.constant 28 : index
    %c0_147 = arith.constant 0 : index
    %228 = vector.load %arg10[%c28, %c0_147] : memref<32x128xf32, #tpu.memory_space<vmem>>, vector<1x128xf32>
    %229 = vector.shape_cast %228 : vector<1x128xf32> to vector<128xf32>
    %230 = vector.shape_cast %227 : vector<128xf32> to vector<1x128xf32>
    tpu.vector_store %arg10[%c28, %c0_147], %230 {strides = array<i32>} : memref<32x128xf32, #tpu.memory_space<vmem>>, vector<1x128xf32>,
    %c4_148 = arith.constant 4 : index
    %c0_149 = arith.constant 0 : index
    %231 = memref.load %arg2[%c4_148, %c0_149] : memref<8x2xi32, #tpu.memory_space<smem>>
    %232 = arith.index_cast %231 : i32 to index
    %c0_150 = arith.constant 0 : index
    %233 = vector.load %arg3[%232, %c0_150] : memref<24x128xf32, #tpu.memory_space<vmem>>, vector<1x128xf32>
    %234 = vector.shape_cast %233 : vector<1x128xf32> to vector<128xf32>
    %c4_151 = arith.constant 4 : index
    %c0_152 = arith.constant 0 : index
    %c0_153 = arith.constant 0 : index
    %235 = vector.load %arg11[%c4_151, %c0_152, %c0_153] : memref<8x2x128xf32, #tpu.memory_space<vmem>>, vector<1x1x128xf32>
    %236 = vector.shape_cast %235 : vector<1x1x128xf32> to vector<128xf32>
    %237 = vector.shape_cast %234 : vector<128xf32> to vector<1x1x128xf32>
    tpu.vector_store %arg11[%c4_151, %c0_152, %c0_153], %237 {strides = array<i32>} : memref<8x2x128xf32, #tpu.memory_space<vmem>>, vector<1x1x128xf32>,
    %c4_154 = arith.constant 4 : index
    %c1_155 = arith.constant 1 : index
    %238 = memref.load %arg2[%c4_154, %c1_155] : memref<8x2xi32, #tpu.memory_space<smem>>
    %239 = arith.index_cast %238 : i32 to index
    %c0_156 = arith.constant 0 : index
    %240 = vector.load %arg3[%239, %c0_156] : memref<24x128xf32, #tpu.memory_space<vmem>>, vector<1x128xf32>
    %241 = vector.shape_cast %240 : vector<1x128xf32> to vector<128xf32>
    %c4_157 = arith.constant 4 : index
    %c1_158 = arith.constant 1 : index
    %c0_159 = arith.constant 0 : index
    %242 = vector.load %arg11[%c4_157, %c1_158, %c0_159] : memref<8x2x128xf32, #tpu.memory_space<vmem>>, vector<1x1x128xf32>
    %243 = vector.shape_cast %242 : vector<1x1x128xf32> to vector<128xf32>
    %244 = vector.shape_cast %241 : vector<128xf32> to vector<1x1x128xf32>
    tpu.vector_store %arg11[%c4_157, %c1_158, %c0_159], %244 {strides = array<i32>} : memref<8x2x128xf32, #tpu.memory_space<vmem>>, vector<1x1x128xf32>,
    %c5 = arith.constant 5 : index
    %245 = memref.load %arg0[%c5] : memref<8xi32, #tpu.memory_space<smem>>
    %246 = arith.index_cast %245 : i32 to index
    %c0_160 = arith.constant 0 : index
    %247 = vector.load %arg4[%246, %c0_160] : memref<8x128xf32, #tpu.memory_space<vmem>>, vector<1x128xf32>
    %248 = vector.shape_cast %247 : vector<1x128xf32> to vector<128xf32>
    %c5_161 = arith.constant 5 : index
    %c0_162 = arith.constant 0 : index
    %249 = vector.load %arg12[%c5_161, %c0_162] : memref<8x128xf32, #tpu.memory_space<vmem>>, vector<1x128xf32>
    %250 = vector.shape_cast %249 : vector<1x128xf32> to vector<128xf32>
    %251 = vector.shape_cast %248 : vector<128xf32> to vector<1x128xf32>
    tpu.vector_store %arg12[%c5_161, %c0_162], %251 {strides = array<i32>} : memref<8x128xf32, #tpu.memory_space<vmem>>, vector<1x128xf32>,
    %c5_163 = arith.constant 5 : index
    %c0_164 = arith.constant 0 : index
    %252 = memref.load %arg1[%c5_163, %c0_164] : memref<8x4xi32, #tpu.memory_space<smem>>
    %253 = arith.index_cast %252 : i32 to index
    %c0_165 = arith.constant 0 : index
    %254 = vector.load %arg3[%253, %c0_165] : memref<24x128xf32, #tpu.memory_space<vmem>>, vector<1x128xf32>
    %255 = vector.shape_cast %254 : vector<1x128xf32> to vector<128xf32>
    %c5_166 = arith.constant 5 : index
    %c0_167 = arith.constant 0 : index
    %256 = vector.load %arg10[%c5_166, %c0_167] : memref<32x128xf32, #tpu.memory_space<vmem>>, vector<1x128xf32>
    %257 = vector.shape_cast %256 : vector<1x128xf32> to vector<128xf32>
    %258 = vector.shape_cast %255 : vector<128xf32> to vector<1x128xf32>
    tpu.vector_store %arg10[%c5_166, %c0_167], %258 {strides = array<i32>} : memref<32x128xf32, #tpu.memory_space<vmem>>, vector<1x128xf32>,
    %c5_168 = arith.constant 5 : index
    %c1_169 = arith.constant 1 : index
    %259 = memref.load %arg1[%c5_168, %c1_169] : memref<8x4xi32, #tpu.memory_space<smem>>
    %260 = arith.index_cast %259 : i32 to index
    %c0_170 = arith.constant 0 : index
    %261 = vector.load %arg3[%260, %c0_170] : memref<24x128xf32, #tpu.memory_space<vmem>>, vector<1x128xf32>
    %262 = vector.shape_cast %261 : vector<1x128xf32> to vector<128xf32>
    %c13 = arith.constant 13 : index
    %c0_171 = arith.constant 0 : index
    %263 = vector.load %arg10[%c13, %c0_171] : memref<32x128xf32, #tpu.memory_space<vmem>>, vector<1x128xf32>
    %264 = vector.shape_cast %263 : vector<1x128xf32> to vector<128xf32>
    %265 = vector.shape_cast %262 : vector<128xf32> to vector<1x128xf32>
    tpu.vector_store %arg10[%c13, %c0_171], %265 {strides = array<i32>} : memref<32x128xf32, #tpu.memory_space<vmem>>, vector<1x128xf32>,
    %c5_172 = arith.constant 5 : index
    %c2_173 = arith.constant 2 : index
    %266 = memref.load %arg1[%c5_172, %c2_173] : memref<8x4xi32, #tpu.memory_space<smem>>
    %267 = arith.index_cast %266 : i32 to index
    %c0_174 = arith.constant 0 : index
    %268 = vector.load %arg3[%267, %c0_174] : memref<24x128xf32, #tpu.memory_space<vmem>>, vector<1x128xf32>
    %269 = vector.shape_cast %268 : vector<1x128xf32> to vector<128xf32>
    %c21 = arith.constant 21 : index
    %c0_175 = arith.constant 0 : index
    %270 = vector.load %arg10[%c21, %c0_175] : memref<32x128xf32, #tpu.memory_space<vmem>>, vector<1x128xf32>
    %271 = vector.shape_cast %270 : vector<1x128xf32> to vector<128xf32>
    %272 = vector.shape_cast %269 : vector<128xf32> to vector<1x128xf32>
    tpu.vector_store %arg10[%c21, %c0_175], %272 {strides = array<i32>} : memref<32x128xf32, #tpu.memory_space<vmem>>, vector<1x128xf32>,
    %c5_176 = arith.constant 5 : index
    %c3_177 = arith.constant 3 : index
    %273 = memref.load %arg1[%c5_176, %c3_177] : memref<8x4xi32, #tpu.memory_space<smem>>
    %274 = arith.index_cast %273 : i32 to index
    %c0_178 = arith.constant 0 : index
    %275 = vector.load %arg3[%274, %c0_178] : memref<24x128xf32, #tpu.memory_space<vmem>>, vector<1x128xf32>
    %276 = vector.shape_cast %275 : vector<1x128xf32> to vector<128xf32>
    %c29 = arith.constant 29 : index
    %c0_179 = arith.constant 0 : index
    %277 = vector.load %arg10[%c29, %c0_179] : memref<32x128xf32, #tpu.memory_space<vmem>>, vector<1x128xf32>
    %278 = vector.shape_cast %277 : vector<1x128xf32> to vector<128xf32>
    %279 = vector.shape_cast %276 : vector<128xf32> to vector<1x128xf32>
    tpu.vector_store %arg10[%c29, %c0_179], %279 {strides = array<i32>} : memref<32x128xf32, #tpu.memory_space<vmem>>, vector<1x128xf32>,
    %c5_180 = arith.constant 5 : index
    %c0_181 = arith.constant 0 : index
    %280 = memref.load %arg2[%c5_180, %c0_181] : memref<8x2xi32, #tpu.memory_space<smem>>
    %281 = arith.index_cast %280 : i32 to index
    %c0_182 = arith.constant 0 : index
    %282 = vector.load %arg3[%281, %c0_182] : memref<24x128xf32, #tpu.memory_space<vmem>>, vector<1x128xf32>
    %283 = vector.shape_cast %282 : vector<1x128xf32> to vector<128xf32>
    %c5_183 = arith.constant 5 : index
    %c0_184 = arith.constant 0 : index
    %c0_185 = arith.constant 0 : index
    %284 = vector.load %arg11[%c5_183, %c0_184, %c0_185] : memref<8x2x128xf32, #tpu.memory_space<vmem>>, vector<1x1x128xf32>
    %285 = vector.shape_cast %284 : vector<1x1x128xf32> to vector<128xf32>
    %286 = vector.shape_cast %283 : vector<128xf32> to vector<1x1x128xf32>
    tpu.vector_store %arg11[%c5_183, %c0_184, %c0_185], %286 {strides = array<i32>} : memref<8x2x128xf32, #tpu.memory_space<vmem>>, vector<1x1x128xf32>,
    %c5_186 = arith.constant 5 : index
    %c1_187 = arith.constant 1 : index
    %287 = memref.load %arg2[%c5_186, %c1_187] : memref<8x2xi32, #tpu.memory_space<smem>>
    %288 = arith.index_cast %287 : i32 to index
    %c0_188 = arith.constant 0 : index
    %289 = vector.load %arg3[%288, %c0_188] : memref<24x128xf32, #tpu.memory_space<vmem>>, vector<1x128xf32>
    %290 = vector.shape_cast %289 : vector<1x128xf32> to vector<128xf32>
    %c5_189 = arith.constant 5 : index
    %c1_190 = arith.constant 1 : index
    %c0_191 = arith.constant 0 : index
    %291 = vector.load %arg11[%c5_189, %c1_190, %c0_191] : memref<8x2x128xf32, #tpu.memory_space<vmem>>, vector<1x1x128xf32>
    %292 = vector.shape_cast %291 : vector<1x1x128xf32> to vector<128xf32>
    %293 = vector.shape_cast %290 : vector<128xf32> to vector<1x1x128xf32>
    tpu.vector_store %arg11[%c5_189, %c1_190, %c0_191], %293 {strides = array<i32>} : memref<8x2x128xf32, #tpu.memory_space<vmem>>, vector<1x1x128xf32>,
    %c6 = arith.constant 6 : index
    %294 = memref.load %arg0[%c6] : memref<8xi32, #tpu.memory_space<smem>>
    %295 = arith.index_cast %294 : i32 to index
    %c0_192 = arith.constant 0 : index
    %296 = vector.load %arg4[%295, %c0_192] : memref<8x128xf32, #tpu.memory_space<vmem>>, vector<1x128xf32>
    %297 = vector.shape_cast %296 : vector<1x128xf32> to vector<128xf32>
    %c6_193 = arith.constant 6 : index
    %c0_194 = arith.constant 0 : index
    %298 = vector.load %arg12[%c6_193, %c0_194] : memref<8x128xf32, #tpu.memory_space<vmem>>, vector<1x128xf32>
    %299 = vector.shape_cast %298 : vector<1x128xf32> to vector<128xf32>
    %300 = vector.shape_cast %297 : vector<128xf32> to vector<1x128xf32>
    tpu.vector_store %arg12[%c6_193, %c0_194], %300 {strides = array<i32>} : memref<8x128xf32, #tpu.memory_space<vmem>>, vector<1x128xf32>,
    %c6_195 = arith.constant 6 : index
    %c0_196 = arith.constant 0 : index
    %301 = memref.load %arg1[%c6_195, %c0_196] : memref<8x4xi32, #tpu.memory_space<smem>>
    %302 = arith.index_cast %301 : i32 to index
    %c0_197 = arith.constant 0 : index
    %303 = vector.load %arg3[%302, %c0_197] : memref<24x128xf32, #tpu.memory_space<vmem>>, vector<1x128xf32>
    %304 = vector.shape_cast %303 : vector<1x128xf32> to vector<128xf32>
    %c6_198 = arith.constant 6 : index
    %c0_199 = arith.constant 0 : index
    %305 = vector.load %arg10[%c6_198, %c0_199] : memref<32x128xf32, #tpu.memory_space<vmem>>, vector<1x128xf32>
    %306 = vector.shape_cast %305 : vector<1x128xf32> to vector<128xf32>
    %307 = vector.shape_cast %304 : vector<128xf32> to vector<1x128xf32>
    tpu.vector_store %arg10[%c6_198, %c0_199], %307 {strides = array<i32>} : memref<32x128xf32, #tpu.memory_space<vmem>>, vector<1x128xf32>,
    %c6_200 = arith.constant 6 : index
    %c1_201 = arith.constant 1 : index
    %308 = memref.load %arg1[%c6_200, %c1_201] : memref<8x4xi32, #tpu.memory_space<smem>>
    %309 = arith.index_cast %308 : i32 to index
    %c0_202 = arith.constant 0 : index
    %310 = vector.load %arg3[%309, %c0_202] : memref<24x128xf32, #tpu.memory_space<vmem>>, vector<1x128xf32>
    %311 = vector.shape_cast %310 : vector<1x128xf32> to vector<128xf32>
    %c14 = arith.constant 14 : index
    %c0_203 = arith.constant 0 : index
    %312 = vector.load %arg10[%c14, %c0_203] : memref<32x128xf32, #tpu.memory_space<vmem>>, vector<1x128xf32>
    %313 = vector.shape_cast %312 : vector<1x128xf32> to vector<128xf32>
    %314 = vector.shape_cast %311 : vector<128xf32> to vector<1x128xf32>
    tpu.vector_store %arg10[%c14, %c0_203], %314 {strides = array<i32>} : memref<32x128xf32, #tpu.memory_space<vmem>>, vector<1x128xf32>,
    %c6_204 = arith.constant 6 : index
    %c2_205 = arith.constant 2 : index
    %315 = memref.load %arg1[%c6_204, %c2_205] : memref<8x4xi32, #tpu.memory_space<smem>>
    %316 = arith.index_cast %315 : i32 to index
    %c0_206 = arith.constant 0 : index
    %317 = vector.load %arg3[%316, %c0_206] : memref<24x128xf32, #tpu.memory_space<vmem>>, vector<1x128xf32>
    %318 = vector.shape_cast %317 : vector<1x128xf32> to vector<128xf32>
    %c22 = arith.constant 22 : index
    %c0_207 = arith.constant 0 : index
    %319 = vector.load %arg10[%c22, %c0_207] : memref<32x128xf32, #tpu.memory_space<vmem>>, vector<1x128xf32>
    %320 = vector.shape_cast %319 : vector<1x128xf32> to vector<128xf32>
    %321 = vector.shape_cast %318 : vector<128xf32> to vector<1x128xf32>
    tpu.vector_store %arg10[%c22, %c0_207], %321 {strides = array<i32>} : memref<32x128xf32, #tpu.memory_space<vmem>>, vector<1x128xf32>,
    %c6_208 = arith.constant 6 : index
    %c3_209 = arith.constant 3 : index
    %322 = memref.load %arg1[%c6_208, %c3_209] : memref<8x4xi32, #tpu.memory_space<smem>>
    %323 = arith.index_cast %322 : i32 to index
    %c0_210 = arith.constant 0 : index
    %324 = vector.load %arg3[%323, %c0_210] : memref<24x128xf32, #tpu.memory_space<vmem>>, vector<1x128xf32>
    %325 = vector.shape_cast %324 : vector<1x128xf32> to vector<128xf32>
    %c30 = arith.constant 30 : index
    %c0_211 = arith.constant 0 : index
    %326 = vector.load %arg10[%c30, %c0_211] : memref<32x128xf32, #tpu.memory_space<vmem>>, vector<1x128xf32>
    %327 = vector.shape_cast %326 : vector<1x128xf32> to vector<128xf32>
    %328 = vector.shape_cast %325 : vector<128xf32> to vector<1x128xf32>
    tpu.vector_store %arg10[%c30, %c0_211], %328 {strides = array<i32>} : memref<32x128xf32, #tpu.memory_space<vmem>>, vector<1x128xf32>,
    %c6_212 = arith.constant 6 : index
    %c0_213 = arith.constant 0 : index
    %329 = memref.load %arg2[%c6_212, %c0_213] : memref<8x2xi32, #tpu.memory_space<smem>>
    %330 = arith.index_cast %329 : i32 to index
    %c0_214 = arith.constant 0 : index
    %331 = vector.load %arg3[%330, %c0_214] : memref<24x128xf32, #tpu.memory_space<vmem>>, vector<1x128xf32>
    %332 = vector.shape_cast %331 : vector<1x128xf32> to vector<128xf32>
    %c6_215 = arith.constant 6 : index
    %c0_216 = arith.constant 0 : index
    %c0_217 = arith.constant 0 : index
    %333 = vector.load %arg11[%c6_215, %c0_216, %c0_217] : memref<8x2x128xf32, #tpu.memory_space<vmem>>, vector<1x1x128xf32>
    %334 = vector.shape_cast %333 : vector<1x1x128xf32> to vector<128xf32>
    %335 = vector.shape_cast %332 : vector<128xf32> to vector<1x1x128xf32>
    tpu.vector_store %arg11[%c6_215, %c0_216, %c0_217], %335 {strides = array<i32>} : memref<8x2x128xf32, #tpu.memory_space<vmem>>, vector<1x1x128xf32>,
    %c6_218 = arith.constant 6 : index
    %c1_219 = arith.constant 1 : index
    %336 = memref.load %arg2[%c6_218, %c1_219] : memref<8x2xi32, #tpu.memory_space<smem>>
    %337 = arith.index_cast %336 : i32 to index
    %c0_220 = arith.constant 0 : index
    %338 = vector.load %arg3[%337, %c0_220] : memref<24x128xf32, #tpu.memory_space<vmem>>, vector<1x128xf32>
    %339 = vector.shape_cast %338 : vector<1x128xf32> to vector<128xf32>
    %c6_221 = arith.constant 6 : index
    %c1_222 = arith.constant 1 : index
    %c0_223 = arith.constant 0 : index
    %340 = vector.load %arg11[%c6_221, %c1_222, %c0_223] : memref<8x2x128xf32, #tpu.memory_space<vmem>>, vector<1x1x128xf32>
    %341 = vector.shape_cast %340 : vector<1x1x128xf32> to vector<128xf32>
    %342 = vector.shape_cast %339 : vector<128xf32> to vector<1x1x128xf32>
    tpu.vector_store %arg11[%c6_221, %c1_222, %c0_223], %342 {strides = array<i32>} : memref<8x2x128xf32, #tpu.memory_space<vmem>>, vector<1x1x128xf32>,
    %c7 = arith.constant 7 : index
    %343 = memref.load %arg0[%c7] : memref<8xi32, #tpu.memory_space<smem>>
    %344 = arith.index_cast %343 : i32 to index
    %c0_224 = arith.constant 0 : index
    %345 = vector.load %arg4[%344, %c0_224] : memref<8x128xf32, #tpu.memory_space<vmem>>, vector<1x128xf32>
    %346 = vector.shape_cast %345 : vector<1x128xf32> to vector<128xf32>
    %c7_225 = arith.constant 7 : index
    %c0_226 = arith.constant 0 : index
    %347 = vector.load %arg12[%c7_225, %c0_226] : memref<8x128xf32, #tpu.memory_space<vmem>>, vector<1x128xf32>
    %348 = vector.shape_cast %347 : vector<1x128xf32> to vector<128xf32>
    %349 = vector.shape_cast %346 : vector<128xf32> to vector<1x128xf32>
    tpu.vector_store %arg12[%c7_225, %c0_226], %349 {strides = array<i32>} : memref<8x128xf32, #tpu.memory_space<vmem>>, vector<1x128xf32>,
    %c7_227 = arith.constant 7 : index
    %c0_228 = arith.constant 0 : index
    %350 = memref.load %arg1[%c7_227, %c0_228] : memref<8x4xi32, #tpu.memory_space<smem>>
    %351 = arith.index_cast %350 : i32 to index
    %c0_229 = arith.constant 0 : index
    %352 = vector.load %arg3[%351, %c0_229] : memref<24x128xf32, #tpu.memory_space<vmem>>, vector<1x128xf32>
    %353 = vector.shape_cast %352 : vector<1x128xf32> to vector<128xf32>
    %c7_230 = arith.constant 7 : index
    %c0_231 = arith.constant 0 : index
    %354 = vector.load %arg10[%c7_230, %c0_231] : memref<32x128xf32, #tpu.memory_space<vmem>>, vector<1x128xf32>
    %355 = vector.shape_cast %354 : vector<1x128xf32> to vector<128xf32>
    %356 = vector.shape_cast %353 : vector<128xf32> to vector<1x128xf32>
    tpu.vector_store %arg10[%c7_230, %c0_231], %356 {strides = array<i32>} : memref<32x128xf32, #tpu.memory_space<vmem>>, vector<1x128xf32>,
    %c7_232 = arith.constant 7 : index
    %c1_233 = arith.constant 1 : index
    %357 = memref.load %arg1[%c7_232, %c1_233] : memref<8x4xi32, #tpu.memory_space<smem>>
    %358 = arith.index_cast %357 : i32 to index
    %c0_234 = arith.constant 0 : index
    %359 = vector.load %arg3[%358, %c0_234] : memref<24x128xf32, #tpu.memory_space<vmem>>, vector<1x128xf32>
    %360 = vector.shape_cast %359 : vector<1x128xf32> to vector<128xf32>
    %c15 = arith.constant 15 : index
    %c0_235 = arith.constant 0 : index
    %361 = vector.load %arg10[%c15, %c0_235] : memref<32x128xf32, #tpu.memory_space<vmem>>, vector<1x128xf32>
    %362 = vector.shape_cast %361 : vector<1x128xf32> to vector<128xf32>
    %363 = vector.shape_cast %360 : vector<128xf32> to vector<1x128xf32>
    tpu.vector_store %arg10[%c15, %c0_235], %363 {strides = array<i32>} : memref<32x128xf32, #tpu.memory_space<vmem>>, vector<1x128xf32>,
    %c7_236 = arith.constant 7 : index
    %c2_237 = arith.constant 2 : index
    %364 = memref.load %arg1[%c7_236, %c2_237] : memref<8x4xi32, #tpu.memory_space<smem>>
    %365 = arith.index_cast %364 : i32 to index
    %c0_238 = arith.constant 0 : index
    %366 = vector.load %arg3[%365, %c0_238] : memref<24x128xf32, #tpu.memory_space<vmem>>, vector<1x128xf32>
    %367 = vector.shape_cast %366 : vector<1x128xf32> to vector<128xf32>
    %c23 = arith.constant 23 : index
    %c0_239 = arith.constant 0 : index
    %368 = vector.load %arg10[%c23, %c0_239] : memref<32x128xf32, #tpu.memory_space<vmem>>, vector<1x128xf32>
    %369 = vector.shape_cast %368 : vector<1x128xf32> to vector<128xf32>
    %370 = vector.shape_cast %367 : vector<128xf32> to vector<1x128xf32>
    tpu.vector_store %arg10[%c23, %c0_239], %370 {strides = array<i32>} : memref<32x128xf32, #tpu.memory_space<vmem>>, vector<1x128xf32>,
    %c7_240 = arith.constant 7 : index
    %c3_241 = arith.constant 3 : index
    %371 = memref.load %arg1[%c7_240, %c3_241] : memref<8x4xi32, #tpu.memory_space<smem>>
    %372 = arith.index_cast %371 : i32 to index
    %c0_242 = arith.constant 0 : index
    %373 = vector.load %arg3[%372, %c0_242] : memref<24x128xf32, #tpu.memory_space<vmem>>, vector<1x128xf32>
    %374 = vector.shape_cast %373 : vector<1x128xf32> to vector<128xf32>
    %c31 = arith.constant 31 : index
    %c0_243 = arith.constant 0 : index
    %375 = vector.load %arg10[%c31, %c0_243] : memref<32x128xf32, #tpu.memory_space<vmem>>, vector<1x128xf32>
    %376 = vector.shape_cast %375 : vector<1x128xf32> to vector<128xf32>
    %377 = vector.shape_cast %374 : vector<128xf32> to vector<1x128xf32>
    tpu.vector_store %arg10[%c31, %c0_243], %377 {strides = array<i32>} : memref<32x128xf32, #tpu.memory_space<vmem>>, vector<1x128xf32>,
    %c7_244 = arith.constant 7 : index
    %c0_245 = arith.constant 0 : index
    %378 = memref.load %arg2[%c7_244, %c0_245] : memref<8x2xi32, #tpu.memory_space<smem>>
    %379 = arith.index_cast %378 : i32 to index
    %c0_246 = arith.constant 0 : index
    %380 = vector.load %arg3[%379, %c0_246] : memref<24x128xf32, #tpu.memory_space<vmem>>, vector<1x128xf32>
    %381 = vector.shape_cast %380 : vector<1x128xf32> to vector<128xf32>
    %c7_247 = arith.constant 7 : index
    %c0_248 = arith.constant 0 : index
    %c0_249 = arith.constant 0 : index
    %382 = vector.load %arg11[%c7_247, %c0_248, %c0_249] : memref<8x2x128xf32, #tpu.memory_space<vmem>>, vector<1x1x128xf32>
    %383 = vector.shape_cast %382 : vector<1x1x128xf32> to vector<128xf32>
    %384 = vector.shape_cast %381 : vector<128xf32> to vector<1x1x128xf32>
    tpu.vector_store %arg11[%c7_247, %c0_248, %c0_249], %384 {strides = array<i32>} : memref<8x2x128xf32, #tpu.memory_space<vmem>>, vector<1x1x128xf32>,
    %c7_250 = arith.constant 7 : index
    %c1_251 = arith.constant 1 : index
    %385 = memref.load %arg2[%c7_250, %c1_251] : memref<8x2xi32, #tpu.memory_space<smem>>
    %386 = arith.index_cast %385 : i32 to index
    %c0_252 = arith.constant 0 : index
    %387 = vector.load %arg3[%386, %c0_252] : memref<24x128xf32, #tpu.memory_space<vmem>>, vector<1x128xf32>
    %388 = vector.shape_cast %387 : vector<1x128xf32> to vector<128xf32>
    %c7_253 = arith.constant 7 : index
    %c1_254 = arith.constant 1 : index
    %c0_255 = arith.constant 0 : index
    %389 = vector.load %arg11[%c7_253, %c1_254, %c0_255] : memref<8x2x128xf32, #tpu.memory_space<vmem>>, vector<1x1x128xf32>
    %390 = vector.shape_cast %389 : vector<1x1x128xf32> to vector<128xf32>
    %391 = vector.shape_cast %388 : vector<128xf32> to vector<1x1x128xf32>
    tpu.vector_store %arg11[%c7_253, %c1_254, %c0_255], %391 {strides = array<i32>} : memref<8x2x128xf32, #tpu.memory_space<vmem>>, vector<1x1x128xf32>,
    %c0_256 = arith.constant 0 : index
    %c0_257 = arith.constant 0 : index
    %392 = vector.load %arg5[%c0_256, %c0_257] : memref<128x384xf32, #tpu.memory_space<vmem>>, vector<128x384xf32>
    %c0_258 = arith.constant 0 : index
    %c0_259 = arith.constant 0 : index
    %393 = vector.load %arg6[%c0_258, %c0_259] : memref<128x384xf32, #tpu.memory_space<vmem>>, vector<128x384xf32>
    %c0_260 = arith.constant 0 : index
    %c0_261 = arith.constant 0 : index
    %394 = vector.load %arg7[%c0_260, %c0_261] : memref<1x384xf32, #tpu.memory_space<vmem>>, vector<1x384xf32>
    %c0_262 = arith.constant 0 : index
    %c0_263 = arith.constant 0 : index
    %395 = vector.load %arg8[%c0_262, %c0_263] : memref<1x384xf32, #tpu.memory_space<vmem>>, vector<1x384xf32>
    %c0_264 = arith.constant 0 : index
    %c0_265 = arith.constant 0 : index
    %396 = vector.load %arg10[%c0_264, %c0_265] : memref<32x128xf32, #tpu.memory_space<vmem>>, vector<32x128xf32>
    %cst = arith.constant dense<0.000000e+00> : vector<32x384xf32>
    %397 = tpu.matmul %396, %392, %cst {dimension_numbers = #tpu.dot_dimension_numbers<[1], [0], [0], [1], [0, 0, 1, 1], [], []>} : vector<32x128xf32>, vector<128x384xf32>, vector<32x384xf32> -> vector<32x384xf32>
    %398 = vector.broadcast %394 : vector<1x384xf32> to vector<32x384xf32>
    %399 = arith.addf %397, %398 : vector<32x384xf32>
    %c0_266 = arith.constant 0 : index
    %c0_267 = arith.constant 0 : index
    %400 = vector.load %arg12[%c0_266, %c0_267] : memref<8x128xf32, #tpu.memory_space<vmem>>, vector<8x128xf32>
    %401 = vector.extract_strided_slice %399 {offsets = [0, 0], sizes = [8, 384], strides = [1, 1]} : vector<32x384xf32> to vector<8x384xf32>
    %cst_268 = arith.constant dense<0.000000e+00> : vector<8x384xf32>
    %402 = tpu.matmul %400, %393, %cst_268 {dimension_numbers = #tpu.dot_dimension_numbers<[1], [0], [0], [1], [0, 0, 1, 1], [], []>} : vector<8x128xf32>, vector<128x384xf32>, vector<8x384xf32> -> vector<8x384xf32>
    %403 = vector.broadcast %395 : vector<1x384xf32> to vector<8x384xf32>
    %404 = arith.addf %402, %403 : vector<8x384xf32>
    %405 = vector.extract_strided_slice %401 {offsets = [0, 0], sizes = [8, 128], strides = [1, 1]} : vector<8x384xf32> to vector<8x128xf32>
    %406 = vector.extract_strided_slice %404 {offsets = [0, 0], sizes = [8, 128], strides = [1, 1]} : vector<8x384xf32> to vector<8x128xf32>
    %407 = arith.addf %405, %406 : vector<8x128xf32>
    %408 = arith.negf %407 : vector<8x128xf32>
    %409 = math.exp %408 : vector<8x128xf32>
    %cst_269 = arith.constant 1.000000e+00 : f32
    %410 = vector.broadcast %cst_269 : f32 to vector<8x128xf32>
    %411 = arith.addf %410, %409 : vector<8x128xf32>
    %412 = arith.divf %410, %411 : vector<8x128xf32>
    %413 = vector.extract_strided_slice %401 {offsets = [0, 128], sizes = [8, 128], strides = [1, 1]} : vector<8x384xf32> to vector<8x128xf32>
    %414 = vector.extract_strided_slice %404 {offsets = [0, 128], sizes = [8, 128], strides = [1, 1]} : vector<8x384xf32> to vector<8x128xf32>
    %415 = arith.addf %413, %414 : vector<8x128xf32>
    %416 = arith.negf %415 : vector<8x128xf32>
    %417 = math.exp %416 : vector<8x128xf32>
    %cst_270 = arith.constant 1.000000e+00 : f32
    %418 = vector.broadcast %cst_270 : f32 to vector<8x128xf32>
    %419 = arith.addf %418, %417 : vector<8x128xf32>
    %420 = arith.divf %418, %419 : vector<8x128xf32>
    %421 = vector.extract_strided_slice %401 {offsets = [0, 256], sizes = [8, 128], strides = [1, 1]} : vector<8x384xf32> to vector<8x128xf32>
    %422 = vector.extract_strided_slice %404 {offsets = [0, 256], sizes = [8, 128], strides = [1, 1]} : vector<8x384xf32> to vector<8x128xf32>
    %423 = arith.mulf %412, %422 : vector<8x128xf32>
    %424 = arith.addf %421, %423 : vector<8x128xf32>
    %425 = math.tanh %424 : vector<8x128xf32>
    %cst_271 = arith.constant 1.000000e+00 : f32
    %426 = vector.broadcast %cst_271 : f32 to vector<8x128xf32>
    %427 = arith.subf %426, %420 : vector<8x128xf32>
    %428 = arith.mulf %427, %425 : vector<8x128xf32>
    %429 = arith.mulf %420, %400 : vector<8x128xf32>
    %430 = arith.addf %428, %429 : vector<8x128xf32>
    %431 = vector.extract_strided_slice %399 {offsets = [8, 0], sizes = [8, 384], strides = [1, 1]} : vector<32x384xf32> to vector<8x384xf32>
    %cst_272 = arith.constant dense<0.000000e+00> : vector<8x384xf32>
    %432 = tpu.matmul %430, %393, %cst_272 {dimension_numbers = #tpu.dot_dimension_numbers<[1], [0], [0], [1], [0, 0, 1, 1], [], []>} : vector<8x128xf32>, vector<128x384xf32>, vector<8x384xf32> -> vector<8x384xf32>
    %433 = vector.broadcast %395 : vector<1x384xf32> to vector<8x384xf32>
    %434 = arith.addf %432, %433 : vector<8x384xf32>
    %435 = vector.extract_strided_slice %431 {offsets = [0, 0], sizes = [8, 128], strides = [1, 1]} : vector<8x384xf32> to vector<8x128xf32>
    %436 = vector.extract_strided_slice %434 {offsets = [0, 0], sizes = [8, 128], strides = [1, 1]} : vector<8x384xf32> to vector<8x128xf32>
    %437 = arith.addf %435, %436 : vector<8x128xf32>
    %438 = arith.negf %437 : vector<8x128xf32>
    %439 = math.exp %438 : vector<8x128xf32>
    %cst_273 = arith.constant 1.000000e+00 : f32
    %440 = vector.broadcast %cst_273 : f32 to vector<8x128xf32>
    %441 = arith.addf %440, %439 : vector<8x128xf32>
    %442 = arith.divf %440, %441 : vector<8x128xf32>
    %443 = vector.extract_strided_slice %431 {offsets = [0, 128], sizes = [8, 128], strides = [1, 1]} : vector<8x384xf32> to vector<8x128xf32>
    %444 = vector.extract_strided_slice %434 {offsets = [0, 128], sizes = [8, 128], strides = [1, 1]} : vector<8x384xf32> to vector<8x128xf32>
    %445 = arith.addf %443, %444 : vector<8x128xf32>
    %446 = arith.negf %445 : vector<8x128xf32>
    %447 = math.exp %446 : vector<8x128xf32>
    %cst_274 = arith.constant 1.000000e+00 : f32
    %448 = vector.broadcast %cst_274 : f32 to vector<8x128xf32>
    %449 = arith.addf %448, %447 : vector<8x128xf32>
    %450 = arith.divf %448, %449 : vector<8x128xf32>
    %451 = vector.extract_strided_slice %431 {offsets = [0, 256], sizes = [8, 128], strides = [1, 1]} : vector<8x384xf32> to vector<8x128xf32>
    %452 = vector.extract_strided_slice %434 {offsets = [0, 256], sizes = [8, 128], strides = [1, 1]} : vector<8x384xf32> to vector<8x128xf32>
    %453 = arith.mulf %442, %452 : vector<8x128xf32>
    %454 = arith.addf %451, %453 : vector<8x128xf32>
    %455 = math.tanh %454 : vector<8x128xf32>
    %cst_275 = arith.constant 1.000000e+00 : f32
    %456 = vector.broadcast %cst_275 : f32 to vector<8x128xf32>
    %457 = arith.subf %456, %450 : vector<8x128xf32>
    %458 = arith.mulf %457, %455 : vector<8x128xf32>
    %459 = arith.mulf %450, %430 : vector<8x128xf32>
    %460 = arith.addf %458, %459 : vector<8x128xf32>
    %461 = vector.extract_strided_slice %399 {offsets = [16, 0], sizes = [8, 384], strides = [1, 1]} : vector<32x384xf32> to vector<8x384xf32>
    %cst_276 = arith.constant dense<0.000000e+00> : vector<8x384xf32>
    %462 = tpu.matmul %460, %393, %cst_276 {dimension_numbers = #tpu.dot_dimension_numbers<[1], [0], [0], [1], [0, 0, 1, 1], [], []>} : vector<8x128xf32>, vector<128x384xf32>, vector<8x384xf32> -> vector<8x384xf32>
    %463 = vector.broadcast %395 : vector<1x384xf32> to vector<8x384xf32>
    %464 = arith.addf %462, %463 : vector<8x384xf32>
    %465 = vector.extract_strided_slice %461 {offsets = [0, 0], sizes = [8, 128], strides = [1, 1]} : vector<8x384xf32> to vector<8x128xf32>
    %466 = vector.extract_strided_slice %464 {offsets = [0, 0], sizes = [8, 128], strides = [1, 1]} : vector<8x384xf32> to vector<8x128xf32>
    %467 = arith.addf %465, %466 : vector<8x128xf32>
    %468 = arith.negf %467 : vector<8x128xf32>
    %469 = math.exp %468 : vector<8x128xf32>
    %cst_277 = arith.constant 1.000000e+00 : f32
    %470 = vector.broadcast %cst_277 : f32 to vector<8x128xf32>
    %471 = arith.addf %470, %469 : vector<8x128xf32>
    %472 = arith.divf %470, %471 : vector<8x128xf32>
    %473 = vector.extract_strided_slice %461 {offsets = [0, 128], sizes = [8, 128], strides = [1, 1]} : vector<8x384xf32> to vector<8x128xf32>
    %474 = vector.extract_strided_slice %464 {offsets = [0, 128], sizes = [8, 128], strides = [1, 1]} : vector<8x384xf32> to vector<8x128xf32>
    %475 = arith.addf %473, %474 : vector<8x128xf32>
    %476 = arith.negf %475 : vector<8x128xf32>
    %477 = math.exp %476 : vector<8x128xf32>
    %cst_278 = arith.constant 1.000000e+00 : f32
    %478 = vector.broadcast %cst_278 : f32 to vector<8x128xf32>
    %479 = arith.addf %478, %477 : vector<8x128xf32>
    %480 = arith.divf %478, %479 : vector<8x128xf32>
    %481 = vector.extract_strided_slice %461 {offsets = [0, 256], sizes = [8, 128], strides = [1, 1]} : vector<8x384xf32> to vector<8x128xf32>
    %482 = vector.extract_strided_slice %464 {offsets = [0, 256], sizes = [8, 128], strides = [1, 1]} : vector<8x384xf32> to vector<8x128xf32>
    %483 = arith.mulf %472, %482 : vector<8x128xf32>
    %484 = arith.addf %481, %483 : vector<8x128xf32>
    %485 = math.tanh %484 : vector<8x128xf32>
    %cst_279 = arith.constant 1.000000e+00 : f32
    %486 = vector.broadcast %cst_279 : f32 to vector<8x128xf32>
    %487 = arith.subf %486, %480 : vector<8x128xf32>
    %488 = arith.mulf %487, %485 : vector<8x128xf32>
    %489 = arith.mulf %480, %460 : vector<8x128xf32>
    %490 = arith.addf %488, %489 : vector<8x128xf32>
    %491 = vector.extract_strided_slice %399 {offsets = [24, 0], sizes = [8, 384], strides = [1, 1]} : vector<32x384xf32> to vector<8x384xf32>
    %cst_280 = arith.constant dense<0.000000e+00> : vector<8x384xf32>
    %492 = tpu.matmul %490, %393, %cst_280 {dimension_numbers = #tpu.dot_dimension_numbers<[1], [0], [0], [1], [0, 0, 1, 1], [], []>} : vector<8x128xf32>, vector<128x384xf32>, vector<8x384xf32> -> vector<8x384xf32>
    %493 = vector.broadcast %395 : vector<1x384xf32> to vector<8x384xf32>
    %494 = arith.addf %492, %493 : vector<8x384xf32>
    %495 = vector.extract_strided_slice %491 {offsets = [0, 0], sizes = [8, 128], strides = [1, 1]} : vector<8x384xf32> to vector<8x128xf32>
    %496 = vector.extract_strided_slice %494 {offsets = [0, 0], sizes = [8, 128], strides = [1, 1]} : vector<8x384xf32> to vector<8x128xf32>
    %497 = arith.addf %495, %496 : vector<8x128xf32>
    %498 = arith.negf %497 : vector<8x128xf32>
    %499 = math.exp %498 : vector<8x128xf32>
    %cst_281 = arith.constant 1.000000e+00 : f32
    %500 = vector.broadcast %cst_281 : f32 to vector<8x128xf32>
    %501 = arith.addf %500, %499 : vector<8x128xf32>
    %502 = arith.divf %500, %501 : vector<8x128xf32>
    %503 = vector.extract_strided_slice %491 {offsets = [0, 128], sizes = [8, 128], strides = [1, 1]} : vector<8x384xf32> to vector<8x128xf32>
    %504 = vector.extract_strided_slice %494 {offsets = [0, 128], sizes = [8, 128], strides = [1, 1]} : vector<8x384xf32> to vector<8x128xf32>
    %505 = arith.addf %503, %504 : vector<8x128xf32>
    %506 = arith.negf %505 : vector<8x128xf32>
    %507 = math.exp %506 : vector<8x128xf32>
    %cst_282 = arith.constant 1.000000e+00 : f32
    %508 = vector.broadcast %cst_282 : f32 to vector<8x128xf32>
    %509 = arith.addf %508, %507 : vector<8x128xf32>
    %510 = arith.divf %508, %509 : vector<8x128xf32>
    %511 = vector.extract_strided_slice %491 {offsets = [0, 256], sizes = [8, 128], strides = [1, 1]} : vector<8x384xf32> to vector<8x128xf32>
    %512 = vector.extract_strided_slice %494 {offsets = [0, 256], sizes = [8, 128], strides = [1, 1]} : vector<8x384xf32> to vector<8x128xf32>
    %513 = arith.mulf %502, %512 : vector<8x128xf32>
    %514 = arith.addf %511, %513 : vector<8x128xf32>
    %515 = math.tanh %514 : vector<8x128xf32>
    %cst_283 = arith.constant 1.000000e+00 : f32
    %516 = vector.broadcast %cst_283 : f32 to vector<8x128xf32>
    %517 = arith.subf %516, %510 : vector<8x128xf32>
    %518 = arith.mulf %517, %515 : vector<8x128xf32>
    %519 = arith.mulf %510, %490 : vector<8x128xf32>
    %520 = arith.addf %518, %519 : vector<8x128xf32>
    %c0_284 = arith.constant 0 : index
    %c0_285 = arith.constant 0 : index
    %c0_286 = arith.constant 0 : index
    %521 = vector.load %arg11[%c0_284, %c0_285, %c0_286] : memref<8x2x128xf32, #tpu.memory_space<vmem>>, vector<8x2x128xf32>
    %522 = vector.shape_cast %520 : vector<8x128xf32> to vector<8x1x128xf32>
    %523 = vector.broadcast %522 : vector<8x1x128xf32> to vector<8x2x128xf32>
    %524 = arith.mulf %521, %523 : vector<8x2x128xf32>
    %cst_287 = arith.constant dense<0.000000e+00> : vector<8x2xf32>
    %525 = vector.multi_reduction <add>, %524, %cst_287 [2] : vector<8x2x128xf32> to vector<8x2xf32>
    %c0_288 = arith.constant 0 : index
    %c0_289 = arith.constant 0 : index
    %526 = vector.load %arg9[%c0_288, %c0_289] : memref<8x2xf32, #tpu.memory_space<vmem>>, vector<8x2xf32>
    tpu.vector_store %arg9[%c0_288, %c0_289], %525 {strides = array<i32>} : memref<8x2xf32, #tpu.memory_space<vmem>>, vector<8x2xf32>,
    return
  }
}

</mosaic_0001>

<llo_original>
// kernel: lstur_forward.2
$region0: #{lstur_forward.2}
  #allocation0 [shape = 'u32[]', space=smem, size = 0x4, offset = 0x4, fixed_abs, tag = 'smem constant byte address 0x4 - core index']
  #allocation1 [shape = 'u32[144,128]{1,0:T(1,128)}', space=vmem, size = 0x12000, scoped, tag = 'internal scratch']
  %s0 = inlined_call_operand.vmem [shape: f32[384,128], index: 0, kind: input, shape index: {}]
  %s1 = inlined_call_operand.vmem [shape: f32[24,32], index: 1, kind: input, shape index: {}]
  %s2 = inlined_call_operand.vmem [shape: f32[24,384], index: 2, kind: input, shape index: {}]
  %s3 = inlined_call_operand.vmem [shape: f32[128,128], index: 3, kind: input, shape index: {}]
  %s4 = inlined_call_operand.vmem [shape: f32[1,128], index: 4, kind: input, shape index: {}]
  %s5 = inlined_call_operand.vmem [shape: f32[128,32], index: 5, kind: input, shape index: {}]
  %s6 = inlined_call_operand.vmem [shape: f32[1,32], index: 6, kind: input, shape index: {}]
  %s7 = inlined_call_operand.vmem [shape: f32[32,1], index: 7, kind: input, shape index: {}]
  %s8 = inlined_call_operand.vmem [shape: f32[32,128], index: 8, kind: input, shape index: {}]
  %s9 = inlined_call_operand.vmem [shape: f32[1,128], index: 9, kind: input, shape index: {}]
  %s10 = inlined_call_operand.vmem [shape: f32[24,128], index: 10, kind: output, shape index: {}]
  %s11 = sld [smem:[#allocation0]]
  $region50: #{lstur_forward.2} parent=0
    _
  %s13 = ssub.s32 1, %s11
  %s14 = scalar_select 0, %s13, %s11
  // Predicated region
  $region2: #{lstur_forward.2} parent=0 // pred_check
    _
  $region3: #{lstur_forward.2} parent=0 // pred_check_branch
    %16 = sbr.rel (0) target = $region5
  $region4: #{lstur_forward.2} parent=0 // pred_region
    _
  $region5: #{lstur_forward.2} parent=0 // pred_fallthru
    _
  // Predicated region
  $region6: #{lstur_forward.2} parent=0 // pred_check
    _
  $region7: #{lstur_forward.2} parent=0 // pred_check_branch
    %18 = sbr.rel (0) target = $region9
  $region8: #{lstur_forward.2} parent=0 // pred_region
    _
  $region9: #{lstur_forward.2} parent=0 // pred_fallthru
    _
  // Predicated region
  $region10: #{lstur_forward.2} parent=0 // pred_check
    _
  $region11: #{lstur_forward.2} parent=0 // pred_check_branch
    %20 = sbr.rel (0) target = $region13
  $region12: #{lstur_forward.2} parent=0 // pred_region
    _
  $region13: #{lstur_forward.2} parent=0 // pred_fallthru
    _
  // Predicated region
  $region14: #{lstur_forward.2} parent=0 // pred_check
    _
  $region15: #{lstur_forward.2} parent=0 // pred_check_branch
    %22 = sbr.rel (0) target = $region17
  $region16: #{lstur_forward.2} parent=0 // pred_region
    _
  $region17: #{lstur_forward.2} parent=0 // pred_fallthru
    _
  // Predicated region
  $region18: #{lstur_forward.2} parent=0 // pred_check
    _
  $region19: #{lstur_forward.2} parent=0 // pred_check_branch
    %24 = sbr.rel (0) target = $region21
  $region20: #{lstur_forward.2} parent=0 // pred_region
    _
  $region21: #{lstur_forward.2} parent=0 // pred_fallthru
    _
  // Predicated region
  $region22: #{lstur_forward.2} parent=0 // pred_check
    _
  $region23: #{lstur_forward.2} parent=0 // pred_check_branch
    %26 = sbr.rel (0) target = $region25
  $region24: #{lstur_forward.2} parent=0 // pred_region
    _
  $region25: #{lstur_forward.2} parent=0 // pred_fallthru
    _
  // Predicated region
  $region26: #{lstur_forward.2} parent=0 // pred_check
    _
  $region27: #{lstur_forward.2} parent=0 // pred_check_branch
    %28 = sbr.rel (0) target = $region29
  $region28: #{lstur_forward.2} parent=0 // pred_region
    _
  $region29: #{lstur_forward.2} parent=0 // pred_fallthru
    _
  // Predicated region
  $region30: #{lstur_forward.2} parent=0 // pred_check
    _
  $region31: #{lstur_forward.2} parent=0 // pred_check_branch
    %30 = sbr.rel (0) target = $region33
  $region32: #{lstur_forward.2} parent=0 // pred_region
    _
  $region33: #{lstur_forward.2} parent=0 // pred_fallthru
    _
  // Predicated region
  $region34: #{lstur_forward.2} parent=0 // pred_check
    _
  $region35: #{lstur_forward.2} parent=0 // pred_check_branch
    %32 = sbr.rel (0) target = $region37
  $region36: #{lstur_forward.2} parent=0 // pred_region
    _
  $region37: #{lstur_forward.2} parent=0 // pred_fallthru
    _
  // Predicated region
  $region38: #{lstur_forward.2} parent=0 // pred_check
    _
  $region39: #{lstur_forward.2} parent=0 // pred_check_branch
    %34 = sbr.rel (0) target = $region41
  $region40: #{lstur_forward.2} parent=0 // pred_region
    _
  $region41: #{lstur_forward.2} parent=0 // pred_fallthru
    _
  %v35 = vld [vmem:[%s0] sm:$0xff]
  %v36 = vld [vmem:[%s0 + $0x8] sm:$0xff]
  %v37 = vld [vmem:[%s0 + $0x10] sm:$0xff]
  %v38 = vld [vmem:[%s0 + $0x18] sm:$0xff]
  %v39 = vld [vmem:[%s0 + $0x20] sm:$0xff]
  %v40 = vld [vmem:[%s0 + $0x28] sm:$0xff]
  %v41 = vld [vmem:[%s0 + $0x30] sm:$0xff]
  %v42 = vld [vmem:[%s0 + $0x38] sm:$0xff]
  %v43 = vld [vmem:[%s0 + $0x40] sm:$0xff]
  %v44 = vld [vmem:[%s0 + $0x48] sm:$0xff]
  %v45 = vld [vmem:[%s0 + $0x50] sm:$0xff]
  %v46 = vld [vmem:[%s0 + $0x58] sm:$0xff]
  %v47 = vld [vmem:[%s0 + $0x60] sm:$0xff]
  %v48 = vld [vmem:[%s0 + $0x68] sm:$0xff]
  %v49 = vld [vmem:[%s0 + $0x70] sm:$0xff]
  %v50 = vld [vmem:[%s0 + $0x78] sm:$0xff]
  %v51 = vld [vmem:[%s0 + $0x80] sm:$0xff]
  %v52 = vld [vmem:[%s0 + $0x88] sm:$0xff]
  %v53 = vld [vmem:[%s0 + $0x90] sm:$0xff]
  %v54 = vld [vmem:[%s0 + $0x98] sm:$0xff]
  %v55 = vld [vmem:[%s0 + $0xa0] sm:$0xff]
  %v56 = vld [vmem:[%s0 + $0xa8] sm:$0xff]
  %v57 = vld [vmem:[%s0 + $0xb0] sm:$0xff]
  %v58 = vld [vmem:[%s0 + $0xb8] sm:$0xff]
  %v59 = vld [vmem:[%s0 + $0xc0] sm:$0xff]
  %v60 = vld [vmem:[%s0 + $0xc8] sm:$0xff]
  %v61 = vld [vmem:[%s0 + $0xd0] sm:$0xff]
  %v62 = vld [vmem:[%s0 + $0xd8] sm:$0xff]
  %v63 = vld [vmem:[%s0 + $0xe0] sm:$0xff]
  %v64 = vld [vmem:[%s0 + $0xe8] sm:$0xff]
  %v65 = vld [vmem:[%s0 + $0xf0] sm:$0xff]
  %v66 = vld [vmem:[%s0 + $0xf8] sm:$0xff]
  %v67 = vld [vmem:[%s0 + $0x100] sm:$0xff]
  %v68 = vld [vmem:[%s0 + $0x108] sm:$0xff]
  %v69 = vld [vmem:[%s0 + $0x110] sm:$0xff]
  %v70 = vld [vmem:[%s0 + $0x118] sm:$0xff]
  %v71 = vld [vmem:[%s0 + $0x120] sm:$0xff]
  %v72 = vld [vmem:[%s0 + $0x128] sm:$0xff]
  %v73 = vld [vmem:[%s0 + $0x130] sm:$0xff]
  %v74 = vld [vmem:[%s0 + $0x138] sm:$0xff]
  %v75 = vld [vmem:[%s0 + $0x140] sm:$0xff]
  %v76 = vld [vmem:[%s0 + $0x148] sm:$0xff]
  %v77 = vld [vmem:[%s0 + $0x150] sm:$0xff]
  %v78 = vld [vmem:[%s0 + $0x158] sm:$0xff]
  %v79 = vld [vmem:[%s0 + $0x160] sm:$0xff]
  %v80 = vld [vmem:[%s0 + $0x168] sm:$0xff]
  %v81 = vld [vmem:[%s0 + $0x170] sm:$0xff]
  %v82 = vld [vmem:[%s0 + $0x178] sm:$0xff]
  %v83 = vld [vmem:[%s3] sm:$0xff]
  %v84 = vld [vmem:[%s3 + $0x8] sm:$0xff]
  %v85 = vld [vmem:[%s3 + $0x10] sm:$0xff]
  %v86 = vld [vmem:[%s3 + $0x18] sm:$0xff]
  %v87 = vld [vmem:[%s3 + $0x20] sm:$0xff]
  %v88 = vld [vmem:[%s3 + $0x28] sm:$0xff]
  %v89 = vld [vmem:[%s3 + $0x30] sm:$0xff]
  %v90 = vld [vmem:[%s3 + $0x38] sm:$0xff]
  %v91 = vld [vmem:[%s3 + $0x40] sm:$0xff]
  %v92 = vld [vmem:[%s3 + $0x48] sm:$0xff]
  %v93 = vld [vmem:[%s3 + $0x50] sm:$0xff]
  %v94 = vld [vmem:[%s3 + $0x58] sm:$0xff]
  %v95 = vld [vmem:[%s3 + $0x60] sm:$0xff]
  %v96 = vld [vmem:[%s3 + $0x68] sm:$0xff]
  %v97 = vld [vmem:[%s3 + $0x70] sm:$0xff]
  %v98 = vld [vmem:[%s3 + $0x78] sm:$0xff]
  %v99 = vld [vmem:[%s4] sm:$0x1]
  %v101 = vlaneseq
  %v102 = vshrl.u32 %v101, 7
  %v103 = vsub.s32 0, %v102
  %v104 = vrot.slane %v99, %v103
  %106 = vmatprep.subr.mxu0 0.0
  %107 = vmatpush1.msra.mxu0 %v83
  %108 = vmatprep.subr.mxu0 0.0
  %109 = vmatpush1.msra.mxu0 %v84
  %110 = vmatprep.subr.mxu0 0.0
  %111 = vmatpush1.msra.mxu0 %v85
  %112 = vmatprep.subr.mxu0 0.0
  %113 = vmatpush1.msra.mxu0 %v86
  %114 = vmatprep.subr.mxu0 0.0
  %115 = vmatpush1.msra.mxu0 %v87
  %116 = vmatprep.subr.mxu0 0.0
  %117 = vmatpush1.msra.mxu0 %v88
  %118 = vmatprep.subr.mxu0 0.0
  %119 = vmatpush1.msra.mxu0 %v89
  %120 = vmatprep.subr.mxu0 0.0
  %121 = vmatpush1.msra.mxu0 %v90
  %122 = vmatprep.subr.mxu0 0.0
  %123 = vmatpush1.msra.mxu0 %v91
  %124 = vmatprep.subr.mxu0 0.0
  %125 = vmatpush1.msra.mxu0 %v92
  %126 = vmatprep.subr.mxu0 0.0
  %127 = vmatpush1.msra.mxu0 %v93
  %128 = vmatprep.subr.mxu0 0.0
  %129 = vmatpush1.msra.mxu0 %v94
  %130 = vmatprep.subr.mxu0 0.0
  %131 = vmatpush1.msra.mxu0 %v95
  %132 = vmatprep.subr.mxu0 0.0
  %133 = vmatpush1.msra.mxu0 %v96
  %134 = vmatprep.subr.mxu0 0.0
  %135 = vmatpush1.msra.mxu0 %v97
  %136 = vmatprep.subr.mxu0 0.0
  %137 = vmatpush1.msra.mxu0 %v98
  %138 = vmatprep.subr.mxu0 0.0
  %139 = vmatpush1.msra.mxu0 0.0
  %140 = vmatprep.subr.mxu0 0.0
  %141 = vmatpush1.msra.mxu0 0.0
  %142 = vmatprep.subr.mxu0 0.0
  %143 = vmatpush1.msra.mxu0 0.0
  %144 = vmatprep.subr.mxu0 0.0
  %145 = vmatpush1.msra.mxu0 0.0
  %146 = vmatprep.subr.mxu0 0.0
  %147 = vmatpush1.msra.mxu0 0.0
  %148 = vmatprep.subr.mxu0 0.0
  %149 = vmatpush1.msra.mxu0 0.0
  %150 = vmatprep.subr.mxu0 0.0
  %151 = vmatpush1.msra.mxu0 0.0
  %152 = vmatprep.subr.mxu0 0.0
  %153 = vmatpush1.msra.mxu0 0.0
  %154 = vmatprep.subr.mxu0 0.0
  %155 = vmatpush1.msra.mxu0 0.0
  %156 = vmatprep.subr.mxu0 0.0
  %157 = vmatpush1.msra.mxu0 0.0
  %158 = vmatprep.subr.mxu0 0.0
  %159 = vmatpush1.msra.mxu0 0.0
  %160 = vmatprep.subr.mxu0 0.0
  %161 = vmatpush1.msra.mxu0 0.0
  %162 = vmatprep.subr.mxu0 0.0
  %163 = vmatpush1.msra.mxu0 0.0
  %164 = vmatprep.subr.mxu0 0.0
  %165 = vmatpush1.msra.mxu0 0.0
  %166 = vmatprep.subr.mxu0 0.0
  %167 = vmatpush1.msra.mxu0 0.0
  %168 = vmatprep.subr.mxu0 0.0
  %169 = vmatpush1.msra.mxu0 0.0
  %170 = vmatprep.mubr.f32.mxu0 0.0
  %171 = vmatmul.mubr.f32.gmra.mrb[0].mxu0 %v35
  %v172 = vpop.f32.mrb[0].mxu0
  %v173 = vadd.f32 %v104, %v172
  %v174 = vpop.f32.mrb[0].mxu0
  %175 = vmatprep.mubr.f32.mxu0 0.0
  %176 = vmatmul.mubr.f32.gmra.mrb[0].mxu0 %v36
  %v177 = vpop.f32.mrb[0].mxu0
  %v178 = vadd.f32 %v104, %v177
  %v179 = vpop.f32.mrb[0].mxu0
  %180 = vmatprep.mubr.f32.mxu0 0.0
  %181 = vmatmul.mubr.f32.gmra.mrb[0].mxu0 %v37
  %v182 = vpop.f32.mrb[0].mxu0
  %v183 = vadd.f32 %v104, %v182
  %v184 = vpop.f32.mrb[0].mxu0
  %185 = vmatprep.mubr.f32.mxu0 0.0
  %186 = vmatmul.mubr.f32.gmra.mrb[0].mxu0 %v38
  %v187 = vpop.f32.mrb[0].mxu0
  %v188 = vadd.f32 %v104, %v187
  %v189 = vpop.f32.mrb[0].mxu0
  %190 = vmatprep.mubr.f32.mxu0 0.0
  %191 = vmatmul.mubr.f32.gmra.mrb[0].mxu0 %v39
  %v192 = vpop.f32.mrb[0].mxu0
  %v193 = vadd.f32 %v104, %v192
  %v194 = vpop.f32.mrb[0].mxu0
  %195 = vmatprep.mubr.f32.mxu0 0.0
  %196 = vmatmul.mubr.f32.gmra.mrb[0].mxu0 %v40
  %v197 = vpop.f32.mrb[0].mxu0
  %v198 = vadd.f32 %v104, %v197
  %v199 = vpop.f32.mrb[0].mxu0
  %200 = vmatprep.mubr.f32.mxu0 0.0
  %201 = vmatmul.mubr.f32.gmra.mrb[0].mxu0 %v41
  %v202 = vpop.f32.mrb[0].mxu0
  %v203 = vadd.f32 %v104, %v202
  %v204 = vpop.f32.mrb[0].mxu0
  %205 = vmatprep.mubr.f32.mxu0 0.0
  %206 = vmatmul.mubr.f32.gmra.mrb[0].mxu0 %v42
  %v207 = vpop.f32.mrb[0].mxu0
  %v208 = vadd.f32 %v104, %v207
  %v209 = vpop.f32.mrb[0].mxu0
  %210 = vmatprep.mubr.f32.mxu0 0.0
  %211 = vmatmul.mubr.f32.gmra.mrb[0].mxu0 %v43
  %v212 = vpop.f32.mrb[0].mxu0
  %v213 = vadd.f32 %v104, %v212
  %v214 = vpop.f32.mrb[0].mxu0
  %215 = vmatprep.mubr.f32.mxu0 0.0
  %216 = vmatmul.mubr.f32.gmra.mrb[0].mxu0 %v44
  %v217 = vpop.f32.mrb[0].mxu0
  %v218 = vadd.f32 %v104, %v217
  %v219 = vpop.f32.mrb[0].mxu0
  %220 = vmatprep.mubr.f32.mxu0 0.0
  %221 = vmatmul.mubr.f32.gmra.mrb[0].mxu0 %v45
  %v222 = vpop.f32.mrb[0].mxu0
  %v223 = vadd.f32 %v104, %v222
  %v224 = vpop.f32.mrb[0].mxu0
  %225 = vmatprep.mubr.f32.mxu0 0.0
  %226 = vmatmul.mubr.f32.gmra.mrb[0].mxu0 %v46
  %v227 = vpop.f32.mrb[0].mxu0
  %v228 = vadd.f32 %v104, %v227
  %v229 = vpop.f32.mrb[0].mxu0
  %230 = vmatprep.mubr.f32.mxu0 0.0
  %231 = vmatmul.mubr.f32.gmra.mrb[0].mxu0 %v47
  %v232 = vpop.f32.mrb[0].mxu0
  %v233 = vadd.f32 %v104, %v232
  %v234 = vpop.f32.mrb[0].mxu0
  %235 = vmatprep.mubr.f32.mxu0 0.0
  %236 = vmatmul.mubr.f32.gmra.mrb[0].mxu0 %v48
  %v237 = vpop.f32.mrb[0].mxu0
  %v238 = vadd.f32 %v104, %v237
  %v239 = vpop.f32.mrb[0].mxu0
  %240 = vmatprep.mubr.f32.mxu0 0.0
  %241 = vmatmul.mubr.f32.gmra.mrb[0].mxu0 %v49
  %v242 = vpop.f32.mrb[0].mxu0
  %v243 = vadd.f32 %v104, %v242
  %v244 = vpop.f32.mrb[0].mxu0
  %245 = vmatprep.mubr.f32.mxu0 0.0
  %246 = vmatmul.mubr.f32.gmra.mrb[0].mxu0 %v50
  %v247 = vpop.f32.mrb[0].mxu0
  %v248 = vadd.f32 %v104, %v247
  %v249 = vpop.f32.mrb[0].mxu0
  %250 = vmatprep.mubr.f32.mxu0 0.0
  %251 = vmatmul.mubr.f32.gmra.mrb[0].mxu0 %v51
  %v252 = vpop.f32.mrb[0].mxu0
  %v253 = vadd.f32 %v104, %v252
  %v254 = vpop.f32.mrb[0].mxu0
  %255 = vmatprep.mubr.f32.mxu0 0.0
  %256 = vmatmul.mubr.f32.gmra.mrb[0].mxu0 %v52
  %v257 = vpop.f32.mrb[0].mxu0
  %v258 = vadd.f32 %v104, %v257
  %v259 = vpop.f32.mrb[0].mxu0
  %260 = vmatprep.mubr.f32.mxu0 0.0
  %261 = vmatmul.mubr.f32.gmra.mrb[0].mxu0 %v53
  %v262 = vpop.f32.mrb[0].mxu0
  %v263 = vadd.f32 %v104, %v262
  %v264 = vpop.f32.mrb[0].mxu0
  %265 = vmatprep.mubr.f32.mxu0 0.0
  %266 = vmatmul.mubr.f32.gmra.mrb[0].mxu0 %v54
  %v267 = vpop.f32.mrb[0].mxu0
  %v268 = vadd.f32 %v104, %v267
  %v269 = vpop.f32.mrb[0].mxu0
  %270 = vmatprep.mubr.f32.mxu0 0.0
  %271 = vmatmul.mubr.f32.gmra.mrb[0].mxu0 %v55
  %v272 = vpop.f32.mrb[0].mxu0
  %v273 = vadd.f32 %v104, %v272
  %v274 = vpop.f32.mrb[0].mxu0
  %275 = vmatprep.mubr.f32.mxu0 0.0
  %276 = vmatmul.mubr.f32.gmra.mrb[0].mxu0 %v56
  %v277 = vpop.f32.mrb[0].mxu0
  %v278 = vadd.f32 %v104, %v277
  %v279 = vpop.f32.mrb[0].mxu0
  %280 = vmatprep.mubr.f32.mxu0 0.0
  %281 = vmatmul.mubr.f32.gmra.mrb[0].mxu0 %v57
  %v282 = vpop.f32.mrb[0].mxu0
  %v283 = vadd.f32 %v104, %v282
  %v284 = vpop.f32.mrb[0].mxu0
  %285 = vmatprep.mubr.f32.mxu0 0.0
  %286 = vmatmul.mubr.f32.gmra.mrb[0].mxu0 %v58
  %v287 = vpop.f32.mrb[0].mxu0
  %v288 = vadd.f32 %v104, %v287
  %v289 = vpop.f32.mrb[0].mxu0
  %290 = vmatprep.mubr.f32.mxu0 0.0
  %291 = vmatmul.mubr.f32.gmra.mrb[0].mxu0 %v59
  %v292 = vpop.f32.mrb[0].mxu0
  %v293 = vadd.f32 %v104, %v292
  %v294 = vpop.f32.mrb[0].mxu0
  %295 = vmatprep.mubr.f32.mxu0 0.0
  %296 = vmatmul.mubr.f32.gmra.mrb[0].mxu0 %v60
  %v297 = vpop.f32.mrb[0].mxu0
  %v298 = vadd.f32 %v104, %v297
  %v299 = vpop.f32.mrb[0].mxu0
  %300 = vmatprep.mubr.f32.mxu0 0.0
  %301 = vmatmul.mubr.f32.gmra.mrb[0].mxu0 %v61
  %v302 = vpop.f32.mrb[0].mxu0
  %v303 = vadd.f32 %v104, %v302
  %v304 = vpop.f32.mrb[0].mxu0
  %305 = vmatprep.mubr.f32.mxu0 0.0
  %306 = vmatmul.mubr.f32.gmra.mrb[0].mxu0 %v62
  %v307 = vpop.f32.mrb[0].mxu0
  %v308 = vadd.f32 %v104, %v307
  %v309 = vpop.f32.mrb[0].mxu0
  %310 = vmatprep.mubr.f32.mxu0 0.0
  %311 = vmatmul.mubr.f32.gmra.mrb[0].mxu0 %v63
  %v312 = vpop.f32.mrb[0].mxu0
  %v313 = vadd.f32 %v104, %v312
  %v314 = vpop.f32.mrb[0].mxu0
  %315 = vmatprep.mubr.f32.mxu0 0.0
  %316 = vmatmul.mubr.f32.gmra.mrb[0].mxu0 %v64
  %v317 = vpop.f32.mrb[0].mxu0
  %v318 = vadd.f32 %v104, %v317
  %v319 = vpop.f32.mrb[0].mxu0
  %320 = vmatprep.mubr.f32.mxu0 0.0
  %321 = vmatmul.mubr.f32.gmra.mrb[0].mxu0 %v65
  %v322 = vpop.f32.mrb[0].mxu0
  %v323 = vadd.f32 %v104, %v322
  %v324 = vpop.f32.mrb[0].mxu0
  %325 = vmatprep.mubr.f32.mxu0 0.0
  %326 = vmatmul.mubr.f32.gmra.mrb[0].mxu0 %v66
  %v327 = vpop.f32.mrb[0].mxu0
  %v328 = vadd.f32 %v104, %v327
  %v329 = vpop.f32.mrb[0].mxu0
  %330 = vmatprep.mubr.f32.mxu0 0.0
  %331 = vmatmul.mubr.f32.gmra.mrb[0].mxu0 %v67
  %v332 = vpop.f32.mrb[0].mxu0
  %v333 = vadd.f32 %v104, %v332
  %v334 = vpop.f32.mrb[0].mxu0
  %335 = vmatprep.mubr.f32.mxu0 0.0
  %336 = vmatmul.mubr.f32.gmra.mrb[0].mxu0 %v68
  %v337 = vpop.f32.mrb[0].mxu0
  %v338 = vadd.f32 %v104, %v337
  %v339 = vpop.f32.mrb[0].mxu0
  %340 = vmatprep.mubr.f32.mxu0 0.0
  %341 = vmatmul.mubr.f32.gmra.mrb[0].mxu0 %v69
  %v342 = vpop.f32.mrb[0].mxu0
  %v343 = vadd.f32 %v104, %v342
  %v344 = vpop.f32.mrb[0].mxu0
  %345 = vmatprep.mubr.f32.mxu0 0.0
  %346 = vmatmul.mubr.f32.gmra.mrb[0].mxu0 %v70
  %v347 = vpop.f32.mrb[0].mxu0
  %v348 = vadd.f32 %v104, %v347
  %v349 = vpop.f32.mrb[0].mxu0
  %350 = vmatprep.mubr.f32.mxu0 0.0
  %351 = vmatmul.mubr.f32.gmra.mrb[0].mxu0 %v71
  %v352 = vpop.f32.mrb[0].mxu0
  %v353 = vadd.f32 %v104, %v352
  %v354 = vpop.f32.mrb[0].mxu0
  %355 = vmatprep.mubr.f32.mxu0 0.0
  %356 = vmatmul.mubr.f32.gmra.mrb[0].mxu0 %v72
  %v357 = vpop.f32.mrb[0].mxu0
  %v358 = vadd.f32 %v104, %v357
  %v359 = vpop.f32.mrb[0].mxu0
  %360 = vmatprep.mubr.f32.mxu0 0.0
  %361 = vmatmul.mubr.f32.gmra.mrb[0].mxu0 %v73
  %v362 = vpop.f32.mrb[0].mxu0
  %v363 = vadd.f32 %v104, %v362
  %v364 = vpop.f32.mrb[0].mxu0
  %365 = vmatprep.mubr.f32.mxu0 0.0
  %366 = vmatmul.mubr.f32.gmra.mrb[0].mxu0 %v74
  %v367 = vpop.f32.mrb[0].mxu0
  %v368 = vadd.f32 %v104, %v367
  %v369 = vpop.f32.mrb[0].mxu0
  %370 = vmatprep.mubr.f32.mxu0 0.0
  %371 = vmatmul.mubr.f32.gmra.mrb[0].mxu0 %v75
  %v372 = vpop.f32.mrb[0].mxu0
  %v373 = vadd.f32 %v104, %v372
  %v374 = vpop.f32.mrb[0].mxu0
  %375 = vmatprep.mubr.f32.mxu0 0.0
  %376 = vmatmul.mubr.f32.gmra.mrb[0].mxu0 %v76
  %v377 = vpop.f32.mrb[0].mxu0
  %v378 = vadd.f32 %v104, %v377
  %v379 = vpop.f32.mrb[0].mxu0
  %380 = vmatprep.mubr.f32.mxu0 0.0
  %381 = vmatmul.mubr.f32.gmra.mrb[0].mxu0 %v77
  %v382 = vpop.f32.mrb[0].mxu0
  %v383 = vadd.f32 %v104, %v382
  %v384 = vpop.f32.mrb[0].mxu0
  %385 = vmatprep.mubr.f32.mxu0 0.0
  %386 = vmatmul.mubr.f32.gmra.mrb[0].mxu0 %v78
  %v387 = vpop.f32.mrb[0].mxu0
  %v388 = vadd.f32 %v104, %v387
  %v389 = vpop.f32.mrb[0].mxu0
  %390 = vmatprep.mubr.f32.mxu0 0.0
  %391 = vmatmul.mubr.f32.gmra.mrb[0].mxu0 %v79
  %v392 = vpop.f32.mrb[0].mxu0
  %v393 = vadd.f32 %v104, %v392
  %v394 = vpop.f32.mrb[0].mxu0
  %395 = vmatprep.mubr.f32.mxu0 0.0
  %396 = vmatmul.mubr.f32.gmra.mrb[0].mxu0 %v80
  %v397 = vpop.f32.mrb[0].mxu0
  %v398 = vadd.f32 %v104, %v397
  %v399 = vpop.f32.mrb[0].mxu0
  %400 = vmatprep.mubr.f32.mxu0 0.0
  %401 = vmatmul.mubr.f32.gmra.mrb[0].mxu0 %v81
  %v402 = vpop.f32.mrb[0].mxu0
  %v403 = vadd.f32 %v104, %v402
  %v404 = vpop.f32.mrb[0].mxu0
  %405 = vmatprep.mubr.f32.mxu0 0.0
  %406 = vmatmul.mubr.f32.gmra.mrb[0].mxu0 %v82
  %v407 = vpop.f32.mrb[0].mxu0
  %v408 = vadd.f32 %v104, %v407
  %v409 = vpop.f32.mrb[0].mxu0
  %410 = vdwg.mxu0
  %v411 = vmax.f32 %v173, 0.0
  %v412 = vmax.f32 %v178, 0.0
  %v413 = vmax.f32 %v183, 0.0
  %v414 = vmax.f32 %v188, 0.0
  %v415 = vmax.f32 %v193, 0.0
  %v416 = vmax.f32 %v198, 0.0
  %v417 = vmax.f32 %v203, 0.0
  %v418 = vmax.f32 %v208, 0.0
  %v419 = vmax.f32 %v213, 0.0
  %v420 = vmax.f32 %v218, 0.0
  %v421 = vmax.f32 %v223, 0.0
  %v422 = vmax.f32 %v228, 0.0
  %v423 = vmax.f32 %v233, 0.0
  %v424 = vmax.f32 %v238, 0.0
  %v425 = vmax.f32 %v243, 0.0
  %v426 = vmax.f32 %v248, 0.0
  %v427 = vmax.f32 %v253, 0.0
  %v428 = vmax.f32 %v258, 0.0
  %v429 = vmax.f32 %v263, 0.0
  %v430 = vmax.f32 %v268, 0.0
  %v431 = vmax.f32 %v273, 0.0
  %v432 = vmax.f32 %v278, 0.0
  %v433 = vmax.f32 %v283, 0.0
  %v434 = vmax.f32 %v288, 0.0
  %v435 = vmax.f32 %v293, 0.0
  %v436 = vmax.f32 %v298, 0.0
  %v437 = vmax.f32 %v303, 0.0
  %v438 = vmax.f32 %v308, 0.0
  %v439 = vmax.f32 %v313, 0.0
  %v440 = vmax.f32 %v318, 0.0
  %v441 = vmax.f32 %v323, 0.0
  %v442 = vmax.f32 %v328, 0.0
  %v443 = vmax.f32 %v333, 0.0
  %v444 = vmax.f32 %v338, 0.0
  %v445 = vmax.f32 %v343, 0.0
  %v446 = vmax.f32 %v348, 0.0
  %v447 = vmax.f32 %v353, 0.0
  %v448 = vmax.f32 %v358, 0.0
  %v449 = vmax.f32 %v363, 0.0
  %v450 = vmax.f32 %v368, 0.0
  %v451 = vmax.f32 %v373, 0.0
  %v452 = vmax.f32 %v378, 0.0
  %v453 = vmax.f32 %v383, 0.0
  %v454 = vmax.f32 %v388, 0.0
  %v455 = vmax.f32 %v393, 0.0
  %v456 = vmax.f32 %v398, 0.0
  %v457 = vmax.f32 %v403, 0.0
  %v458 = vmax.f32 %v408, 0.0
  %v459 = vld [vmem:[%s5] sm:$0xff]
  %v460 = vld [vmem:[%s5 + $0x8] sm:$0xff]
  %v461 = vld [vmem:[%s5 + $0x10] sm:$0xff]
  %v462 = vld [vmem:[%s5 + $0x18] sm:$0xff]
  %v463 = vld [vmem:[%s5 + $0x20] sm:$0xff]
  %v464 = vld [vmem:[%s5 + $0x28] sm:$0xff]
  %v465 = vld [vmem:[%s5 + $0x30] sm:$0xff]
  %v466 = vld [vmem:[%s5 + $0x38] sm:$0xff]
  %v467 = vld [vmem:[%s5 + $0x40] sm:$0xff]
  %v468 = vld [vmem:[%s5 + $0x48] sm:$0xff]
  %v469 = vld [vmem:[%s5 + $0x50] sm:$0xff]
  %v470 = vld [vmem:[%s5 + $0x58] sm:$0xff]
  %v471 = vld [vmem:[%s5 + $0x60] sm:$0xff]
  %v472 = vld [vmem:[%s5 + $0x68] sm:$0xff]
  %v473 = vld [vmem:[%s5 + $0x70] sm:$0xff]
  %v474 = vld [vmem:[%s5 + $0x78] sm:$0xff]
  %v475 = vld [vmem:[%s6] sm:$0x1]
  %v477 = vlaneseq
  %v478 = vshrl.u32 %v477, 7
  %v479 = vsub.s32 0, %v478
  %v480 = vrot.slane %v475, %v479
  %482 = vmatprep.subr.mxu0 0.0
  %483 = vmatpush1.msra.mxu0 %v459
  %484 = vmatprep.subr.mxu0 0.0
  %485 = vmatpush1.msra.mxu0 %v460
  %486 = vmatprep.subr.mxu0 0.0
  %487 = vmatpush1.msra.mxu0 %v461
  %488 = vmatprep.subr.mxu0 0.0
  %489 = vmatpush1.msra.mxu0 %v462
  %490 = vmatprep.subr.mxu0 0.0
  %491 = vmatpush1.msra.mxu0 %v463
  %492 = vmatprep.subr.mxu0 0.0
  %493 = vmatpush1.msra.mxu0 %v464
  %494 = vmatprep.subr.mxu0 0.0
  %495 = vmatpush1.msra.mxu0 %v465
  %496 = vmatprep.subr.mxu0 0.0
  %497 = vmatpush1.msra.mxu0 %v466
  %498 = vmatprep.subr.mxu0 0.0
  %499 = vmatpush1.msra.mxu0 %v467
  %500 = vmatprep.subr.mxu0 0.0
  %501 = vmatpush1.msra.mxu0 %v468
  %502 = vmatprep.subr.mxu0 0.0
  %503 = vmatpush1.msra.mxu0 %v469
  %504 = vmatprep.subr.mxu0 0.0
  %505 = vmatpush1.msra.mxu0 %v470
  %506 = vmatprep.subr.mxu0 0.0
  %507 = vmatpush1.msra.mxu0 %v471
  %508 = vmatprep.subr.mxu0 0.0
  %509 = vmatpush1.msra.mxu0 %v472
  %510 = vmatprep.subr.mxu0 0.0
  %511 = vmatpush1.msra.mxu0 %v473
  %512 = vmatprep.subr.mxu0 0.0
  %513 = vmatpush1.msra.mxu0 %v474
  %514 = vmatprep.subr.mxu0 0.0
  %515 = vmatpush1.msra.mxu0 0.0
  %516 = vmatprep.subr.mxu0 0.0
  %517 = vmatpush1.msra.mxu0 0.0
  %518 = vmatprep.subr.mxu0 0.0
  %519 = vmatpush1.msra.mxu0 0.0
  %520 = vmatprep.subr.mxu0 0.0
  %521 = vmatpush1.msra.mxu0 0.0
  %522 = vmatprep.subr.mxu0 0.0
  %523 = vmatpush1.msra.mxu0 0.0
  %524 = vmatprep.subr.mxu0 0.0
  %525 = vmatpush1.msra.mxu0 0.0
  %526 = vmatprep.subr.mxu0 0.0
  %527 = vmatpush1.msra.mxu0 0.0
  %528 = vmatprep.subr.mxu0 0.0
  %529 = vmatpush1.msra.mxu0 0.0
  %530 = vmatprep.subr.mxu0 0.0
  %531 = vmatpush1.msra.mxu0 0.0
  %532 = vmatprep.subr.mxu0 0.0
  %533 = vmatpush1.msra.mxu0 0.0
  %534 = vmatprep.subr.mxu0 0.0
  %535 = vmatpush1.msra.mxu0 0.0
  %536 = vmatprep.subr.mxu0 0.0
  %537 = vmatpush1.msra.mxu0 0.0
  %538 = vmatprep.subr.mxu0 0.0
  %539 = vmatpush1.msra.mxu0 0.0
  %540 = vmatprep.subr.mxu0 0.0
  %541 = vmatpush1.msra.mxu0 0.0
  %542 = vmatprep.subr.mxu0 0.0
  %543 = vmatpush1.msra.mxu0 0.0
  %544 = vmatprep.subr.mxu0 0.0
  %545 = vmatpush1.msra.mxu0 0.0
  %546 = vmatprep.mubr.f32.mxu0 0.0
  %547 = vmatmul.mubr.f32.gmra.mrb[0].mxu0 %v411
  %v548 = vpop.f32.mrb[0].mxu0
  %v549 = vadd.f32 %v480, %v548
  %v550 = vpop.f32.mrb[0].mxu0
  %551 = vmatprep.mubr.f32.mxu0 0.0
  %552 = vmatmul.mubr.f32.gmra.mrb[0].mxu0 %v412
  %v553 = vpop.f32.mrb[0].mxu0
  %v554 = vadd.f32 %v480, %v553
  %v555 = vpop.f32.mrb[0].mxu0
  %556 = vmatprep.mubr.f32.mxu0 0.0
  %557 = vmatmul.mubr.f32.gmra.mrb[0].mxu0 %v413
  %v558 = vpop.f32.mrb[0].mxu0
  %v559 = vadd.f32 %v480, %v558
  %v560 = vpop.f32.mrb[0].mxu0
  %561 = vmatprep.mubr.f32.mxu0 0.0
  %562 = vmatmul.mubr.f32.gmra.mrb[0].mxu0 %v414
  %v563 = vpop.f32.mrb[0].mxu0
  %v564 = vadd.f32 %v480, %v563
  %v565 = vpop.f32.mrb[0].mxu0
  %566 = vmatprep.mubr.f32.mxu0 0.0
  %567 = vmatmul.mubr.f32.gmra.mrb[0].mxu0 %v415
  %v568 = vpop.f32.mrb[0].mxu0
  %v569 = vadd.f32 %v480, %v568
  %v570 = vpop.f32.mrb[0].mxu0
  %571 = vmatprep.mubr.f32.mxu0 0.0
  %572 = vmatmul.mubr.f32.gmra.mrb[0].mxu0 %v416
  %v573 = vpop.f32.mrb[0].mxu0
  %v574 = vadd.f32 %v480, %v573
  %v575 = vpop.f32.mrb[0].mxu0
  %576 = vmatprep.mubr.f32.mxu0 0.0
  %577 = vmatmul.mubr.f32.gmra.mrb[0].mxu0 %v417
  %v578 = vpop.f32.mrb[0].mxu0
  %v579 = vadd.f32 %v480, %v578
  %v580 = vpop.f32.mrb[0].mxu0
  %581 = vmatprep.mubr.f32.mxu0 0.0
  %582 = vmatmul.mubr.f32.gmra.mrb[0].mxu0 %v418
  %v583 = vpop.f32.mrb[0].mxu0
  %v584 = vadd.f32 %v480, %v583
  %v585 = vpop.f32.mrb[0].mxu0
  %586 = vmatprep.mubr.f32.mxu0 0.0
  %587 = vmatmul.mubr.f32.gmra.mrb[0].mxu0 %v419
  %v588 = vpop.f32.mrb[0].mxu0
  %v589 = vadd.f32 %v480, %v588
  %v590 = vpop.f32.mrb[0].mxu0
  %591 = vmatprep.mubr.f32.mxu0 0.0
  %592 = vmatmul.mubr.f32.gmra.mrb[0].mxu0 %v420
  %v593 = vpop.f32.mrb[0].mxu0
  %v594 = vadd.f32 %v480, %v593
  %v595 = vpop.f32.mrb[0].mxu0
  %596 = vmatprep.mubr.f32.mxu0 0.0
  %597 = vmatmul.mubr.f32.gmra.mrb[0].mxu0 %v421
  %v598 = vpop.f32.mrb[0].mxu0
  %v599 = vadd.f32 %v480, %v598
  %v600 = vpop.f32.mrb[0].mxu0
  %601 = vmatprep.mubr.f32.mxu0 0.0
  %602 = vmatmul.mubr.f32.gmra.mrb[0].mxu0 %v422
  %v603 = vpop.f32.mrb[0].mxu0
  %v604 = vadd.f32 %v480, %v603
  %v605 = vpop.f32.mrb[0].mxu0
  %606 = vmatprep.mubr.f32.mxu0 0.0
  %607 = vmatmul.mubr.f32.gmra.mrb[0].mxu0 %v423
  %v608 = vpop.f32.mrb[0].mxu0
  %v609 = vadd.f32 %v480, %v608
  %v610 = vpop.f32.mrb[0].mxu0
  %611 = vmatprep.mubr.f32.mxu0 0.0
  %612 = vmatmul.mubr.f32.gmra.mrb[0].mxu0 %v424
  %v613 = vpop.f32.mrb[0].mxu0
  %v614 = vadd.f32 %v480, %v613
  %v615 = vpop.f32.mrb[0].mxu0
  %616 = vmatprep.mubr.f32.mxu0 0.0
  %617 = vmatmul.mubr.f32.gmra.mrb[0].mxu0 %v425
  %v618 = vpop.f32.mrb[0].mxu0
  %v619 = vadd.f32 %v480, %v618
  %v620 = vpop.f32.mrb[0].mxu0
  %621 = vmatprep.mubr.f32.mxu0 0.0
  %622 = vmatmul.mubr.f32.gmra.mrb[0].mxu0 %v426
  %v623 = vpop.f32.mrb[0].mxu0
  %v624 = vadd.f32 %v480, %v623
  %v625 = vpop.f32.mrb[0].mxu0
  %626 = vmatprep.mubr.f32.mxu0 0.0
  %627 = vmatmul.mubr.f32.gmra.mrb[0].mxu0 %v427
  %v628 = vpop.f32.mrb[0].mxu0
  %v629 = vadd.f32 %v480, %v628
  %v630 = vpop.f32.mrb[0].mxu0
  %631 = vmatprep.mubr.f32.mxu0 0.0
  %632 = vmatmul.mubr.f32.gmra.mrb[0].mxu0 %v428
  %v633 = vpop.f32.mrb[0].mxu0
  %v634 = vadd.f32 %v480, %v633
  %v635 = vpop.f32.mrb[0].mxu0
  %636 = vmatprep.mubr.f32.mxu0 0.0
  %637 = vmatmul.mubr.f32.gmra.mrb[0].mxu0 %v429
  %v638 = vpop.f32.mrb[0].mxu0
  %v639 = vadd.f32 %v480, %v638
  %v640 = vpop.f32.mrb[0].mxu0
  %641 = vmatprep.mubr.f32.mxu0 0.0
  %642 = vmatmul.mubr.f32.gmra.mrb[0].mxu0 %v430
  %v643 = vpop.f32.mrb[0].mxu0
  %v644 = vadd.f32 %v480, %v643
  %v645 = vpop.f32.mrb[0].mxu0
  %646 = vmatprep.mubr.f32.mxu0 0.0
  %647 = vmatmul.mubr.f32.gmra.mrb[0].mxu0 %v431
  %v648 = vpop.f32.mrb[0].mxu0
  %v649 = vadd.f32 %v480, %v648
  %v650 = vpop.f32.mrb[0].mxu0
  %651 = vmatprep.mubr.f32.mxu0 0.0
  %652 = vmatmul.mubr.f32.gmra.mrb[0].mxu0 %v432
  %v653 = vpop.f32.mrb[0].mxu0
  %v654 = vadd.f32 %v480, %v653
  %v655 = vpop.f32.mrb[0].mxu0
  %656 = vmatprep.mubr.f32.mxu0 0.0
  %657 = vmatmul.mubr.f32.gmra.mrb[0].mxu0 %v433
  %v658 = vpop.f32.mrb[0].mxu0
  %v659 = vadd.f32 %v480, %v658
  %v660 = vpop.f32.mrb[0].mxu0
  %661 = vmatprep.mubr.f32.mxu0 0.0
  %662 = vmatmul.mubr.f32.gmra.mrb[0].mxu0 %v434
  %v663 = vpop.f32.mrb[0].mxu0
  %v664 = vadd.f32 %v480, %v663
  %v665 = vpop.f32.mrb[0].mxu0
  %666 = vmatprep.mubr.f32.mxu0 0.0
  %667 = vmatmul.mubr.f32.gmra.mrb[0].mxu0 %v435
  %v668 = vpop.f32.mrb[0].mxu0
  %v669 = vadd.f32 %v480, %v668
  %v670 = vpop.f32.mrb[0].mxu0
  %671 = vmatprep.mubr.f32.mxu0 0.0
  %672 = vmatmul.mubr.f32.gmra.mrb[0].mxu0 %v436
  %v673 = vpop.f32.mrb[0].mxu0
  %v674 = vadd.f32 %v480, %v673
  %v675 = vpop.f32.mrb[0].mxu0
  %676 = vmatprep.mubr.f32.mxu0 0.0
  %677 = vmatmul.mubr.f32.gmra.mrb[0].mxu0 %v437
  %v678 = vpop.f32.mrb[0].mxu0
  %v679 = vadd.f32 %v480, %v678
  %v680 = vpop.f32.mrb[0].mxu0
  %681 = vmatprep.mubr.f32.mxu0 0.0
  %682 = vmatmul.mubr.f32.gmra.mrb[0].mxu0 %v438
  %v683 = vpop.f32.mrb[0].mxu0
  %v684 = vadd.f32 %v480, %v683
  %v685 = vpop.f32.mrb[0].mxu0
  %686 = vmatprep.mubr.f32.mxu0 0.0
  %687 = vmatmul.mubr.f32.gmra.mrb[0].mxu0 %v439
  %v688 = vpop.f32.mrb[0].mxu0
  %v689 = vadd.f32 %v480, %v688
  %v690 = vpop.f32.mrb[0].mxu0
  %691 = vmatprep.mubr.f32.mxu0 0.0
  %692 = vmatmul.mubr.f32.gmra.mrb[0].mxu0 %v440
  %v693 = vpop.f32.mrb[0].mxu0
  %v694 = vadd.f32 %v480, %v693
  %v695 = vpop.f32.mrb[0].mxu0
  %696 = vmatprep.mubr.f32.mxu0 0.0
  %697 = vmatmul.mubr.f32.gmra.mrb[0].mxu0 %v441
  %v698 = vpop.f32.mrb[0].mxu0
  %v699 = vadd.f32 %v480, %v698
  %v700 = vpop.f32.mrb[0].mxu0
  %701 = vmatprep.mubr.f32.mxu0 0.0
  %702 = vmatmul.mubr.f32.gmra.mrb[0].mxu0 %v442
  %v703 = vpop.f32.mrb[0].mxu0
  %v704 = vadd.f32 %v480, %v703
  %v705 = vpop.f32.mrb[0].mxu0
  %706 = vmatprep.mubr.f32.mxu0 0.0
  %707 = vmatmul.mubr.f32.gmra.mrb[0].mxu0 %v443
  %v708 = vpop.f32.mrb[0].mxu0
  %v709 = vadd.f32 %v480, %v708
  %v710 = vpop.f32.mrb[0].mxu0
  %711 = vmatprep.mubr.f32.mxu0 0.0
  %712 = vmatmul.mubr.f32.gmra.mrb[0].mxu0 %v444
  %v713 = vpop.f32.mrb[0].mxu0
  %v714 = vadd.f32 %v480, %v713
  %v715 = vpop.f32.mrb[0].mxu0
  %716 = vmatprep.mubr.f32.mxu0 0.0
  %717 = vmatmul.mubr.f32.gmra.mrb[0].mxu0 %v445
  %v718 = vpop.f32.mrb[0].mxu0
  %v719 = vadd.f32 %v480, %v718
  %v720 = vpop.f32.mrb[0].mxu0
  %721 = vmatprep.mubr.f32.mxu0 0.0
  %722 = vmatmul.mubr.f32.gmra.mrb[0].mxu0 %v446
  %v723 = vpop.f32.mrb[0].mxu0
  %v724 = vadd.f32 %v480, %v723
  %v725 = vpop.f32.mrb[0].mxu0
  %726 = vmatprep.mubr.f32.mxu0 0.0
  %727 = vmatmul.mubr.f32.gmra.mrb[0].mxu0 %v447
  %v728 = vpop.f32.mrb[0].mxu0
  %v729 = vadd.f32 %v480, %v728
  %v730 = vpop.f32.mrb[0].mxu0
  %731 = vmatprep.mubr.f32.mxu0 0.0
  %732 = vmatmul.mubr.f32.gmra.mrb[0].mxu0 %v448
  %v733 = vpop.f32.mrb[0].mxu0
  %v734 = vadd.f32 %v480, %v733
  %v735 = vpop.f32.mrb[0].mxu0
  %736 = vmatprep.mubr.f32.mxu0 0.0
  %737 = vmatmul.mubr.f32.gmra.mrb[0].mxu0 %v449
  %v738 = vpop.f32.mrb[0].mxu0
  %v739 = vadd.f32 %v480, %v738
  %v740 = vpop.f32.mrb[0].mxu0
  %741 = vmatprep.mubr.f32.mxu0 0.0
  %742 = vmatmul.mubr.f32.gmra.mrb[0].mxu0 %v450
  %v743 = vpop.f32.mrb[0].mxu0
  %v744 = vadd.f32 %v480, %v743
  %v745 = vpop.f32.mrb[0].mxu0
  %746 = vmatprep.mubr.f32.mxu0 0.0
  %747 = vmatmul.mubr.f32.gmra.mrb[0].mxu0 %v451
  %v748 = vpop.f32.mrb[0].mxu0
  %v749 = vadd.f32 %v480, %v748
  %v750 = vpop.f32.mrb[0].mxu0
  %751 = vmatprep.mubr.f32.mxu0 0.0
  %752 = vmatmul.mubr.f32.gmra.mrb[0].mxu0 %v452
  %v753 = vpop.f32.mrb[0].mxu0
  %v754 = vadd.f32 %v480, %v753
  %v755 = vpop.f32.mrb[0].mxu0
  %756 = vmatprep.mubr.f32.mxu0 0.0
  %757 = vmatmul.mubr.f32.gmra.mrb[0].mxu0 %v453
  %v758 = vpop.f32.mrb[0].mxu0
  %v759 = vadd.f32 %v480, %v758
  %v760 = vpop.f32.mrb[0].mxu0
  %761 = vmatprep.mubr.f32.mxu0 0.0
  %762 = vmatmul.mubr.f32.gmra.mrb[0].mxu0 %v454
  %v763 = vpop.f32.mrb[0].mxu0
  %v764 = vadd.f32 %v480, %v763
  %v765 = vpop.f32.mrb[0].mxu0
  %766 = vmatprep.mubr.f32.mxu0 0.0
  %767 = vmatmul.mubr.f32.gmra.mrb[0].mxu0 %v455
  %v768 = vpop.f32.mrb[0].mxu0
  %v769 = vadd.f32 %v480, %v768
  %v770 = vpop.f32.mrb[0].mxu0
  %771 = vmatprep.mubr.f32.mxu0 0.0
  %772 = vmatmul.mubr.f32.gmra.mrb[0].mxu0 %v456
  %v773 = vpop.f32.mrb[0].mxu0
  %v774 = vadd.f32 %v480, %v773
  %v775 = vpop.f32.mrb[0].mxu0
  %776 = vmatprep.mubr.f32.mxu0 0.0
  %777 = vmatmul.mubr.f32.gmra.mrb[0].mxu0 %v457
  %v778 = vpop.f32.mrb[0].mxu0
  %v779 = vadd.f32 %v480, %v778
  %v780 = vpop.f32.mrb[0].mxu0
  %781 = vmatprep.mubr.f32.mxu0 0.0
  %782 = vmatmul.mubr.f32.gmra.mrb[0].mxu0 %v458
  %v783 = vpop.f32.mrb[0].mxu0
  %v784 = vadd.f32 %v480, %v783
  %v785 = vpop.f32.mrb[0].mxu0
  %786 = vdwg.mxu0
  %v787 = vtanh.pop %v549
  %v788 = vtanh.pop %v554
  %v789 = vtanh.pop %v559
  %v790 = vtanh.pop %v564
  %v791 = vtanh.pop %v569
  %v792 = vtanh.pop %v574
  %v793 = vtanh.pop %v579
  %v794 = vtanh.pop %v584
  %v795 = vtanh.pop %v589
  %v796 = vtanh.pop %v594
  %v797 = vtanh.pop %v599
  %v798 = vtanh.pop %v604
  %v799 = vtanh.pop %v609
  %v800 = vtanh.pop %v614
  %v801 = vtanh.pop %v619
  %v802 = vtanh.pop %v624
  %v803 = vtanh.pop %v629
  %v804 = vtanh.pop %v634
  %v805 = vtanh.pop %v639
  %v806 = vtanh.pop %v644
  %v807 = vtanh.pop %v649
  %v808 = vtanh.pop %v654
  %v809 = vtanh.pop %v659
  %v810 = vtanh.pop %v664
  %v811 = vtanh.pop %v669
  %v812 = vtanh.pop %v674
  %v813 = vtanh.pop %v679
  %v814 = vtanh.pop %v684
  %v815 = vtanh.pop %v689
  %v816 = vtanh.pop %v694
  %v817 = vtanh.pop %v699
  %v818 = vtanh.pop %v704
  %v819 = vtanh.pop %v709
  %v820 = vtanh.pop %v714
  %v821 = vtanh.pop %v719
  %v822 = vtanh.pop %v724
  %v823 = vtanh.pop %v729
  %v824 = vtanh.pop %v734
  %v825 = vtanh.pop %v739
  %v826 = vtanh.pop %v744
  %v827 = vtanh.pop %v749
  %v828 = vtanh.pop %v754
  %v829 = vtanh.pop %v759
  %v830 = vtanh.pop %v764
  %v831 = vtanh.pop %v769
  %v832 = vtanh.pop %v774
  %v833 = vtanh.pop %v779
  %v834 = vtanh.pop %v784
  %v835 = vld [vmem:[%s7] sm:$0xff]
  %v836 = vld [vmem:[%s7 + $0x8] sm:$0xff]
  %v837 = vld [vmem:[%s7 + $0x10] sm:$0xff]
  %v838 = vld [vmem:[%s7 + $0x18] sm:$0xff]
  %vm839 = vcmask 261120
  %v841 = vsel %vm839, %v787, 0
  %v844 = vsel %vm839, %v788, 0
  %v847 = vsel %vm839, %v789, 0
  %v850 = vsel %vm839, %v790, 0
  %v853 = vsel %vm839, %v791, 0
  %v856 = vsel %vm839, %v792, 0
  %v859 = vsel %vm839, %v793, 0
  %v862 = vsel %vm839, %v794, 0
  %v865 = vsel %vm839, %v795, 0
  %v868 = vsel %vm839, %v796, 0
  %v871 = vsel %vm839, %v797, 0
  %v874 = vsel %vm839, %v798, 0
  %v877 = vsel %vm839, %v799, 0
  %v880 = vsel %vm839, %v800, 0
  %v883 = vsel %vm839, %v801, 0
  %v886 = vsel %vm839, %v802, 0
  %v889 = vsel %vm839, %v803, 0
  %v892 = vsel %vm839, %v804, 0
  %v895 = vsel %vm839, %v805, 0
  %v898 = vsel %vm839, %v806, 0
  %v901 = vsel %vm839, %v807, 0
  %v904 = vsel %vm839, %v808, 0
  %v907 = vsel %vm839, %v809, 0
  %v910 = vsel %vm839, %v810, 0
  %v913 = vsel %vm839, %v811, 0
  %v916 = vsel %vm839, %v812, 0
  %v919 = vsel %vm839, %v813, 0
  %v922 = vsel %vm839, %v814, 0
  %v925 = vsel %vm839, %v815, 0
  %v928 = vsel %vm839, %v816, 0
  %v931 = vsel %vm839, %v817, 0
  %v934 = vsel %vm839, %v818, 0
  %v937 = vsel %vm839, %v819, 0
  %v940 = vsel %vm839, %v820, 0
  %v943 = vsel %vm839, %v821, 0
  %v946 = vsel %vm839, %v822, 0
  %v949 = vsel %vm839, %v823, 0
  %v952 = vsel %vm839, %v824, 0
  %v955 = vsel %vm839, %v825, 0
  %v958 = vsel %vm839, %v826, 0
  %v961 = vsel %vm839, %v827, 0
  %v964 = vsel %vm839, %v828, 0
  %v967 = vsel %vm839, %v829, 0
  %v970 = vsel %vm839, %v830, 0
  %v973 = vsel %vm839, %v831, 0
  %v976 = vsel %vm839, %v832, 0
  %v979 = vsel %vm839, %v833, 0
  %v982 = vsel %vm839, %v834, 0
  %984 = vmatprep.subr.mxu0 0.0
  %985 = vmatpush1.msra.mxu0 %v835
  %986 = vmatprep.subr.mxu0 0.0
  %987 = vmatpush1.msra.mxu0 %v836
  %988 = vmatprep.subr.mxu0 0.0
  %989 = vmatpush1.msra.mxu0 %v837
  %990 = vmatprep.subr.mxu0 0.0
  %991 = vmatpush1.msra.mxu0 %v838
  %992 = vmatprep.subr.mxu0 0.0
  %993 = vmatpush1.msra.mxu0 0.0
  %994 = vmatprep.subr.mxu0 0.0
  %995 = vmatpush1.msra.mxu0 0.0
  %996 = vmatprep.subr.mxu0 0.0
  %997 = vmatpush1.msra.mxu0 0.0
  %998 = vmatprep.subr.mxu0 0.0
  %999 = vmatpush1.msra.mxu0 0.0
  %1000 = vmatprep.subr.mxu0 0.0
  %1001 = vmatpush1.msra.mxu0 0.0
  %1002 = vmatprep.subr.mxu0 0.0
  %1003 = vmatpush1.msra.mxu0 0.0
  %1004 = vmatprep.subr.mxu0 0.0
  %1005 = vmatpush1.msra.mxu0 0.0
  %1006 = vmatprep.subr.mxu0 0.0
  %1007 = vmatpush1.msra.mxu0 0.0
  %1008 = vmatprep.subr.mxu0 0.0
  %1009 = vmatpush1.msra.mxu0 0.0
  %1010 = vmatprep.subr.mxu0 0.0
  %1011 = vmatpush1.msra.mxu0 0.0
  %1012 = vmatprep.subr.mxu0 0.0
  %1013 = vmatpush1.msra.mxu0 0.0
  %1014 = vmatprep.subr.mxu0 0.0
  %1015 = vmatpush1.msra.mxu0 0.0
  %1016 = vmatprep.subr.mxu0 0.0
  %1017 = vmatpush1.msra.mxu0 0.0
  %1018 = vmatprep.subr.mxu0 0.0
  %1019 = vmatpush1.msra.mxu0 0.0
  %1020 = vmatprep.subr.mxu0 0.0
  %1021 = vmatpush1.msra.mxu0 0.0
  %1022 = vmatprep.subr.mxu0 0.0
  %1023 = vmatpush1.msra.mxu0 0.0
  %1024 = vmatprep.subr.mxu0 0.0
  %1025 = vmatpush1.msra.mxu0 0.0
  %1026 = vmatprep.subr.mxu0 0.0
  %1027 = vmatpush1.msra.mxu0 0.0
  %1028 = vmatprep.subr.mxu0 0.0
  %1029 = vmatpush1.msra.mxu0 0.0
  %1030 = vmatprep.subr.mxu0 0.0
  %1031 = vmatpush1.msra.mxu0 0.0
  %1032 = vmatprep.subr.mxu0 0.0
  %1033 = vmatpush1.msra.mxu0 0.0
  %1034 = vmatprep.subr.mxu0 0.0
  %1035 = vmatpush1.msra.mxu0 0.0
  %1036 = vmatprep.subr.mxu0 0.0
  %1037 = vmatpush1.msra.mxu0 0.0
  %1038 = vmatprep.subr.mxu0 0.0
  %1039 = vmatpush1.msra.mxu0 0.0
  %1040 = vmatprep.subr.mxu0 0.0
  %1041 = vmatpush1.msra.mxu0 0.0
  %1042 = vmatprep.subr.mxu0 0.0
  %1043 = vmatpush1.msra.mxu0 0.0
  %1044 = vmatprep.subr.mxu0 0.0
  %1045 = vmatpush1.msra.mxu0 0.0
  %1046 = vmatprep.subr.mxu0 0.0
  %1047 = vmatpush1.msra.mxu0 0.0
  %1048 = vmatprep.mubr.f32.mxu0 0.0
  %1049 = vmatmul.mubr.f32.gmra.mrb[0].mxu0 %v841
  %v1050 = vpop.f32.mrb[0].mxu0
  %v1051 = vadd.f32 0.0, %v1050
  %v1052 = vpop.f32.mrb[0].mxu0
  %1053 = vmatprep.mubr.f32.mxu0 0.0
  %1054 = vmatmul.mubr.f32.gmra.mrb[0].mxu0 %v844
  %v1055 = vpop.f32.mrb[0].mxu0
  %v1056 = vadd.f32 0.0, %v1055
  %v1057 = vpop.f32.mrb[0].mxu0
  %1058 = vmatprep.mubr.f32.mxu0 0.0
  %1059 = vmatmul.mubr.f32.gmra.mrb[0].mxu0 %v847
  %v1060 = vpop.f32.mrb[0].mxu0
  %v1061 = vadd.f32 0.0, %v1060
  %v1062 = vpop.f32.mrb[0].mxu0
  %1063 = vmatprep.mubr.f32.mxu0 0.0
  %1064 = vmatmul.mubr.f32.gmra.mrb[0].mxu0 %v850
  %v1065 = vpop.f32.mrb[0].mxu0
  %v1066 = vadd.f32 0.0, %v1065
  %v1067 = vpop.f32.mrb[0].mxu0
  %1068 = vmatprep.mubr.f32.mxu0 0.0
  %1069 = vmatmul.mubr.f32.gmra.mrb[0].mxu0 %v853
  %v1070 = vpop.f32.mrb[0].mxu0
  %v1071 = vadd.f32 0.0, %v1070
  %v1072 = vpop.f32.mrb[0].mxu0
  %1073 = vmatprep.mubr.f32.mxu0 0.0
  %1074 = vmatmul.mubr.f32.gmra.mrb[0].mxu0 %v856
  %v1075 = vpop.f32.mrb[0].mxu0
  %v1076 = vadd.f32 0.0, %v1075
  %v1077 = vpop.f32.mrb[0].mxu0
  %1078 = vmatprep.mubr.f32.mxu0 0.0
  %1079 = vmatmul.mubr.f32.gmra.mrb[0].mxu0 %v859
  %v1080 = vpop.f32.mrb[0].mxu0
  %v1081 = vadd.f32 0.0, %v1080
  %v1082 = vpop.f32.mrb[0].mxu0
  %1083 = vmatprep.mubr.f32.mxu0 0.0
  %1084 = vmatmul.mubr.f32.gmra.mrb[0].mxu0 %v862
  %v1085 = vpop.f32.mrb[0].mxu0
  %v1086 = vadd.f32 0.0, %v1085
  %v1087 = vpop.f32.mrb[0].mxu0
  %1088 = vmatprep.mubr.f32.mxu0 0.0
  %1089 = vmatmul.mubr.f32.gmra.mrb[0].mxu0 %v865
  %v1090 = vpop.f32.mrb[0].mxu0
  %v1091 = vadd.f32 0.0, %v1090
  %v1092 = vpop.f32.mrb[0].mxu0
  %1093 = vmatprep.mubr.f32.mxu0 0.0
  %1094 = vmatmul.mubr.f32.gmra.mrb[0].mxu0 %v868
  %v1095 = vpop.f32.mrb[0].mxu0
  %v1096 = vadd.f32 0.0, %v1095
  %v1097 = vpop.f32.mrb[0].mxu0
  %1098 = vmatprep.mubr.f32.mxu0 0.0
  %1099 = vmatmul.mubr.f32.gmra.mrb[0].mxu0 %v871
  %v1100 = vpop.f32.mrb[0].mxu0
  %v1101 = vadd.f32 0.0, %v1100
  %v1102 = vpop.f32.mrb[0].mxu0
  %1103 = vmatprep.mubr.f32.mxu0 0.0
  %1104 = vmatmul.mubr.f32.gmra.mrb[0].mxu0 %v874
  %v1105 = vpop.f32.mrb[0].mxu0
  %v1106 = vadd.f32 0.0, %v1105
  %v1107 = vpop.f32.mrb[0].mxu0
  %1108 = vmatprep.mubr.f32.mxu0 0.0
  %1109 = vmatmul.mubr.f32.gmra.mrb[0].mxu0 %v877
  %v1110 = vpop.f32.mrb[0].mxu0
  %v1111 = vadd.f32 0.0, %v1110
  %v1112 = vpop.f32.mrb[0].mxu0
  %1113 = vmatprep.mubr.f32.mxu0 0.0
  %1114 = vmatmul.mubr.f32.gmra.mrb[0].mxu0 %v880
  %v1115 = vpop.f32.mrb[0].mxu0
  %v1116 = vadd.f32 0.0, %v1115
  %v1117 = vpop.f32.mrb[0].mxu0
  %1118 = vmatprep.mubr.f32.mxu0 0.0
  %1119 = vmatmul.mubr.f32.gmra.mrb[0].mxu0 %v883
  %v1120 = vpop.f32.mrb[0].mxu0
  %v1121 = vadd.f32 0.0, %v1120
  %v1122 = vpop.f32.mrb[0].mxu0
  %1123 = vmatprep.mubr.f32.mxu0 0.0
  %1124 = vmatmul.mubr.f32.gmra.mrb[0].mxu0 %v886
  %v1125 = vpop.f32.mrb[0].mxu0
  %v1126 = vadd.f32 0.0, %v1125
  %v1127 = vpop.f32.mrb[0].mxu0
  %1128 = vmatprep.mubr.f32.mxu0 0.0
  %1129 = vmatmul.mubr.f32.gmra.mrb[0].mxu0 %v889
  %v1130 = vpop.f32.mrb[0].mxu0
  %v1131 = vadd.f32 0.0, %v1130
  %v1132 = vpop.f32.mrb[0].mxu0
  %1133 = vmatprep.mubr.f32.mxu0 0.0
  %1134 = vmatmul.mubr.f32.gmra.mrb[0].mxu0 %v892
  %v1135 = vpop.f32.mrb[0].mxu0
  %v1136 = vadd.f32 0.0, %v1135
  %v1137 = vpop.f32.mrb[0].mxu0
  %1138 = vmatprep.mubr.f32.mxu0 0.0
  %1139 = vmatmul.mubr.f32.gmra.mrb[0].mxu0 %v895
  %v1140 = vpop.f32.mrb[0].mxu0
  %v1141 = vadd.f32 0.0, %v1140
  %v1142 = vpop.f32.mrb[0].mxu0
  %1143 = vmatprep.mubr.f32.mxu0 0.0
  %1144 = vmatmul.mubr.f32.gmra.mrb[0].mxu0 %v898
  %v1145 = vpop.f32.mrb[0].mxu0
  %v1146 = vadd.f32 0.0, %v1145
  %v1147 = vpop.f32.mrb[0].mxu0
  %1148 = vmatprep.mubr.f32.mxu0 0.0
  %1149 = vmatmul.mubr.f32.gmra.mrb[0].mxu0 %v901
  %v1150 = vpop.f32.mrb[0].mxu0
  %v1151 = vadd.f32 0.0, %v1150
  %v1152 = vpop.f32.mrb[0].mxu0
  %1153 = vmatprep.mubr.f32.mxu0 0.0
  %1154 = vmatmul.mubr.f32.gmra.mrb[0].mxu0 %v904
  %v1155 = vpop.f32.mrb[0].mxu0
  %v1156 = vadd.f32 0.0, %v1155
  %v1157 = vpop.f32.mrb[0].mxu0
  %1158 = vmatprep.mubr.f32.mxu0 0.0
  %1159 = vmatmul.mubr.f32.gmra.mrb[0].mxu0 %v907
  %v1160 = vpop.f32.mrb[0].mxu0
  %v1161 = vadd.f32 0.0, %v1160
  %v1162 = vpop.f32.mrb[0].mxu0
  %1163 = vmatprep.mubr.f32.mxu0 0.0
  %1164 = vmatmul.mubr.f32.gmra.mrb[0].mxu0 %v910
  %v1165 = vpop.f32.mrb[0].mxu0
  %v1166 = vadd.f32 0.0, %v1165
  %v1167 = vpop.f32.mrb[0].mxu0
  %1168 = vmatprep.mubr.f32.mxu0 0.0
  %1169 = vmatmul.mubr.f32.gmra.mrb[0].mxu0 %v913
  %v1170 = vpop.f32.mrb[0].mxu0
  %v1171 = vadd.f32 0.0, %v1170
  %v1172 = vpop.f32.mrb[0].mxu0
  %1173 = vmatprep.mubr.f32.mxu0 0.0
  %1174 = vmatmul.mubr.f32.gmra.mrb[0].mxu0 %v916
  %v1175 = vpop.f32.mrb[0].mxu0
  %v1176 = vadd.f32 0.0, %v1175
  %v1177 = vpop.f32.mrb[0].mxu0
  %1178 = vmatprep.mubr.f32.mxu0 0.0
  %1179 = vmatmul.mubr.f32.gmra.mrb[0].mxu0 %v919
  %v1180 = vpop.f32.mrb[0].mxu0
  %v1181 = vadd.f32 0.0, %v1180
  %v1182 = vpop.f32.mrb[0].mxu0
  %1183 = vmatprep.mubr.f32.mxu0 0.0
  %1184 = vmatmul.mubr.f32.gmra.mrb[0].mxu0 %v922
  %v1185 = vpop.f32.mrb[0].mxu0
  %v1186 = vadd.f32 0.0, %v1185
  %v1187 = vpop.f32.mrb[0].mxu0
  %1188 = vmatprep.mubr.f32.mxu0 0.0
  %1189 = vmatmul.mubr.f32.gmra.mrb[0].mxu0 %v925
  %v1190 = vpop.f32.mrb[0].mxu0
  %v1191 = vadd.f32 0.0, %v1190
  %v1192 = vpop.f32.mrb[0].mxu0
  %1193 = vmatprep.mubr.f32.mxu0 0.0
  %1194 = vmatmul.mubr.f32.gmra.mrb[0].mxu0 %v928
  %v1195 = vpop.f32.mrb[0].mxu0
  %v1196 = vadd.f32 0.0, %v1195
  %v1197 = vpop.f32.mrb[0].mxu0
  %1198 = vmatprep.mubr.f32.mxu0 0.0
  %1199 = vmatmul.mubr.f32.gmra.mrb[0].mxu0 %v931
  %v1200 = vpop.f32.mrb[0].mxu0
  %v1201 = vadd.f32 0.0, %v1200
  %v1202 = vpop.f32.mrb[0].mxu0
  %1203 = vmatprep.mubr.f32.mxu0 0.0
  %1204 = vmatmul.mubr.f32.gmra.mrb[0].mxu0 %v934
  %v1205 = vpop.f32.mrb[0].mxu0
  %v1206 = vadd.f32 0.0, %v1205
  %v1207 = vpop.f32.mrb[0].mxu0
  %1208 = vmatprep.mubr.f32.mxu0 0.0
  %1209 = vmatmul.mubr.f32.gmra.mrb[0].mxu0 %v937
  %v1210 = vpop.f32.mrb[0].mxu0
  %v1211 = vadd.f32 0.0, %v1210
  %v1212 = vpop.f32.mrb[0].mxu0
  %1213 = vmatprep.mubr.f32.mxu0 0.0
  %1214 = vmatmul.mubr.f32.gmra.mrb[0].mxu0 %v940
  %v1215 = vpop.f32.mrb[0].mxu0
  %v1216 = vadd.f32 0.0, %v1215
  %v1217 = vpop.f32.mrb[0].mxu0
  %1218 = vmatprep.mubr.f32.mxu0 0.0
  %1219 = vmatmul.mubr.f32.gmra.mrb[0].mxu0 %v943
  %v1220 = vpop.f32.mrb[0].mxu0
  %v1221 = vadd.f32 0.0, %v1220
  %v1222 = vpop.f32.mrb[0].mxu0
  %1223 = vmatprep.mubr.f32.mxu0 0.0
  %1224 = vmatmul.mubr.f32.gmra.mrb[0].mxu0 %v946
  %v1225 = vpop.f32.mrb[0].mxu0
  %v1226 = vadd.f32 0.0, %v1225
  %v1227 = vpop.f32.mrb[0].mxu0
  %1228 = vmatprep.mubr.f32.mxu0 0.0
  %1229 = vmatmul.mubr.f32.gmra.mrb[0].mxu0 %v949
  %v1230 = vpop.f32.mrb[0].mxu0
  %v1231 = vadd.f32 0.0, %v1230
  %v1232 = vpop.f32.mrb[0].mxu0
  %1233 = vmatprep.mubr.f32.mxu0 0.0
  %1234 = vmatmul.mubr.f32.gmra.mrb[0].mxu0 %v952
  %v1235 = vpop.f32.mrb[0].mxu0
  %v1236 = vadd.f32 0.0, %v1235
  %v1237 = vpop.f32.mrb[0].mxu0
  %1238 = vmatprep.mubr.f32.mxu0 0.0
  %1239 = vmatmul.mubr.f32.gmra.mrb[0].mxu0 %v955
  %v1240 = vpop.f32.mrb[0].mxu0
  %v1241 = vadd.f32 0.0, %v1240
  %v1242 = vpop.f32.mrb[0].mxu0
  %1243 = vmatprep.mubr.f32.mxu0 0.0
  %1244 = vmatmul.mubr.f32.gmra.mrb[0].mxu0 %v958
  %v1245 = vpop.f32.mrb[0].mxu0
  %v1246 = vadd.f32 0.0, %v1245
  %v1247 = vpop.f32.mrb[0].mxu0
  %1248 = vmatprep.mubr.f32.mxu0 0.0
  %1249 = vmatmul.mubr.f32.gmra.mrb[0].mxu0 %v961
  %v1250 = vpop.f32.mrb[0].mxu0
  %v1251 = vadd.f32 0.0, %v1250
  %v1252 = vpop.f32.mrb[0].mxu0
  %1253 = vmatprep.mubr.f32.mxu0 0.0
  %1254 = vmatmul.mubr.f32.gmra.mrb[0].mxu0 %v964
  %v1255 = vpop.f32.mrb[0].mxu0
  %v1256 = vadd.f32 0.0, %v1255
  %v1257 = vpop.f32.mrb[0].mxu0
  %1258 = vmatprep.mubr.f32.mxu0 0.0
  %1259 = vmatmul.mubr.f32.gmra.mrb[0].mxu0 %v967
  %v1260 = vpop.f32.mrb[0].mxu0
  %v1261 = vadd.f32 0.0, %v1260
  %v1262 = vpop.f32.mrb[0].mxu0
  %1263 = vmatprep.mubr.f32.mxu0 0.0
  %1264 = vmatmul.mubr.f32.gmra.mrb[0].mxu0 %v970
  %v1265 = vpop.f32.mrb[0].mxu0
  %v1266 = vadd.f32 0.0, %v1265
  %v1267 = vpop.f32.mrb[0].mxu0
  %1268 = vmatprep.mubr.f32.mxu0 0.0
  %1269 = vmatmul.mubr.f32.gmra.mrb[0].mxu0 %v973
  %v1270 = vpop.f32.mrb[0].mxu0
  %v1271 = vadd.f32 0.0, %v1270
  %v1272 = vpop.f32.mrb[0].mxu0
  %1273 = vmatprep.mubr.f32.mxu0 0.0
  %1274 = vmatmul.mubr.f32.gmra.mrb[0].mxu0 %v976
  %v1275 = vpop.f32.mrb[0].mxu0
  %v1276 = vadd.f32 0.0, %v1275
  %v1277 = vpop.f32.mrb[0].mxu0
  %1278 = vmatprep.mubr.f32.mxu0 0.0
  %1279 = vmatmul.mubr.f32.gmra.mrb[0].mxu0 %v979
  %v1280 = vpop.f32.mrb[0].mxu0
  %v1281 = vadd.f32 0.0, %v1280
  %v1282 = vpop.f32.mrb[0].mxu0
  %1283 = vmatprep.mubr.f32.mxu0 0.0
  %1284 = vmatmul.mubr.f32.gmra.mrb[0].mxu0 %v982
  %v1285 = vpop.f32.mrb[0].mxu0
  %v1286 = vadd.f32 0.0, %v1285
  %v1287 = vpop.f32.mrb[0].mxu0
  %1288 = vdwg.mxu0
  %vm1289 = vcmask 7168
  %v1290 = vsel %vm1289, %v1051, -inf
  %v1291 = vsel %vm1289, %v1056, -inf
  %v1292 = vsel %vm1289, %v1061, -inf
  %v1293 = vsel %vm1289, %v1066, -inf
  %v1294 = vsel %vm1289, %v1071, -inf
  %v1295 = vmax.f32 %v1290, %v1294
  %v1296 = vsel %vm1289, %v1076, -inf
  %v1297 = vmax.f32 %v1291, %v1296
  %v1298 = vsel %vm1289, %v1081, -inf
  %v1299 = vmax.f32 %v1292, %v1298
  %v1300 = vsel %vm1289, %v1086, -inf
  %v1301 = vmax.f32 %v1293, %v1300
  %v1302 = vsel %vm1289, %v1091, -inf
  %v1303 = vmax.f32 %v1295, %v1302
  %v1304 = vsel %vm1289, %v1096, -inf
  %v1305 = vmax.f32 %v1297, %v1304
  %v1306 = vsel %vm1289, %v1101, -inf
  %v1307 = vmax.f32 %v1299, %v1306
  %v1308 = vsel %vm1289, %v1106, -inf
  %v1309 = vmax.f32 %v1301, %v1308
  %v1310 = vsel %vm1289, %v1111, -inf
  %v1311 = vmax.f32 %v1303, %v1310
  %v1312 = vsel %vm1289, %v1116, -inf
  %v1313 = vmax.f32 %v1305, %v1312
  %v1314 = vsel %vm1289, %v1121, -inf
  %v1315 = vmax.f32 %v1307, %v1314
  %v1316 = vsel %vm1289, %v1126, -inf
  %v1317 = vmax.f32 %v1309, %v1316
  %v1318 = vsel %vm1289, %v1131, -inf
  %v1319 = vmax.f32 %v1311, %v1318
  %v1320 = vsel %vm1289, %v1136, -inf
  %v1321 = vmax.f32 %v1313, %v1320
  %v1322 = vsel %vm1289, %v1141, -inf
  %v1323 = vmax.f32 %v1315, %v1322
  %v1324 = vsel %vm1289, %v1146, -inf
  %v1325 = vmax.f32 %v1317, %v1324
  %v1326 = vsel %vm1289, %v1151, -inf
  %v1327 = vmax.f32 %v1319, %v1326
  %v1328 = vsel %vm1289, %v1156, -inf
  %v1329 = vmax.f32 %v1321, %v1328
  %v1330 = vsel %vm1289, %v1161, -inf
  %v1331 = vmax.f32 %v1323, %v1330
  %v1332 = vsel %vm1289, %v1166, -inf
  %v1333 = vmax.f32 %v1325, %v1332
  %v1334 = vsel %vm1289, %v1171, -inf
  %v1335 = vmax.f32 %v1327, %v1334
  %v1336 = vsel %vm1289, %v1176, -inf
  %v1337 = vmax.f32 %v1329, %v1336
  %v1338 = vsel %vm1289, %v1181, -inf
  %v1339 = vmax.f32 %v1331, %v1338
  %v1340 = vsel %vm1289, %v1186, -inf
  %v1341 = vmax.f32 %v1333, %v1340
  %v1342 = vsel %vm1289, %v1191, -inf
  %v1343 = vmax.f32 %v1335, %v1342
  %v1344 = vsel %vm1289, %v1196, -inf
  %v1345 = vmax.f32 %v1337, %v1344
  %v1346 = vsel %vm1289, %v1201, -inf
  %v1347 = vmax.f32 %v1339, %v1346
  %v1348 = vsel %vm1289, %v1206, -inf
  %v1349 = vmax.f32 %v1341, %v1348
  %v1350 = vsel %vm1289, %v1211, -inf
  %v1351 = vmax.f32 %v1343, %v1350
  %v1352 = vsel %vm1289, %v1216, -inf
  %v1353 = vmax.f32 %v1345, %v1352
  %v1354 = vsel %vm1289, %v1221, -inf
  %v1355 = vmax.f32 %v1347, %v1354
  %v1356 = vsel %vm1289, %v1226, -inf
  %v1357 = vmax.f32 %v1349, %v1356
  %v1358 = vsel %vm1289, %v1231, -inf
  %v1359 = vmax.f32 %v1351, %v1358
  %v1360 = vsel %vm1289, %v1236, -inf
  %v1361 = vmax.f32 %v1353, %v1360
  %v1362 = vsel %vm1289, %v1241, -inf
  %v1363 = vmax.f32 %v1355, %v1362
  %v1364 = vsel %vm1289, %v1246, -inf
  %v1365 = vmax.f32 %v1357, %v1364
  %v1366 = vsel %vm1289, %v1251, -inf
  %v1367 = vmax.f32 %v1359, %v1366
  %v1368 = vsel %vm1289, %v1256, -inf
  %v1369 = vmax.f32 %v1361, %v1368
  %v1370 = vsel %vm1289, %v1261, -inf
  %v1371 = vmax.f32 %v1363, %v1370
  %v1372 = vsel %vm1289, %v1266, -inf
  %v1373 = vmax.f32 %v1365, %v1372
  %v1374 = vsel %vm1289, %v1271, -inf
  %v1375 = vmax.f32 %v1367, %v1374
  %v1376 = vsel %vm1289, %v1276, -inf
  %v1377 = vmax.f32 %v1369, %v1376
  %v1378 = vsel %vm1289, %v1281, -inf
  %v1379 = vmax.f32 %v1371, %v1378
  %v1380 = vsel %vm1289, %v1286, -inf
  %v1381 = vmax.f32 %v1373, %v1380
  %v1382 = vmax.f32 %v1375, %v1377
  %v1383 = vmax.f32 %v1379, %v1381
  %v1384 = vmax.f32 %v1382, %v1383
  %1385 = vmax.xlane.f32.xlu0 %v1384
  %v1386 = vpop.xlane.xlu0 %1385
  %v1387 = vrot.slane %v1386, 4
  %v1388 = vmax.f32 %v1386, %v1387
  %v1389 = vrot.slane %v1388, 2
  %v1390 = vmax.f32 %v1388, %v1389
  %v1391 = vrot.slane %v1390, 1
  %v1392 = vmax.f32 %v1390, %v1391
  %s1393 = vtos %v1392
  %v1394 = vstv %s1393
  %v1395 = vsub.f32 %v1051, %v1394
  %v1396 = vsub.f32 %v1056, %v1394
  %v1397 = vsub.f32 %v1061, %v1394
  %v1398 = vsub.f32 %v1066, %v1394
  %v1399 = vsub.f32 %v1071, %v1394
  %v1400 = vsub.f32 %v1076, %v1394
  %v1401 = vsub.f32 %v1081, %v1394
  %v1402 = vsub.f32 %v1086, %v1394
  %v1403 = vsub.f32 %v1091, %v1394
  %v1404 = vsub.f32 %v1096, %v1394
  %v1405 = vsub.f32 %v1101, %v1394
  %v1406 = vsub.f32 %v1106, %v1394
  %v1407 = vsub.f32 %v1111, %v1394
  %v1408 = vsub.f32 %v1116, %v1394
  %v1409 = vsub.f32 %v1121, %v1394
  %v1410 = vsub.f32 %v1126, %v1394
  %v1411 = vsub.f32 %v1131, %v1394
  %v1412 = vsub.f32 %v1136, %v1394
  %v1413 = vsub.f32 %v1141, %v1394
  %v1414 = vsub.f32 %v1146, %v1394
  %v1415 = vsub.f32 %v1151, %v1394
  %v1416 = vsub.f32 %v1156, %v1394
  %v1417 = vsub.f32 %v1161, %v1394
  %v1418 = vsub.f32 %v1166, %v1394
  %v1419 = vsub.f32 %v1171, %v1394
  %v1420 = vsub.f32 %v1176, %v1394
  %v1421 = vsub.f32 %v1181, %v1394
  %v1422 = vsub.f32 %v1186, %v1394
  %v1423 = vsub.f32 %v1191, %v1394
  %v1424 = vsub.f32 %v1196, %v1394
  %v1425 = vsub.f32 %v1201, %v1394
  %v1426 = vsub.f32 %v1206, %v1394
  %v1427 = vsub.f32 %v1211, %v1394
  %v1428 = vsub.f32 %v1216, %v1394
  %v1429 = vsub.f32 %v1221, %v1394
  %v1430 = vsub.f32 %v1226, %v1394
  %v1431 = vsub.f32 %v1231, %v1394
  %v1432 = vsub.f32 %v1236, %v1394
  %v1433 = vsub.f32 %v1241, %v1394
  %v1434 = vsub.f32 %v1246, %v1394
  %v1435 = vsub.f32 %v1251, %v1394
  %v1436 = vsub.f32 %v1256, %v1394
  %v1437 = vsub.f32 %v1261, %v1394
  %v1438 = vsub.f32 %v1266, %v1394
  %v1439 = vsub.f32 %v1271, %v1394
  %v1440 = vsub.f32 %v1276, %v1394
  %v1441 = vsub.f32 %v1281, %v1394
  %v1442 = vsub.f32 %v1286, %v1394
  %v1443 = vmul.f32 %v1395, 1.442695
  %v1444 = vpow.pop %v1443
  %v1445 = vmul.f32 %v1396, 1.442695
  %v1446 = vpow.pop %v1445
  %v1447 = vmul.f32 %v1397, 1.442695
  %v1448 = vpow.pop %v1447
  %v1449 = vmul.f32 %v1398, 1.442695
  %v1450 = vpow.pop %v1449
  %v1451 = vmul.f32 %v1399, 1.442695
  %v1452 = vpow.pop %v1451
  %v1453 = vmul.f32 %v1400, 1.442695
  %v1454 = vpow.pop %v1453
  %v1455 = vmul.f32 %v1401, 1.442695
  %v1456 = vpow.pop %v1455
  %v1457 = vmul.f32 %v1402, 1.442695
  %v1458 = vpow.pop %v1457
  %v1459 = vmul.f32 %v1403, 1.442695
  %v1460 = vpow.pop %v1459
  %v1461 = vmul.f32 %v1404, 1.442695
  %v1462 = vpow.pop %v1461
  %v1463 = vmul.f32 %v1405, 1.442695
  %v1464 = vpow.pop %v1463
  %v1465 = vmul.f32 %v1406, 1.442695
  %v1466 = vpow.pop %v1465
  %v1467 = vmul.f32 %v1407, 1.442695
  %v1468 = vpow.pop %v1467
  %v1469 = vmul.f32 %v1408, 1.442695
  %v1470 = vpow.pop %v1469
  %v1471 = vmul.f32 %v1409, 1.442695
  %v1472 = vpow.pop %v1471
  %v1473 = vmul.f32 %v1410, 1.442695
  %v1474 = vpow.pop %v1473
  %v1475 = vmul.f32 %v1411, 1.442695
  %v1476 = vpow.pop %v1475
  %v1477 = vmul.f32 %v1412, 1.442695
  %v1478 = vpow.pop %v1477
  %v1479 = vmul.f32 %v1413, 1.442695
  %v1480 = vpow.pop %v1479
  %v1481 = vmul.f32 %v1414, 1.442695
  %v1482 = vpow.pop %v1481
  %v1483 = vmul.f32 %v1415, 1.442695
  %v1484 = vpow.pop %v1483
  %v1485 = vmul.f32 %v1416, 1.442695
  %v1486 = vpow.pop %v1485
  %v1487 = vmul.f32 %v1417, 1.442695
  %v1488 = vpow.pop %v1487
  %v1489 = vmul.f32 %v1418, 1.442695
  %v1490 = vpow.pop %v1489
  %v1491 = vmul.f32 %v1419, 1.442695
  %v1492 = vpow.pop %v1491
  %v1493 = vmul.f32 %v1420, 1.442695
  %v1494 = vpow.pop %v1493
  %v1495 = vmul.f32 %v1421, 1.442695
  %v1496 = vpow.pop %v1495
  %v1497 = vmul.f32 %v1422, 1.442695
  %v1498 = vpow.pop %v1497
  %v1499 = vmul.f32 %v1423, 1.442695
  %v1500 = vpow.pop %v1499
  %v1501 = vmul.f32 %v1424, 1.442695
  %v1502 = vpow.pop %v1501
  %v1503 = vmul.f32 %v1425, 1.442695
  %v1504 = vpow.pop %v1503
  %v1505 = vmul.f32 %v1426, 1.442695
  %v1506 = vpow.pop %v1505
  %v1507 = vmul.f32 %v1427, 1.442695
  %v1508 = vpow.pop %v1507
  %v1509 = vmul.f32 %v1428, 1.442695
  %v1510 = vpow.pop %v1509
  %v1511 = vmul.f32 %v1429, 1.442695
  %v1512 = vpow.pop %v1511
  %v1513 = vmul.f32 %v1430, 1.442695
  %v1514 = vpow.pop %v1513
  %v1515 = vmul.f32 %v1431, 1.442695
  %v1516 = vpow.pop %v1515
  %v1517 = vmul.f32 %v1432, 1.442695
  %v1518 = vpow.pop %v1517
  %v1519 = vmul.f32 %v1433, 1.442695
  %v1520 = vpow.pop %v1519
  %v1521 = vmul.f32 %v1434, 1.442695
  %v1522 = vpow.pop %v1521
  %v1523 = vmul.f32 %v1435, 1.442695
  %v1524 = vpow.pop %v1523
  %v1525 = vmul.f32 %v1436, 1.442695
  %v1526 = vpow.pop %v1525
  %v1527 = vmul.f32 %v1437, 1.442695
  %v1528 = vpow.pop %v1527
  %v1529 = vmul.f32 %v1438, 1.442695
  %v1530 = vpow.pop %v1529
  %v1531 = vmul.f32 %v1439, 1.442695
  %v1532 = vpow.pop %v1531
  %v1533 = vmul.f32 %v1440, 1.442695
  %v1534 = vpow.pop %v1533
  %v1535 = vmul.f32 %v1441, 1.442695
  %v1536 = vpow.pop %v1535
  %v1537 = vmul.f32 %v1442, 1.442695
  %v1538 = vpow.pop %v1537
  %v1539 = vld [vmem:[%s2] sm:$0xff]
  %v1540 = vld [vmem:[%s2 + $0x8] sm:$0xff]
  %v1541 = vld [vmem:[%s2 + $0x10] sm:$0xff]
  %v1542 = vld [vmem:[%s2 + $0x18] sm:$0xff]
  %v1543 = vld [vmem:[%s2 + $0x20] sm:$0xff]
  %v1544 = vld [vmem:[%s2 + $0x28] sm:$0xff]
  %v1545 = vld [vmem:[%s2 + $0x30] sm:$0xff]
  %v1546 = vld [vmem:[%s2 + $0x38] sm:$0xff]
  %v1547 = vld [vmem:[%s2 + $0x40] sm:$0xff]
  %1549 = vset.pattern.permute.xlu0 0
  %1550 = vperm.xlu0 %1549, %v1444
  %v1551 = vpop.permute.xlu0 %1550
  %1554 = vset.pattern.permute.xlu0 0
  %1555 = vperm.xlu0 %1554, %v1446
  %v1556 = vpop.permute.xlu0 %1555
  %1559 = vset.pattern.permute.xlu0 0
  %1560 = vperm.xlu0 %1559, %v1448
  %v1561 = vpop.permute.xlu0 %1560
  %1564 = vset.pattern.permute.xlu0 0
  %1565 = vperm.xlu0 %1564, %v1450
  %v1566 = vpop.permute.xlu0 %1565
  %1569 = vset.pattern.permute.xlu0 0
  %1570 = vperm.xlu0 %1569, %v1452
  %v1571 = vpop.permute.xlu0 %1570
  %1574 = vset.pattern.permute.xlu0 0
  %1575 = vperm.xlu0 %1574, %v1454
  %v1576 = vpop.permute.xlu0 %1575
  %1579 = vset.pattern.permute.xlu0 0
  %1580 = vperm.xlu0 %1579, %v1456
  %v1581 = vpop.permute.xlu0 %1580
  %1584 = vset.pattern.permute.xlu0 0
  %1585 = vperm.xlu0 %1584, %v1458
  %v1586 = vpop.permute.xlu0 %1585
  %1589 = vset.pattern.permute.xlu0 0
  %1590 = vperm.xlu0 %1589, %v1460
  %v1591 = vpop.permute.xlu0 %1590
  %1594 = vset.pattern.permute.xlu0 0
  %1595 = vperm.xlu0 %1594, %v1462
  %v1596 = vpop.permute.xlu0 %1595
  %1599 = vset.pattern.permute.xlu0 0
  %1600 = vperm.xlu0 %1599, %v1464
  %v1601 = vpop.permute.xlu0 %1600
  %1604 = vset.pattern.permute.xlu0 0
  %1605 = vperm.xlu0 %1604, %v1466
  %v1606 = vpop.permute.xlu0 %1605
  %1609 = vset.pattern.permute.xlu0 0
  %1610 = vperm.xlu0 %1609, %v1468
  %v1611 = vpop.permute.xlu0 %1610
  %1614 = vset.pattern.permute.xlu0 0
  %1615 = vperm.xlu0 %1614, %v1470
  %v1616 = vpop.permute.xlu0 %1615
  %1619 = vset.pattern.permute.xlu0 0
  %1620 = vperm.xlu0 %1619, %v1472
  %v1621 = vpop.permute.xlu0 %1620
  %1624 = vset.pattern.permute.xlu0 0
  %1625 = vperm.xlu0 %1624, %v1474
  %v1626 = vpop.permute.xlu0 %1625
  %1629 = vset.pattern.permute.xlu0 0
  %1630 = vperm.xlu0 %1629, %v1476
  %v1631 = vpop.permute.xlu0 %1630
  %1634 = vset.pattern.permute.xlu0 0
  %1635 = vperm.xlu0 %1634, %v1478
  %v1636 = vpop.permute.xlu0 %1635
  %1639 = vset.pattern.permute.xlu0 0
  %1640 = vperm.xlu0 %1639, %v1480
  %v1641 = vpop.permute.xlu0 %1640
  %1644 = vset.pattern.permute.xlu0 0
  %1645 = vperm.xlu0 %1644, %v1482
  %v1646 = vpop.permute.xlu0 %1645
  %1649 = vset.pattern.permute.xlu0 0
  %1650 = vperm.xlu0 %1649, %v1484
  %v1651 = vpop.permute.xlu0 %1650
  %1654 = vset.pattern.permute.xlu0 0
  %1655 = vperm.xlu0 %1654, %v1486
  %v1656 = vpop.permute.xlu0 %1655
  %1659 = vset.pattern.permute.xlu0 0
  %1660 = vperm.xlu0 %1659, %v1488
  %v1661 = vpop.permute.xlu0 %1660
  %1664 = vset.pattern.permute.xlu0 0
  %1665 = vperm.xlu0 %1664, %v1490
  %v1666 = vpop.permute.xlu0 %1665
  %1669 = vset.pattern.permute.xlu0 0
  %1670 = vperm.xlu0 %1669, %v1492
  %v1671 = vpop.permute.xlu0 %1670
  %1674 = vset.pattern.permute.xlu0 0
  %1675 = vperm.xlu0 %1674, %v1494
  %v1676 = vpop.permute.xlu0 %1675
  %1679 = vset.pattern.permute.xlu0 0
  %1680 = vperm.xlu0 %1679, %v1496
  %v1681 = vpop.permute.xlu0 %1680
  %1684 = vset.pattern.permute.xlu0 0
  %1685 = vperm.xlu0 %1684, %v1498
  %v1686 = vpop.permute.xlu0 %1685
  %1689 = vset.pattern.permute.xlu0 0
  %1690 = vperm.xlu0 %1689, %v1500
  %v1691 = vpop.permute.xlu0 %1690
  %1694 = vset.pattern.permute.xlu0 0
  %1695 = vperm.xlu0 %1694, %v1502
  %v1696 = vpop.permute.xlu0 %1695
  %1699 = vset.pattern.permute.xlu0 0
  %1700 = vperm.xlu0 %1699, %v1504
  %v1701 = vpop.permute.xlu0 %1700
  %1704 = vset.pattern.permute.xlu0 0
  %1705 = vperm.xlu0 %1704, %v1506
  %v1706 = vpop.permute.xlu0 %1705
  %1709 = vset.pattern.permute.xlu0 0
  %1710 = vperm.xlu0 %1709, %v1508
  %v1711 = vpop.permute.xlu0 %1710
  %1714 = vset.pattern.permute.xlu0 0
  %1715 = vperm.xlu0 %1714, %v1510
  %v1716 = vpop.permute.xlu0 %1715
  %1719 = vset.pattern.permute.xlu0 0
  %1720 = vperm.xlu0 %1719, %v1512
  %v1721 = vpop.permute.xlu0 %1720
  %1724 = vset.pattern.permute.xlu0 0
  %1725 = vperm.xlu0 %1724, %v1514
  %v1726 = vpop.permute.xlu0 %1725
  %1729 = vset.pattern.permute.xlu0 0
  %1730 = vperm.xlu0 %1729, %v1516
  %v1731 = vpop.permute.xlu0 %1730
  %1734 = vset.pattern.permute.xlu0 0
  %1735 = vperm.xlu0 %1734, %v1518
  %v1736 = vpop.permute.xlu0 %1735
  %1739 = vset.pattern.permute.xlu0 0
  %1740 = vperm.xlu0 %1739, %v1520
  %v1741 = vpop.permute.xlu0 %1740
  %1744 = vset.pattern.permute.xlu0 0
  %1745 = vperm.xlu0 %1744, %v1522
  %v1746 = vpop.permute.xlu0 %1745
  %1749 = vset.pattern.permute.xlu0 0
  %1750 = vperm.xlu0 %1749, %v1524
  %v1751 = vpop.permute.xlu0 %1750
  %1754 = vset.pattern.permute.xlu0 0
  %1755 = vperm.xlu0 %1754, %v1526
  %v1756 = vpop.permute.xlu0 %1755
  %1759 = vset.pattern.permute.xlu0 0
  %1760 = vperm.xlu0 %1759, %v1528
  %v1761 = vpop.permute.xlu0 %1760
  %1764 = vset.pattern.permute.xlu0 0
  %1765 = vperm.xlu0 %1764, %v1530
  %v1766 = vpop.permute.xlu0 %1765
  %1769 = vset.pattern.permute.xlu0 0
  %1770 = vperm.xlu0 %1769, %v1532
  %v1771 = vpop.permute.xlu0 %1770
  %1774 = vset.pattern.permute.xlu0 0
  %1775 = vperm.xlu0 %1774, %v1534
  %v1776 = vpop.permute.xlu0 %1775
  %1779 = vset.pattern.permute.xlu0 0
  %1780 = vperm.xlu0 %1779, %v1536
  %v1781 = vpop.permute.xlu0 %1780
  %1784 = vset.pattern.permute.xlu0 0
  %1785 = vperm.xlu0 %1784, %v1538
  %v1786 = vpop.permute.xlu0 %1785
  %v1788 = vmul.f32 %v1551, %v411
  %v1789 = vmul.f32 %v1556, %v412
  %v1790 = vmul.f32 %v1561, %v413
  %v1791 = vmul.f32 %v1566, %v414
  %v1792 = vmul.f32 %v1571, %v415
  %v1793 = vmul.f32 %v1576, %v416
  %v1794 = vmul.f32 %v1581, %v417
  %v1795 = vmul.f32 %v1586, %v418
  %v1796 = vmul.f32 %v1591, %v419
  %v1797 = vmul.f32 %v1596, %v420
  %v1798 = vmul.f32 %v1601, %v421
  %v1799 = vmul.f32 %v1606, %v422
  %v1800 = vmul.f32 %v1611, %v423
  %v1801 = vmul.f32 %v1616, %v424
  %v1802 = vmul.f32 %v1621, %v425
  %v1803 = vmul.f32 %v1626, %v426
  %v1804 = vmul.f32 %v1631, %v427
  %v1805 = vmul.f32 %v1636, %v428
  %v1806 = vmul.f32 %v1641, %v429
  %v1807 = vmul.f32 %v1646, %v430
  %v1808 = vmul.f32 %v1651, %v431
  %v1809 = vmul.f32 %v1656, %v432
  %v1810 = vmul.f32 %v1661, %v433
  %v1811 = vmul.f32 %v1666, %v434
  %v1812 = vmul.f32 %v1671, %v435
  %v1813 = vmul.f32 %v1676, %v436
  %v1814 = vmul.f32 %v1681, %v437
  %v1815 = vmul.f32 %v1686, %v438
  %v1816 = vmul.f32 %v1691, %v439
  %v1817 = vmul.f32 %v1696, %v440
  %v1818 = vmul.f32 %v1701, %v441
  %v1819 = vmul.f32 %v1706, %v442
  %v1820 = vmul.f32 %v1711, %v443
  %v1821 = vmul.f32 %v1716, %v444
  %v1822 = vmul.f32 %v1721, %v445
  %v1823 = vmul.f32 %v1726, %v446
  %v1824 = vmul.f32 %v1731, %v447
  %v1825 = vmul.f32 %v1736, %v448
  %v1826 = vmul.f32 %v1741, %v449
  %v1827 = vmul.f32 %v1746, %v450
  %v1828 = vmul.f32 %v1751, %v451
  %v1829 = vmul.f32 %v1756, %v452
  %v1830 = vmul.f32 %v1761, %v453
  %v1831 = vmul.f32 %v1766, %v454
  %v1832 = vmul.f32 %v1771, %v455
  %v1833 = vmul.f32 %v1776, %v456
  %v1834 = vmul.f32 %v1781, %v457
  %v1835 = vmul.f32 %v1786, %v458
  %1836 = vmatprep.subr.mxu0 0.0
  %1837 = vmatpush1.msra.mxu0 %v1788
  %1838 = vmatprep.subr.mxu0 0.0
  %1839 = vmatpush1.msra.mxu0 %v1789
  %1840 = vmatprep.subr.mxu0 0.0
  %1841 = vmatpush1.msra.mxu0 %v1790
  %1842 = vmatprep.subr.mxu0 0.0
  %1843 = vmatpush1.msra.mxu0 %v1791
  %1844 = vmatprep.subr.mxu0 0.0
  %1845 = vmatpush1.msra.mxu0 %v1792
  %1846 = vmatprep.subr.mxu0 0.0
  %1847 = vmatpush1.msra.mxu0 %v1793
  %1848 = vmatprep.subr.mxu0 0.0
  %1849 = vmatpush1.msra.mxu0 %v1794
  %1850 = vmatprep.subr.mxu0 0.0
  %1851 = vmatpush1.msra.mxu0 %v1795
  %1852 = vmatprep.subr.mxu0 0.0
  %1853 = vmatpush1.msra.mxu0 %v1796
  %1854 = vmatprep.subr.mxu0 0.0
  %1855 = vmatpush1.msra.mxu0 %v1797
  %1856 = vmatprep.subr.mxu0 0.0
  %1857 = vmatpush1.msra.mxu0 %v1798
  %1858 = vmatprep.subr.mxu0 0.0
  %1859 = vmatpush1.msra.mxu0 %v1799
  %1860 = vmatprep.subr.mxu0 0.0
  %1861 = vmatpush1.msra.mxu0 %v1800
  %1862 = vmatprep.subr.mxu0 0.0
  %1863 = vmatpush1.msra.mxu0 %v1801
  %1864 = vmatprep.subr.mxu0 0.0
  %1865 = vmatpush1.msra.mxu0 %v1802
  %1866 = vmatprep.subr.mxu0 0.0
  %1867 = vmatpush1.msra.mxu0 %v1803
  %1868 = vmatprep.subr.mxu0 0.0
  %1869 = vmatpush1.msra.mxu0 %v1804
  %1870 = vmatprep.subr.mxu0 0.0
  %1871 = vmatpush1.msra.mxu0 %v1805
  %1872 = vmatprep.subr.mxu0 0.0
  %1873 = vmatpush1.msra.mxu0 %v1806
  %1874 = vmatprep.subr.mxu0 0.0
  %1875 = vmatpush1.msra.mxu0 %v1807
  %1876 = vmatprep.subr.mxu0 0.0
  %1877 = vmatpush1.msra.mxu0 %v1808
  %1878 = vmatprep.subr.mxu0 0.0
  %1879 = vmatpush1.msra.mxu0 %v1809
  %1880 = vmatprep.subr.mxu0 0.0
  %1881 = vmatpush1.msra.mxu0 %v1810
  %1882 = vmatprep.subr.mxu0 0.0
  %1883 = vmatpush1.msra.mxu0 %v1811
  %1884 = vmatprep.subr.mxu0 0.0
  %1885 = vmatpush1.msra.mxu0 %v1812
  %1886 = vmatprep.subr.mxu0 0.0
  %1887 = vmatpush1.msra.mxu0 %v1813
  %1888 = vmatprep.subr.mxu0 0.0
  %1889 = vmatpush1.msra.mxu0 %v1814
  %1890 = vmatprep.subr.mxu0 0.0
  %1891 = vmatpush1.msra.mxu0 %v1815
  %1892 = vmatprep.subr.mxu0 0.0
  %1893 = vmatpush1.msra.mxu0 %v1816
  %1894 = vmatprep.subr.mxu0 0.0
  %1895 = vmatpush1.msra.mxu0 %v1817
  %1896 = vmatprep.subr.mxu0 0.0
  %1897 = vmatpush1.msra.mxu0 %v1818
  %1898 = vmatprep.subr.mxu0 0.0
  %1899 = vmatpush1.msra.mxu0 %v1819
  %1900 = vmatprep.mubr.f32.mxu0 %v1540
  %1901 = vmatmul.mubr.f32.gmra.mrb[0].mxu0 %v1539
  %v1902 = vpop.f32.mrb[0].mxu0
  %v1903 = vadd.f32 0.0, %v1902
  %v1904 = vpop.f32.mrb[0].mxu0
  %1905 = vmatprep.mubr.f32.mxu0 %v1543
  %1906 = vmatmul.mubr.f32.gmra.mrb[0].mxu0 %v1542
  %v1907 = vpop.f32.mrb[0].mxu0
  %v1908 = vadd.f32 0.0, %v1907
  %v1909 = vpop.f32.mrb[0].mxu0
  %1910 = vmatprep.mubr.f32.mxu0 %v1546
  %1911 = vmatmul.mubr.f32.gmra.mrb[0].mxu0 %v1545
  %v1912 = vpop.f32.mrb[0].mxu0
  %v1913 = vadd.f32 0.0, %v1912
  %v1914 = vpop.f32.mrb[0].mxu0
  %1915 = vdwg.mxu0
  %1916 = vmatprep.subr.mxu0 0.0
  %1917 = vmatpush1.msra.mxu0 %v1820
  %1918 = vmatprep.subr.mxu0 0.0
  %1919 = vmatpush1.msra.mxu0 %v1821
  %1920 = vmatprep.subr.mxu0 0.0
  %1921 = vmatpush1.msra.mxu0 %v1822
  %1922 = vmatprep.subr.mxu0 0.0
  %1923 = vmatpush1.msra.mxu0 %v1823
  %1924 = vmatprep.subr.mxu0 0.0
  %1925 = vmatpush1.msra.mxu0 %v1824
  %1926 = vmatprep.subr.mxu0 0.0
  %1927 = vmatpush1.msra.mxu0 %v1825
  %1928 = vmatprep.subr.mxu0 0.0
  %1929 = vmatpush1.msra.mxu0 %v1826
  %1930 = vmatprep.subr.mxu0 0.0
  %1931 = vmatpush1.msra.mxu0 %v1827
  %1932 = vmatprep.subr.mxu0 0.0
  %1933 = vmatpush1.msra.mxu0 %v1828
  %1934 = vmatprep.subr.mxu0 0.0
  %1935 = vmatpush1.msra.mxu0 %v1829
  %1936 = vmatprep.subr.mxu0 0.0
  %1937 = vmatpush1.msra.mxu0 %v1830
  %1938 = vmatprep.subr.mxu0 0.0
  %1939 = vmatpush1.msra.mxu0 %v1831
  %1940 = vmatprep.subr.mxu0 0.0
  %1941 = vmatpush1.msra.mxu0 %v1832
  %1942 = vmatprep.subr.mxu0 0.0
  %1943 = vmatpush1.msra.mxu0 %v1833
  %1944 = vmatprep.subr.mxu0 0.0
  %1945 = vmatpush1.msra.mxu0 %v1834
  %1946 = vmatprep.subr.mxu0 0.0
  %1947 = vmatpush1.msra.mxu0 %v1835
  %1948 = vmatprep.subr.mxu0 0.0
  %1949 = vmatpush1.msra.mxu0 0.0
  %1950 = vmatprep.subr.mxu0 0.0
  %1951 = vmatpush1.msra.mxu0 0.0
  %1952 = vmatprep.subr.mxu0 0.0
  %1953 = vmatpush1.msra.mxu0 0.0
  %1954 = vmatprep.subr.mxu0 0.0
  %1955 = vmatpush1.msra.mxu0 0.0
  %1956 = vmatprep.subr.mxu0 0.0
  %1957 = vmatpush1.msra.mxu0 0.0
  %1958 = vmatprep.subr.mxu0 0.0
  %1959 = vmatpush1.msra.mxu0 0.0
  %1960 = vmatprep.subr.mxu0 0.0
  %1961 = vmatpush1.msra.mxu0 0.0
  %1962 = vmatprep.subr.mxu0 0.0
  %1963 = vmatpush1.msra.mxu0 0.0
  %1964 = vmatprep.subr.mxu0 0.0
  %1965 = vmatpush1.msra.mxu0 0.0
  %1966 = vmatprep.subr.mxu0 0.0
  %1967 = vmatpush1.msra.mxu0 0.0
  %1968 = vmatprep.subr.mxu0 0.0
  %1969 = vmatpush1.msra.mxu0 0.0
  %1970 = vmatprep.subr.mxu0 0.0
  %1971 = vmatpush1.msra.mxu0 0.0
  %1972 = vmatprep.subr.mxu0 0.0
  %1973 = vmatpush1.msra.mxu0 0.0
  %1974 = vmatprep.subr.mxu0 0.0
  %1975 = vmatpush1.msra.mxu0 0.0
  %1976 = vmatprep.subr.mxu0 0.0
  %1977 = vmatpush1.msra.mxu0 0.0
  %1978 = vmatprep.subr.mxu0 0.0
  %1979 = vmatpush1.msra.mxu0 0.0
  %1980 = vmatprep.mubr.f32.mxu0 0.0
  %1981 = vmatmul.mubr.f32.gmra.mrb[0].mxu0 %v1541
  %v1982 = vpop.f32.mrb[0].mxu0
  %v1983 = vadd.f32 %v1903, %v1982
  %v1984 = vpop.f32.mrb[0].mxu0
  %1985 = vmatprep.mubr.f32.mxu0 0.0
  %1986 = vmatmul.mubr.f32.gmra.mrb[0].mxu0 %v1544
  %v1987 = vpop.f32.mrb[0].mxu0
  %v1988 = vadd.f32 %v1908, %v1987
  %v1989 = vpop.f32.mrb[0].mxu0
  %1990 = vmatprep.mubr.f32.mxu0 0.0
  %1991 = vmatmul.mubr.f32.gmra.mrb[0].mxu0 %v1547
  %v1992 = vpop.f32.mrb[0].mxu0
  %v1993 = vadd.f32 %v1913, %v1992
  %v1994 = vpop.f32.mrb[0].mxu0
  %1995 = vdwg.mxu0
  %1996 = vmatprep.subr.mxu0 0.0
  %1997 = vmatpush1.msra.mxu0 %v1444
  %1998 = vmatprep.subr.mxu0 0.0
  %1999 = vmatpush1.msra.mxu0 %v1446
  %2000 = vmatprep.subr.mxu0 0.0
  %2001 = vmatpush1.msra.mxu0 %v1448
  %2002 = vmatprep.subr.mxu0 0.0
  %2003 = vmatpush1.msra.mxu0 %v1450
  %2004 = vmatprep.subr.mxu0 0.0
  %2005 = vmatpush1.msra.mxu0 %v1452
  %2006 = vmatprep.subr.mxu0 0.0
  %2007 = vmatpush1.msra.mxu0 %v1454
  %2008 = vmatprep.subr.mxu0 0.0
  %2009 = vmatpush1.msra.mxu0 %v1456
  %2010 = vmatprep.subr.mxu0 0.0
  %2011 = vmatpush1.msra.mxu0 %v1458
  %2012 = vmatprep.subr.mxu0 0.0
  %2013 = vmatpush1.msra.mxu0 %v1460
  %2014 = vmatprep.subr.mxu0 0.0
  %2015 = vmatpush1.msra.mxu0 %v1462
  %2016 = vmatprep.subr.mxu0 0.0
  %2017 = vmatpush1.msra.mxu0 %v1464
  %2018 = vmatprep.subr.mxu0 0.0
  %2019 = vmatpush1.msra.mxu0 %v1466
  %2020 = vmatprep.subr.mxu0 0.0
  %2021 = vmatpush1.msra.mxu0 %v1468
  %2022 = vmatprep.subr.mxu0 0.0
  %2023 = vmatpush1.msra.mxu0 %v1470
  %2024 = vmatprep.subr.mxu0 0.0
  %2025 = vmatpush1.msra.mxu0 %v1472
  %2026 = vmatprep.subr.mxu0 0.0
  %2027 = vmatpush1.msra.mxu0 %v1474
  %2028 = vmatprep.subr.mxu0 0.0
  %2029 = vmatpush1.msra.mxu0 %v1476
  %2030 = vmatprep.subr.mxu0 0.0
  %2031 = vmatpush1.msra.mxu0 %v1478
  %2032 = vmatprep.subr.mxu0 0.0
  %2033 = vmatpush1.msra.mxu0 %v1480
  %2034 = vmatprep.subr.mxu0 0.0
  %2035 = vmatpush1.msra.mxu0 %v1482
  %2036 = vmatprep.subr.mxu0 0.0
  %2037 = vmatpush1.msra.mxu0 %v1484
  %2038 = vmatprep.subr.mxu0 0.0
  %2039 = vmatpush1.msra.mxu0 %v1486
  %2040 = vmatprep.subr.mxu0 0.0
  %2041 = vmatpush1.msra.mxu0 %v1488
  %2042 = vmatprep.subr.mxu0 0.0
  %2043 = vmatpush1.msra.mxu0 %v1490
  %2044 = vmatprep.subr.mxu0 0.0
  %2045 = vmatpush1.msra.mxu0 %v1492
  %2046 = vmatprep.subr.mxu0 0.0
  %2047 = vmatpush1.msra.mxu0 %v1494
  %2048 = vmatprep.subr.mxu0 0.0
  %2049 = vmatpush1.msra.mxu0 %v1496
  %2050 = vmatprep.subr.mxu0 0.0
  %2051 = vmatpush1.msra.mxu0 %v1498
  %2052 = vmatprep.subr.mxu0 0.0
  %2053 = vmatpush1.msra.mxu0 %v1500
  %2054 = vmatprep.subr.mxu0 0.0
  %2055 = vmatpush1.msra.mxu0 %v1502
  %2056 = vmatprep.subr.mxu0 0.0
  %2057 = vmatpush1.msra.mxu0 %v1504
  %2058 = vmatprep.subr.mxu0 0.0
  %2059 = vmatpush1.msra.mxu0 %v1506
  %2060 = vmatprep.mubr.f32.mxu0 %v1540
  %2061 = vmatmul.mubr.f32.gmra.mrb[0].mxu0 %v1539
  %v2062 = vpop.f32.mrb[0].mxu0
  %v2063 = vadd.f32 0.0, %v2062
  %v2064 = vpop.f32.mrb[0].mxu0
  %2065 = vmatprep.mubr.f32.mxu0 %v1543
  %2066 = vmatmul.mubr.f32.gmra.mrb[0].mxu0 %v1542
  %v2067 = vpop.f32.mrb[0].mxu0
  %v2068 = vadd.f32 0.0, %v2067
  %v2069 = vpop.f32.mrb[0].mxu0
  %2070 = vmatprep.mubr.f32.mxu0 %v1546
  %2071 = vmatmul.mubr.f32.gmra.mrb[0].mxu0 %v1545
  %v2072 = vpop.f32.mrb[0].mxu0
  %v2073 = vadd.f32 0.0, %v2072
  %v2074 = vpop.f32.mrb[0].mxu0
  %2075 = vdwg.mxu0
  %2076 = vmatprep.subr.mxu0 0.0
  %2077 = vmatpush1.msra.mxu0 %v1508
  %2078 = vmatprep.subr.mxu0 0.0
  %2079 = vmatpush1.msra.mxu0 %v1510
  %2080 = vmatprep.subr.mxu0 0.0
  %2081 = vmatpush1.msra.mxu0 %v1512
  %2082 = vmatprep.subr.mxu0 0.0
  %2083 = vmatpush1.msra.mxu0 %v1514
  %2084 = vmatprep.subr.mxu0 0.0
  %2085 = vmatpush1.msra.mxu0 %v1516
  %2086 = vmatprep.subr.mxu0 0.0
  %2087 = vmatpush1.msra.mxu0 %v1518
  %2088 = vmatprep.subr.mxu0 0.0
  %2089 = vmatpush1.msra.mxu0 %v1520
  %2090 = vmatprep.subr.mxu0 0.0
  %2091 = vmatpush1.msra.mxu0 %v1522
  %2092 = vmatprep.subr.mxu0 0.0
  %2093 = vmatpush1.msra.mxu0 %v1524
  %2094 = vmatprep.subr.mxu0 0.0
  %2095 = vmatpush1.msra.mxu0 %v1526
  %2096 = vmatprep.subr.mxu0 0.0
  %2097 = vmatpush1.msra.mxu0 %v1528
  %2098 = vmatprep.subr.mxu0 0.0
  %2099 = vmatpush1.msra.mxu0 %v1530
  %2100 = vmatprep.subr.mxu0 0.0
  %2101 = vmatpush1.msra.mxu0 %v1532
  %2102 = vmatprep.subr.mxu0 0.0
  %2103 = vmatpush1.msra.mxu0 %v1534
  %2104 = vmatprep.subr.mxu0 0.0
  %2105 = vmatpush1.msra.mxu0 %v1536
  %2106 = vmatprep.subr.mxu0 0.0
  %2107 = vmatpush1.msra.mxu0 %v1538
  %2108 = vmatprep.subr.mxu0 0.0
  %2109 = vmatpush1.msra.mxu0 0.0
  %2110 = vmatprep.subr.mxu0 0.0
  %2111 = vmatpush1.msra.mxu0 0.0
  %2112 = vmatprep.subr.mxu0 0.0
  %2113 = vmatpush1.msra.mxu0 0.0
  %2114 = vmatprep.subr.mxu0 0.0
  %2115 = vmatpush1.msra.mxu0 0.0
  %2116 = vmatprep.subr.mxu0 0.0
  %2117 = vmatpush1.msra.mxu0 0.0
  %2118 = vmatprep.subr.mxu0 0.0
  %2119 = vmatpush1.msra.mxu0 0.0
  %2120 = vmatprep.subr.mxu0 0.0
  %2121 = vmatpush1.msra.mxu0 0.0
  %2122 = vmatprep.subr.mxu0 0.0
  %2123 = vmatpush1.msra.mxu0 0.0
  %2124 = vmatprep.subr.mxu0 0.0
  %2125 = vmatpush1.msra.mxu0 0.0
  %2126 = vmatprep.subr.mxu0 0.0
  %2127 = vmatpush1.msra.mxu0 0.0
  %2128 = vmatprep.subr.mxu0 0.0
  %2129 = vmatpush1.msra.mxu0 0.0
  %2130 = vmatprep.subr.mxu0 0.0
  %2131 = vmatpush1.msra.mxu0 0.0
  %2132 = vmatprep.subr.mxu0 0.0
  %2133 = vmatpush1.msra.mxu0 0.0
  %2134 = vmatprep.subr.mxu0 0.0
  %2135 = vmatpush1.msra.mxu0 0.0
  %2136 = vmatprep.subr.mxu0 0.0
  %2137 = vmatpush1.msra.mxu0 0.0
  %2138 = vmatprep.subr.mxu0 0.0
  %2139 = vmatpush1.msra.mxu0 0.0
  %2140 = vmatprep.mubr.f32.mxu0 0.0
  %2141 = vmatmul.mubr.f32.gmra.mrb[0].mxu0 %v1541
  %v2142 = vpop.f32.mrb[0].mxu0
  %v2143 = vadd.f32 %v2063, %v2142
  %v2144 = vpop.f32.mrb[0].mxu0
  %2145 = vmatprep.mubr.f32.mxu0 0.0
  %2146 = vmatmul.mubr.f32.gmra.mrb[0].mxu0 %v1544
  %v2147 = vpop.f32.mrb[0].mxu0
  %v2148 = vadd.f32 %v2068, %v2147
  %v2149 = vpop.f32.mrb[0].mxu0
  %2150 = vmatprep.mubr.f32.mxu0 0.0
  %2151 = vmatmul.mubr.f32.gmra.mrb[0].mxu0 %v1547
  %v2152 = vpop.f32.mrb[0].mxu0
  %v2153 = vadd.f32 %v2073, %v2152
  %v2154 = vpop.f32.mrb[0].mxu0
  %2155 = vdwg.mxu0
  %v2156 = vrcp.pop %v2143
  %v2157 = vrcp.pop %v2148
  %v2158 = vrcp.pop %v2153
  %2160 = vset.pattern.permute.xlu0 0
  %2161 = vperm.xlu0 %2160, %v2156
  %v2162 = vpop.permute.xlu0 %2161
  %2165 = vset.pattern.permute.xlu0 0
  %2166 = vperm.xlu0 %2165, %v2157
  %v2167 = vpop.permute.xlu0 %2166
  %2170 = vset.pattern.permute.xlu0 0
  %2171 = vperm.xlu0 %2170, %v2158
  %v2172 = vpop.permute.xlu0 %2171
  %v2174 = vmul.f32 %v1983, %v2162
  %v2175 = vmul.f32 %v1988, %v2167
  %v2176 = vmul.f32 %v1993, %v2172
  %v2177 = vld [vmem:[%s1] sm:$0xff]
  %v2178 = vld [vmem:[%s1 + $0x8] sm:$0xff]
  %v2179 = vld [vmem:[%s1 + $0x10] sm:$0xff]
  %v2180 = vld [vmem:[%s8] sm:$0xff]
  %v2181 = vld [vmem:[%s8 + $0x8] sm:$0xff]
  %v2182 = vld [vmem:[%s8 + $0x10] sm:$0xff]
  %v2183 = vld [vmem:[%s8 + $0x18] sm:$0xff]
  %v2184 = vld [vmem:[%s9] sm:$0x1]
  %v2186 = vlaneseq
  %v2187 = vshrl.u32 %v2186, 7
  %v2188 = vsub.s32 0, %v2187
  %v2189 = vrot.slane %v2184, %v2188
  %v2192 = vsel %vm839, %v2177, 0
  %v2195 = vsel %vm839, %v2178, 0
  %v2198 = vsel %vm839, %v2179, 0
  %2200 = vmatprep.subr.mxu0 0.0
  %2201 = vmatpush1.msra.mxu0 %v2180
  %2202 = vmatprep.subr.mxu0 0.0
  %2203 = vmatpush1.msra.mxu0 %v2181
  %2204 = vmatprep.subr.mxu0 0.0
  %2205 = vmatpush1.msra.mxu0 %v2182
  %2206 = vmatprep.subr.mxu0 0.0
  %2207 = vmatpush1.msra.mxu0 %v2183
  %2208 = vmatprep.subr.mxu0 0.0
  %2209 = vmatpush1.msra.mxu0 0.0
  %2210 = vmatprep.subr.mxu0 0.0
  %2211 = vmatpush1.msra.mxu0 0.0
  %2212 = vmatprep.subr.mxu0 0.0
  %2213 = vmatpush1.msra.mxu0 0.0
  %2214 = vmatprep.subr.mxu0 0.0
  %2215 = vmatpush1.msra.mxu0 0.0
  %2216 = vmatprep.subr.mxu0 0.0
  %2217 = vmatpush1.msra.mxu0 0.0
  %2218 = vmatprep.subr.mxu0 0.0
  %2219 = vmatpush1.msra.mxu0 0.0
  %2220 = vmatprep.subr.mxu0 0.0
  %2221 = vmatpush1.msra.mxu0 0.0
  %2222 = vmatprep.subr.mxu0 0.0
  %2223 = vmatpush1.msra.mxu0 0.0
  %2224 = vmatprep.subr.mxu0 0.0
  %2225 = vmatpush1.msra.mxu0 0.0
  %2226 = vmatprep.subr.mxu0 0.0
  %2227 = vmatpush1.msra.mxu0 0.0
  %2228 = vmatprep.subr.mxu0 0.0
  %2229 = vmatpush1.msra.mxu0 0.0
  %2230 = vmatprep.subr.mxu0 0.0
  %2231 = vmatpush1.msra.mxu0 0.0
  %2232 = vmatprep.subr.mxu0 0.0
  %2233 = vmatpush1.msra.mxu0 0.0
  %2234 = vmatprep.subr.mxu0 0.0
  %2235 = vmatpush1.msra.mxu0 0.0
  %2236 = vmatprep.subr.mxu0 0.0
  %2237 = vmatpush1.msra.mxu0 0.0
  %2238 = vmatprep.subr.mxu0 0.0
  %2239 = vmatpush1.msra.mxu0 0.0
  %2240 = vmatprep.subr.mxu0 0.0
  %2241 = vmatpush1.msra.mxu0 0.0
  %2242 = vmatprep.subr.mxu0 0.0
  %2243 = vmatpush1.msra.mxu0 0.0
  %2244 = vmatprep.subr.mxu0 0.0
  %2245 = vmatpush1.msra.mxu0 0.0
  %2246 = vmatprep.subr.mxu0 0.0
  %2247 = vmatpush1.msra.mxu0 0.0
  %2248 = vmatprep.subr.mxu0 0.0
  %2249 = vmatpush1.msra.mxu0 0.0
  %2250 = vmatprep.subr.mxu0 0.0
  %2251 = vmatpush1.msra.mxu0 0.0
  %2252 = vmatprep.subr.mxu0 0.0
  %2253 = vmatpush1.msra.mxu0 0.0
  %2254 = vmatprep.subr.mxu0 0.0
  %2255 = vmatpush1.msra.mxu0 0.0
  %2256 = vmatprep.subr.mxu0 0.0
  %2257 = vmatpush1.msra.mxu0 0.0
  %2258 = vmatprep.subr.mxu0 0.0
  %2259 = vmatpush1.msra.mxu0 0.0
  %2260 = vmatprep.subr.mxu0 0.0
  %2261 = vmatpush1.msra.mxu0 0.0
  %2262 = vmatprep.subr.mxu0 0.0
  %2263 = vmatpush1.msra.mxu0 0.0
  %2264 = vmatprep.mubr.f32.mxu0 0.0
  %2265 = vmatmul.mubr.f32.gmra.mrb[0].mxu0 %v2192
  %v2266 = vpop.f32.mrb[0].mxu0
  %v2267 = vadd.f32 %v2189, %v2266
  %v2268 = vpop.f32.mrb[0].mxu0
  %2269 = vmatprep.mubr.f32.mxu0 0.0
  %2270 = vmatmul.mubr.f32.gmra.mrb[0].mxu0 %v2195
  %v2271 = vpop.f32.mrb[0].mxu0
  %v2272 = vadd.f32 %v2189, %v2271
  %v2273 = vpop.f32.mrb[0].mxu0
  %2274 = vmatprep.mubr.f32.mxu0 0.0
  %2275 = vmatmul.mubr.f32.gmra.mrb[0].mxu0 %v2198
  %v2276 = vpop.f32.mrb[0].mxu0
  %v2277 = vadd.f32 %v2189, %v2276
  %v2278 = vpop.f32.mrb[0].mxu0
  %2279 = vdwg.mxu0
  %v2280 = vadd.f32 %v2174, %v2267
  %v2281 = vadd.f32 %v2175, %v2272
  %v2282 = vadd.f32 %v2176, %v2277
  %2283 = vst [vmem:[%s10] sm:$0xff] %v2280
  %2284 = vst [vmem:[%s10 + $0x8] sm:$0xff] %v2281
  %2285 = vst [vmem:[%s10 + $0x10] sm:$0xff] %v2282
  // Predicated region
  $region42: #{lstur_forward.2} parent=0 // pred_check
    _
  $region43: #{lstur_forward.2} parent=0 // pred_check_branch
    %2287 = sbr.rel (0) target = $region45
  $region44: #{lstur_forward.2} parent=0 // pred_region
    _
  $region45: #{lstur_forward.2} parent=0 // pred_fallthru
    _
  // Predicated region
  $region46: #{lstur_forward.2} parent=0 // pred_check
    _
  $region47: #{lstur_forward.2} parent=0 // pred_check_branch
    %2289 = sbr.rel (0) target = $region49
  $region48: #{lstur_forward.2} parent=0 // pred_region
    _
  $region49: #{lstur_forward.2} parent=0 // pred_fallthru
    _

// kernel: lstur_forward.3
$region0: #{lstur_forward.3}
  #allocation0 [shape = 'u32[]', space=smem, size = 0x4, offset = 0x4, fixed_abs, tag = 'smem constant byte address 0x4 - core index']
  #allocation1 [shape = 'u32[144,128]{1,0:T(1,128)}', space=vmem, size = 0x12000, scoped, tag = 'internal scratch']
  #allocation2 [shape = 'f32[32,128]{1,0:T(8,128)}', space=vmem, size = 0x4000, scoped, tag = 'scratch operand']
  #allocation3 [shape = 'f32[8,2,128]{2,1,0:T(2,128)}', space=vmem, size = 0x2000, scoped, tag = 'scratch operand']
  #allocation4 [shape = 'f32[8,128]{1,0:T(8,128)}', space=vmem, size = 0x1000, scoped, tag = 'scratch operand']
  %s0 = inlined_call_operand.vmem [shape: s32[8], index: 0, kind: input, shape index: {}]
  %s1 = inlined_call_operand.vmem [shape: s32[8,4], index: 1, kind: input, shape index: {}]
  %s2 = inlined_call_operand.vmem [shape: s32[8,2], index: 2, kind: input, shape index: {}]
  %s3 = inlined_call_operand.vmem [shape: f32[24,128], index: 3, kind: input, shape index: {}]
  %s4 = inlined_call_operand.vmem [shape: f32[8,128], index: 4, kind: input, shape index: {}]
  %s5 = inlined_call_operand.vmem [shape: f32[128,384], index: 5, kind: input, shape index: {}]
  %s6 = inlined_call_operand.vmem [shape: f32[128,384], index: 6, kind: input, shape index: {}]
  %s7 = inlined_call_operand.vmem [shape: f32[1,384], index: 7, kind: input, shape index: {}]
  %s8 = inlined_call_operand.vmem [shape: f32[1,384], index: 8, kind: input, shape index: {}]
  %s9 = inlined_call_operand.vmem [shape: f32[8,2], index: 9, kind: output, shape index: {}]
  %s10 = sld [smem:[#allocation0]]
  $region58: #{lstur_forward.3} parent=0
    _
  %s12 = ssub.s32 1, %s10
  %s13 = scalar_select 0, %s12, %s10
  $region1: #{lstur_forward.3} parent=0
    #allocation5 [shape = 'u8[512]{0}', space=smem, size = 0x200, scoped, tag = 'input window, operand 0, single buffered']
    #allocation6 [shape = 's32[1]{0}', space=sflag, size = 0x4, scoped, tag = 'scoped memory for lstur_forward.3']
    #allocation7 [shape = 'u8[4096]{0}', space=smem, size = 0x1000, scoped, tag = 'input window, operand 1, single buffered']
    #allocation8 [shape = 's32[1]{0}', space=sflag, size = 0x4, scoped, tag = 'scoped memory for lstur_forward.3']
    #allocation9 [shape = 'u8[4096]{0}', space=smem, size = 0x1000, scoped, tag = 'input window, operand 2, single buffered']
    %14 = vsyncpa [#allocation6], 0
    %15 = vsyncpa [#allocation8], 0
    // Predicated region
    $region2: #{lstur_forward.3} parent=1 // pred_check
      _
    $region3: #{lstur_forward.3} parent=1 // pred_check_branch
      %17 = sbr.rel (0) target = $region5
    $region4: #{lstur_forward.3} parent=1 // pred_region
      %s19 = ssub.s32 16, 16
      %20 = vsyncadd [#allocation6], %s19
      %s22 = sshll.u32 %s0, 4
      %s23 = int_to_ptr.vmem [resolvable:$true] %s22
      %25 = dma.vmem_to_smem %s23, 16, [#allocation5], [#allocation6]
    $region5: #{lstur_forward.3} parent=1 // pred_fallthru
      _
    // Predicated region
    $region6: #{lstur_forward.3} parent=1 // pred_check
      _
    $region7: #{lstur_forward.3} parent=1 // pred_check_branch
      %27 = sbr.rel (0) target = $region9
    $region8: #{lstur_forward.3} parent=1 // pred_region
      %s29 = ssub.s32 128, 128
      %30 = vsyncadd [#allocation8], %s29
      %s32 = sshll.u32 %s1, 4
      %s33 = int_to_ptr.vmem [resolvable:$true] %s32
      %35 = dma.vmem_to_smem %s33, 128, [#allocation7], [#allocation8]
    $region9: #{lstur_forward.3} parent=1 // pred_fallthru
      _
    // Predicated region
    $region10: #{lstur_forward.3} parent=1 // pred_check
      _
    $region11: #{lstur_forward.3} parent=1 // pred_check_branch
      %37 = sbr.rel (0) target = $region13
    $region12: #{lstur_forward.3} parent=1 // pred_region
      %s39 = ssub.s32 128, 128
      %40 = vsyncadd [#allocation8], %s39
      %s42 = sshll.u32 %s2, 4
      %s43 = int_to_ptr.vmem [resolvable:$true] %s42
      %45 = dma.vmem_to_smem %s43, 128, [#allocation9], [#allocation8]
    $region13: #{lstur_forward.3} parent=1 // pred_fallthru
      _
    // Predicated region
    $region14: #{lstur_forward.3} parent=1 // pred_check
      _
    $region15: #{lstur_forward.3} parent=1 // pred_check_branch
      %47 = sbr.rel (0) target = $region17
    $region16: #{lstur_forward.3} parent=1 // pred_region
      _
    $region17: #{lstur_forward.3} parent=1 // pred_fallthru
      _
    // Predicated region
    $region18: #{lstur_forward.3} parent=1 // pred_check
      _
    $region19: #{lstur_forward.3} parent=1 // pred_check_branch
      %49 = sbr.rel (0) target = $region21
    $region20: #{lstur_forward.3} parent=1 // pred_region
      _
    $region21: #{lstur_forward.3} parent=1 // pred_fallthru
      _
    // Predicated region
    $region22: #{lstur_forward.3} parent=1 // pred_check
      _
    $region23: #{lstur_forward.3} parent=1 // pred_check_branch
      %51 = sbr.rel (0) target = $region25
    $region24: #{lstur_forward.3} parent=1 // pred_region
      _
    $region25: #{lstur_forward.3} parent=1 // pred_fallthru
      _
    // Predicated region
    $region26: #{lstur_forward.3} parent=1 // pred_check
      _
    $region27: #{lstur_forward.3} parent=1 // pred_check_branch
      %53 = sbr.rel (0) target = $region29
    $region28: #{lstur_forward.3} parent=1 // pred_region
      _
    $region29: #{lstur_forward.3} parent=1 // pred_fallthru
      _
    // Predicated region
    $region30: #{lstur_forward.3} parent=1 // pred_check
      _
    $region31: #{lstur_forward.3} parent=1 // pred_check_branch
      %55 = sbr.rel (0) target = $region33
    $region32: #{lstur_forward.3} parent=1 // pred_region
      _
    $region33: #{lstur_forward.3} parent=1 // pred_fallthru
      _
    // Predicated region
    $region34: #{lstur_forward.3} parent=1 // pred_check
      _
    $region35: #{lstur_forward.3} parent=1 // pred_check_branch
      %57 = sbr.rel (0) target = $region37
    $region36: #{lstur_forward.3} parent=1 // pred_region
      _
    $region37: #{lstur_forward.3} parent=1 // pred_fallthru
      _
    // Predicated region
    $region38: #{lstur_forward.3} parent=1 // pred_check
      _
    $region39: #{lstur_forward.3} parent=1 // pred_check_branch
      %59 = sbr.rel (0) target = $region41
    $region40: #{lstur_forward.3} parent=1 // pred_region
      %60 = dma.done [#allocation6], 16
    $region41: #{lstur_forward.3} parent=1 // pred_fallthru
      _
    // Predicated region
    $region42: #{lstur_forward.3} parent=1 // pred_check
      _
    $region43: #{lstur_forward.3} parent=1 // pred_check_branch
      %62 = sbr.rel (0) target = $region45
    $region44: #{lstur_forward.3} parent=1 // pred_region
      %63 = dma.done [#allocation8], 128
    $region45: #{lstur_forward.3} parent=1 // pred_fallthru
      _
    // Predicated region
    $region46: #{lstur_forward.3} parent=1 // pred_check
      _
    $region47: #{lstur_forward.3} parent=1 // pred_check_branch
      %65 = sbr.rel (0) target = $region49
    $region48: #{lstur_forward.3} parent=1 // pred_region
      %66 = dma.done [#allocation8], 128
    $region49: #{lstur_forward.3} parent=1 // pred_fallthru
      _
    %67 = sfence
    %s68 = sld [smem:[#allocation5]]
    %s69 = scalar_lea.vmem %s4, %s68
    %v70 = vld [vmem:[%s69] sm:$0x1]
    %71 = vst [vmem:[#allocation4] sm:$0x1] %v70
    %s72 = sld [smem:[#allocation7]]
    %s73 = scalar_lea.vmem %s3, %s72
    %v74 = vld [vmem:[%s73] sm:$0x1]
    %75 = vst [vmem:[#allocation2] sm:$0x1] %v74
    %s76 = sld [smem:[#allocation7 + $0x1]]
    %s77 = scalar_lea.vmem %s3, %s76
    %v78 = vld [vmem:[%s77] sm:$0x1]
    %79 = vst [vmem:[#allocation2 + $0x8] sm:$0x1] %v78
    %s80 = sld [smem:[#allocation7 + $0x2]]
    %s81 = scalar_lea.vmem %s3, %s80
    %v82 = vld [vmem:[%s81] sm:$0x1]
    %83 = vst [vmem:[#allocation2 + $0x10] sm:$0x1] %v82
    %s84 = sld [smem:[#allocation7 + $0x3]]
    %s85 = scalar_lea.vmem %s3, %s84
    %v86 = vld [vmem:[%s85] sm:$0x1]
    %87 = vst [vmem:[#allocation2 + $0x18] sm:$0x1] %v86
    %s88 = sld [smem:[#allocation9]]
    %s89 = scalar_lea.vmem %s3, %s88
    %v90 = vld [vmem:[%s89] sm:$0x1]
    %91 = vst [vmem:[#allocation3] sm:$0x1] %v90
    %s92 = sld [smem:[#allocation9 + $0x1]]
    %s93 = scalar_lea.vmem %s3, %s92
    %v94 = vld [vmem:[%s93] sm:$0x1]
    %95 = vst [vmem:[#allocation3 + $0x1] sm:$0x1] %v94
    %s96 = sld [smem:[#allocation5 + $0x1]]
    %s97 = scalar_lea.vmem %s4, %s96
    %v98 = vld [vmem:[%s97] sm:$0x1]
    %99 = vst [vmem:[#allocation4 + $0x1] sm:$0x1] %v98
    %s100 = sld [smem:[#allocation7 + $0x80]]
    %s101 = scalar_lea.vmem %s3, %s100
    %v102 = vld [vmem:[%s101] sm:$0x1]
    %103 = vst [vmem:[#allocation2 + $0x1] sm:$0x1] %v102
    %s104 = sld [smem:[#allocation7 + $0x81]]
    %s105 = scalar_lea.vmem %s3, %s104
    %v106 = vld [vmem:[%s105] sm:$0x1]
    %107 = vst [vmem:[#allocation2 + $0x9] sm:$0x1] %v106
    %s108 = sld [smem:[#allocation7 + $0x82]]
    %s109 = scalar_lea.vmem %s3, %s108
    %v110 = vld [vmem:[%s109] sm:$0x1]
    %111 = vst [vmem:[#allocation2 + $0x11] sm:$0x1] %v110
    %s112 = sld [smem:[#allocation7 + $0x83]]
    %s113 = scalar_lea.vmem %s3, %s112
    %v114 = vld [vmem:[%s113] sm:$0x1]
    %115 = vst [vmem:[#allocation2 + $0x19] sm:$0x1] %v114
    %s116 = sld [smem:[#allocation9 + $0x80]]
    %s117 = scalar_lea.vmem %s3, %s116
    %v118 = vld [vmem:[%s117] sm:$0x1]
    %s119 = scalar_lea.vmem [#allocation3], 2
    %120 = vst [vmem:[%s119] sm:$0x1] %v118
    %s121 = sld [smem:[#allocation9 + $0x81]]
    %s122 = scalar_lea.vmem %s3, %s121
    %v123 = vld [vmem:[%s122] sm:$0x1]
    %124 = vst [vmem:[%s119 + $0x1] sm:$0x1] %v123
    %s125 = sld [smem:[#allocation5 + $0x2]]
    %s126 = scalar_lea.vmem %s4, %s125
    %v127 = vld [vmem:[%s126] sm:$0x1]
    %128 = vst [vmem:[#allocation4 + $0x2] sm:$0x1] %v127
    %s129 = sld [smem:[#allocation7 + $0x100]]
    %s130 = scalar_lea.vmem %s3, %s129
    %v131 = vld [vmem:[%s130] sm:$0x1]
    %132 = vst [vmem:[#allocation2 + $0x2] sm:$0x1] %v131
    %s133 = sld [smem:[#allocation7 + $0x101]]
    %s134 = scalar_lea.vmem %s3, %s133
    %v135 = vld [vmem:[%s134] sm:$0x1]
    %136 = vst [vmem:[#allocation2 + $0xa] sm:$0x1] %v135
    %s137 = sld [smem:[#allocation7 + $0x102]]
    %s138 = scalar_lea.vmem %s3, %s137
    %v139 = vld [vmem:[%s138] sm:$0x1]
    %140 = vst [vmem:[#allocation2 + $0x12] sm:$0x1] %v139
    %s141 = sld [smem:[#allocation7 + $0x103]]
    %s142 = scalar_lea.vmem %s3, %s141
    %v143 = vld [vmem:[%s142] sm:$0x1]
    %144 = vst [vmem:[#allocation2 + $0x1a] sm:$0x1] %v143
    %s145 = sld [smem:[#allocation9 + $0x100]]
    %s146 = scalar_lea.vmem %s3, %s145
    %v147 = vld [vmem:[%s146] sm:$0x1]
    %s148 = scalar_lea.vmem [#allocation3], 4
    %149 = vst [vmem:[%s148] sm:$0x1] %v147
    %s150 = sld [smem:[#allocation9 + $0x101]]
    %s151 = scalar_lea.vmem %s3, %s150
    %v152 = vld [vmem:[%s151] sm:$0x1]
    %153 = vst [vmem:[%s148 + $0x1] sm:$0x1] %v152
    %s154 = sld [smem:[#allocation5 + $0x3]]
    %s155 = scalar_lea.vmem %s4, %s154
    %v156 = vld [vmem:[%s155] sm:$0x1]
    %157 = vst [vmem:[#allocation4 + $0x3] sm:$0x1] %v156
    %s158 = sld [smem:[#allocation7 + $0x180]]
    %s159 = scalar_lea.vmem %s3, %s158
    %v160 = vld [vmem:[%s159] sm:$0x1]
    %161 = vst [vmem:[#allocation2 + $0x3] sm:$0x1] %v160
    %s162 = sld [smem:[#allocation7 + $0x181]]
    %s163 = scalar_lea.vmem %s3, %s162
    %v164 = vld [vmem:[%s163] sm:$0x1]
    %165 = vst [vmem:[#allocation2 + $0xb] sm:$0x1] %v164
    %s166 = sld [smem:[#allocation7 + $0x182]]
    %s167 = scalar_lea.vmem %s3, %s166
    %v168 = vld [vmem:[%s167] sm:$0x1]
    %169 = vst [vmem:[#allocation2 + $0x13] sm:$0x1] %v168
    %s170 = sld [smem:[#allocation7 + $0x183]]
    %s171 = scalar_lea.vmem %s3, %s170
    %v172 = vld [vmem:[%s171] sm:$0x1]
    %173 = vst [vmem:[#allocation2 + $0x1b] sm:$0x1] %v172
    %s174 = sld [smem:[#allocation9 + $0x180]]
    %s175 = scalar_lea.vmem %s3, %s174
    %v176 = vld [vmem:[%s175] sm:$0x1]
    %s177 = scalar_lea.vmem [#allocation3], 6
    %178 = vst [vmem:[%s177] sm:$0x1] %v176
    %s179 = sld [smem:[#allocation9 + $0x181]]
    %s180 = scalar_lea.vmem %s3, %s179
    %v181 = vld [vmem:[%s180] sm:$0x1]
    %182 = vst [vmem:[%s177 + $0x1] sm:$0x1] %v181
    %s183 = sld [smem:[#allocation5 + $0x4]]
    %s184 = scalar_lea.vmem %s4, %s183
    %v185 = vld [vmem:[%s184] sm:$0x1]
    %186 = vst [vmem:[#allocation4 + $0x4] sm:$0x1] %v185
    %s187 = sld [smem:[#allocation7 + $0x200]]
    %s188 = scalar_lea.vmem %s3, %s187
    %v189 = vld [vmem:[%s188] sm:$0x1]
    %190 = vst [vmem:[#allocation2 + $0x4] sm:$0x1] %v189
    %s191 = sld [smem:[#allocation7 + $0x201]]
    %s192 = scalar_lea.vmem %s3, %s191
    %v193 = vld [vmem:[%s192] sm:$0x1]
    %194 = vst [vmem:[#allocation2 + $0xc] sm:$0x1] %v193
    %s195 = sld [smem:[#allocation7 + $0x202]]
    %s196 = scalar_lea.vmem %s3, %s195
    %v197 = vld [vmem:[%s196] sm:$0x1]
    %198 = vst [vmem:[#allocation2 + $0x14] sm:$0x1] %v197
    %s199 = sld [smem:[#allocation7 + $0x203]]
    %s200 = scalar_lea.vmem %s3, %s199
    %v201 = vld [vmem:[%s200] sm:$0x1]
    %202 = vst [vmem:[#allocation2 + $0x1c] sm:$0x1] %v201
    %s203 = sld [smem:[#allocation9 + $0x200]]
    %s204 = scalar_lea.vmem %s3, %s203
    %v205 = vld [vmem:[%s204] sm:$0x1]
    %s206 = scalar_lea.vmem [#allocation3], 8
    %207 = vst [vmem:[%s206] sm:$0x1] %v205
    %s208 = sld [smem:[#allocation9 + $0x201]]
    %s209 = scalar_lea.vmem %s3, %s208
    %v210 = vld [vmem:[%s209] sm:$0x1]
    %211 = vst [vmem:[%s206 + $0x1] sm:$0x1] %v210
    %s212 = sld [smem:[#allocation5 + $0x5]]
    %s213 = scalar_lea.vmem %s4, %s212
    %v214 = vld [vmem:[%s213] sm:$0x1]
    %215 = vst [vmem:[#allocation4 + $0x5] sm:$0x1] %v214
    %s216 = sld [smem:[#allocation7 + $0x280]]
    %s217 = scalar_lea.vmem %s3, %s216
    %v218 = vld [vmem:[%s217] sm:$0x1]
    %219 = vst [vmem:[#allocation2 + $0x5] sm:$0x1] %v218
    %s220 = sld [smem:[#allocation7 + $0x281]]
    %s221 = scalar_lea.vmem %s3, %s220
    %v222 = vld [vmem:[%s221] sm:$0x1]
    %223 = vst [vmem:[#allocation2 + $0xd] sm:$0x1] %v222
    %s224 = sld [smem:[#allocation7 + $0x282]]
    %s225 = scalar_lea.vmem %s3, %s224
    %v226 = vld [vmem:[%s225] sm:$0x1]
    %227 = vst [vmem:[#allocation2 + $0x15] sm:$0x1] %v226
    %s228 = sld [smem:[#allocation7 + $0x283]]
    %s229 = scalar_lea.vmem %s3, %s228
    %v230 = vld [vmem:[%s229] sm:$0x1]
    %231 = vst [vmem:[#allocation2 + $0x1d] sm:$0x1] %v230
    %s232 = sld [smem:[#allocation9 + $0x280]]
    %s233 = scalar_lea.vmem %s3, %s232
    %v234 = vld [vmem:[%s233] sm:$0x1]
    %s235 = scalar_lea.vmem [#allocation3], 10
    %236 = vst [vmem:[%s235] sm:$0x1] %v234
    %s237 = sld [smem:[#allocation9 + $0x281]]
    %s238 = scalar_lea.vmem %s3, %s237
    %v239 = vld [vmem:[%s238] sm:$0x1]
    %240 = vst [vmem:[%s235 + $0x1] sm:$0x1] %v239
    %s241 = sld [smem:[#allocation5 + $0x6]]
    %s242 = scalar_lea.vmem %s4, %s241
    %v243 = vld [vmem:[%s242] sm:$0x1]
    %244 = vst [vmem:[#allocation4 + $0x6] sm:$0x1] %v243
    %s245 = sld [smem:[#allocation7 + $0x300]]
    %s246 = scalar_lea.vmem %s3, %s245
    %v247 = vld [vmem:[%s246] sm:$0x1]
    %248 = vst [vmem:[#allocation2 + $0x6] sm:$0x1] %v247
    %s249 = sld [smem:[#allocation7 + $0x301]]
    %s250 = scalar_lea.vmem %s3, %s249
    %v251 = vld [vmem:[%s250] sm:$0x1]
    %252 = vst [vmem:[#allocation2 + $0xe] sm:$0x1] %v251
    %s253 = sld [smem:[#allocation7 + $0x302]]
    %s254 = scalar_lea.vmem %s3, %s253
    %v255 = vld [vmem:[%s254] sm:$0x1]
    %256 = vst [vmem:[#allocation2 + $0x16] sm:$0x1] %v255
    %s257 = sld [smem:[#allocation7 + $0x303]]
    %s258 = scalar_lea.vmem %s3, %s257
    %v259 = vld [vmem:[%s258] sm:$0x1]
    %260 = vst [vmem:[#allocation2 + $0x1e] sm:$0x1] %v259
    %s261 = sld [smem:[#allocation9 + $0x300]]
    %s262 = scalar_lea.vmem %s3, %s261
    %v263 = vld [vmem:[%s262] sm:$0x1]
    %s264 = scalar_lea.vmem [#allocation3], 12
    %265 = vst [vmem:[%s264] sm:$0x1] %v263
    %s266 = sld [smem:[#allocation9 + $0x301]]
    %s267 = scalar_lea.vmem %s3, %s266
    %v268 = vld [vmem:[%s267] sm:$0x1]
    %269 = vst [vmem:[%s264 + $0x1] sm:$0x1] %v268
    %s270 = sld [smem:[#allocation5 + $0x7]]
    %s271 = scalar_lea.vmem %s4, %s270
    %v272 = vld [vmem:[%s271] sm:$0x1]
    %273 = vst [vmem:[#allocation4 + $0x7] sm:$0x1] %v272
    %s274 = sld [smem:[#allocation7 + $0x380]]
    %s275 = scalar_lea.vmem %s3, %s274
    %v276 = vld [vmem:[%s275] sm:$0x1]
    %277 = vst [vmem:[#allocation2 + $0x7] sm:$0x1] %v276
    %s278 = sld [smem:[#allocation7 + $0x381]]
    %s279 = scalar_lea.vmem %s3, %s278
    %v280 = vld [vmem:[%s279] sm:$0x1]
    %281 = vst [vmem:[#allocation2 + $0xf] sm:$0x1] %v280
    %s282 = sld [smem:[#allocation7 + $0x382]]
    %s283 = scalar_lea.vmem %s3, %s282
    %v284 = vld [vmem:[%s283] sm:$0x1]
    %285 = vst [vmem:[#allocation2 + $0x17] sm:$0x1] %v284
    %s286 = sld [smem:[#allocation7 + $0x383]]
    %s287 = scalar_lea.vmem %s3, %s286
    %v288 = vld [vmem:[%s287] sm:$0x1]
    %289 = vst [vmem:[#allocation2 + $0x1f] sm:$0x1] %v288
    %s290 = sld [smem:[#allocation9 + $0x380]]
    %s291 = scalar_lea.vmem %s3, %s290
    %v292 = vld [vmem:[%s291] sm:$0x1]
    %s293 = scalar_lea.vmem [#allocation3], 14
    %294 = vst [vmem:[%s293] sm:$0x1] %v292
    %s295 = sld [smem:[#allocation9 + $0x381]]
    %s296 = scalar_lea.vmem %s3, %s295
    %v297 = vld [vmem:[%s296] sm:$0x1]
    %298 = vst [vmem:[%s293 + $0x1] sm:$0x1] %v297
    %v299 = vld [vmem:[%s5] sm:$0xff]
    %v300 = vld [vmem:[%s5 + $0x8] sm:$0xff]
    %v301 = vld [vmem:[%s5 + $0x10] sm:$0xff]
    %v302 = vld [vmem:[%s5 + $0x18] sm:$0xff]
    %v303 = vld [vmem:[%s5 + $0x20] sm:$0xff]
    %v304 = vld [vmem:[%s5 + $0x28] sm:$0xff]
    %v305 = vld [vmem:[%s5 + $0x30] sm:$0xff]
    %v306 = vld [vmem:[%s5 + $0x38] sm:$0xff]
    %v307 = vld [vmem:[%s5 + $0x40] sm:$0xff]
    %v308 = vld [vmem:[%s5 + $0x48] sm:$0xff]
    %v309 = vld [vmem:[%s5 + $0x50] sm:$0xff]
    %v310 = vld [vmem:[%s5 + $0x58] sm:$0xff]
    %v311 = vld [vmem:[%s5 + $0x60] sm:$0xff]
    %v312 = vld [vmem:[%s5 + $0x68] sm:$0xff]
    %v313 = vld [vmem:[%s5 + $0x70] sm:$0xff]
    %v314 = vld [vmem:[%s5 + $0x78] sm:$0xff]
    %v315 = vld [vmem:[%s5 + $0x80] sm:$0xff]
    %v316 = vld [vmem:[%s5 + $0x88] sm:$0xff]
    %v317 = vld [vmem:[%s5 + $0x90] sm:$0xff]
    %v318 = vld [vmem:[%s5 + $0x98] sm:$0xff]
    %v319 = vld [vmem:[%s5 + $0xa0] sm:$0xff]
    %v320 = vld [vmem:[%s5 + $0xa8] sm:$0xff]
    %v321 = vld [vmem:[%s5 + $0xb0] sm:$0xff]
    %v322 = vld [vmem:[%s5 + $0xb8] sm:$0xff]
    %v323 = vld [vmem:[%s5 + $0xc0] sm:$0xff]
    %v324 = vld [vmem:[%s5 + $0xc8] sm:$0xff]
    %v325 = vld [vmem:[%s5 + $0xd0] sm:$0xff]
    %v326 = vld [vmem:[%s5 + $0xd8] sm:$0xff]
    %v327 = vld [vmem:[%s5 + $0xe0] sm:$0xff]
    %v328 = vld [vmem:[%s5 + $0xe8] sm:$0xff]
    %v329 = vld [vmem:[%s5 + $0xf0] sm:$0xff]
    %v330 = vld [vmem:[%s5 + $0xf8] sm:$0xff]
    %v331 = vld [vmem:[%s5 + $0x100] sm:$0xff]
    %v332 = vld [vmem:[%s5 + $0x108] sm:$0xff]
    %v333 = vld [vmem:[%s5 + $0x110] sm:$0xff]
    %v334 = vld [vmem:[%s5 + $0x118] sm:$0xff]
    %v335 = vld [vmem:[%s5 + $0x120] sm:$0xff]
    %v336 = vld [vmem:[%s5 + $0x128] sm:$0xff]
    %v337 = vld [vmem:[%s5 + $0x130] sm:$0xff]
    %v338 = vld [vmem:[%s5 + $0x138] sm:$0xff]
    %v339 = vld [vmem:[%s5 + $0x140] sm:$0xff]
    %v340 = vld [vmem:[%s5 + $0x148] sm:$0xff]
    %v341 = vld [vmem:[%s5 + $0x150] sm:$0xff]
    %v342 = vld [vmem:[%s5 + $0x158] sm:$0xff]
    %v343 = vld [vmem:[%s5 + $0x160] sm:$0xff]
    %v344 = vld [vmem:[%s5 + $0x168] sm:$0xff]
    %v345 = vld [vmem:[%s5 + $0x170] sm:$0xff]
    %v346 = vld [vmem:[%s5 + $0x178] sm:$0xff]
    %v347 = vld [vmem:[%s6] sm:$0xff]
    %v348 = vld [vmem:[%s6 + $0x8] sm:$0xff]
    %v349 = vld [vmem:[%s6 + $0x10] sm:$0xff]
    %v350 = vld [vmem:[%s6 + $0x18] sm:$0xff]
    %v351 = vld [vmem:[%s6 + $0x20] sm:$0xff]
    %v352 = vld [vmem:[%s6 + $0x28] sm:$0xff]
    %v353 = vld [vmem:[%s6 + $0x30] sm:$0xff]
    %v354 = vld [vmem:[%s6 + $0x38] sm:$0xff]
    %v355 = vld [vmem:[%s6 + $0x40] sm:$0xff]
    %v356 = vld [vmem:[%s6 + $0x48] sm:$0xff]
    %v357 = vld [vmem:[%s6 + $0x50] sm:$0xff]
    %v358 = vld [vmem:[%s6 + $0x58] sm:$0xff]
    %v359 = vld [vmem:[%s6 + $0x60] sm:$0xff]
    %v360 = vld [vmem:[%s6 + $0x68] sm:$0xff]
    %v361 = vld [vmem:[%s6 + $0x70] sm:$0xff]
    %v362 = vld [vmem:[%s6 + $0x78] sm:$0xff]
    %v363 = vld [vmem:[%s6 + $0x80] sm:$0xff]
    %v364 = vld [vmem:[%s6 + $0x88] sm:$0xff]
    %v365 = vld [vmem:[%s6 + $0x90] sm:$0xff]
    %v366 = vld [vmem:[%s6 + $0x98] sm:$0xff]
    %v367 = vld [vmem:[%s6 + $0xa0] sm:$0xff]
    %v368 = vld [vmem:[%s6 + $0xa8] sm:$0xff]
    %v369 = vld [vmem:[%s6 + $0xb0] sm:$0xff]
    %v370 = vld [vmem:[%s6 + $0xb8] sm:$0xff]
    %v371 = vld [vmem:[%s6 + $0xc0] sm:$0xff]
    %v372 = vld [vmem:[%s6 + $0xc8] sm:$0xff]
    %v373 = vld [vmem:[%s6 + $0xd0] sm:$0xff]
    %v374 = vld [vmem:[%s6 + $0xd8] sm:$0xff]
    %v375 = vld [vmem:[%s6 + $0xe0] sm:$0xff]
    %v376 = vld [vmem:[%s6 + $0xe8] sm:$0xff]
    %v377 = vld [vmem:[%s6 + $0xf0] sm:$0xff]
    %v378 = vld [vmem:[%s6 + $0xf8] sm:$0xff]
    %v379 = vld [vmem:[%s6 + $0x100] sm:$0xff]
    %v380 = vld [vmem:[%s6 + $0x108] sm:$0xff]
    %v381 = vld [vmem:[%s6 + $0x110] sm:$0xff]
    %v382 = vld [vmem:[%s6 + $0x118] sm:$0xff]
    %v383 = vld [vmem:[%s6 + $0x120] sm:$0xff]
    %v384 = vld [vmem:[%s6 + $0x128] sm:$0xff]
    %v385 = vld [vmem:[%s6 + $0x130] sm:$0xff]
    %v386 = vld [vmem:[%s6 + $0x138] sm:$0xff]
    %v387 = vld [vmem:[%s6 + $0x140] sm:$0xff]
    %v388 = vld [vmem:[%s6 + $0x148] sm:$0xff]
    %v389 = vld [vmem:[%s6 + $0x150] sm:$0xff]
    %v390 = vld [vmem:[%s6 + $0x158] sm:$0xff]
    %v391 = vld [vmem:[%s6 + $0x160] sm:$0xff]
    %v392 = vld [vmem:[%s6 + $0x168] sm:$0xff]
    %v393 = vld [vmem:[%s6 + $0x170] sm:$0xff]
    %v394 = vld [vmem:[%s6 + $0x178] sm:$0xff]
    %v395 = vld [vmem:[%s7] sm:$0x7]
    %v396 = vld [vmem:[%s8] sm:$0x7]
    %v397 = vld [vmem:[#allocation2] sm:$0xff]
    %v398 = vld [vmem:[#allocation2 + $0x8] sm:$0xff]
    %v399 = vld [vmem:[#allocation2 + $0x10] sm:$0xff]
    %v400 = vld [vmem:[#allocation2 + $0x18] sm:$0xff]
    %v402 = vlaneseq
    %v403 = vshrl.u32 %v402, 7
    %v404 = vsub.s32 0, %v403
    %v405 = vrot.slane %v395, %v404
    %v406 = vlaneseq
    %v407 = vshrl.u32 %v406, 7
    %v408 = vsub.s32 1, %v407
    %v409 = vrot.slane %v395, %v408
    %v410 = vlaneseq
    %v411 = vshrl.u32 %v410, 7
    %v412 = vsub.s32 2, %v411
    %v413 = vrot.slane %v395, %v412
    %417 = vmatprep.subr.mxu0 %v300
    %418 = vmatpush1.msra.mxu0 %v299
    %419 = vmatprep.subr.mxu0 %v303
    %420 = vmatpush1.msra.mxu0 %v302
    %421 = vmatprep.subr.mxu0 %v306
    %422 = vmatpush1.msra.mxu0 %v305
    %423 = vmatprep.subr.mxu0 %v309
    %424 = vmatpush1.msra.mxu0 %v308
    %425 = vmatprep.subr.mxu0 %v312
    %426 = vmatpush1.msra.mxu0 %v311
    %427 = vmatprep.subr.mxu0 %v315
    %428 = vmatpush1.msra.mxu0 %v314
    %429 = vmatprep.subr.mxu0 %v318
    %430 = vmatpush1.msra.mxu0 %v317
    %431 = vmatprep.subr.mxu0 %v321
    %432 = vmatpush1.msra.mxu0 %v320
    %433 = vmatprep.subr.mxu0 %v324
    %434 = vmatpush1.msra.mxu0 %v323
    %435 = vmatprep.subr.mxu0 %v327
    %436 = vmatpush1.msra.mxu0 %v326
    %437 = vmatprep.subr.mxu0 %v330
    %438 = vmatpush1.msra.mxu0 %v329
    %439 = vmatprep.subr.mxu0 %v333
    %440 = vmatpush1.msra.mxu0 %v332
    %441 = vmatprep.subr.mxu0 %v336
    %442 = vmatpush1.msra.mxu0 %v335
    %443 = vmatprep.subr.mxu0 %v339
    %444 = vmatpush1.msra.mxu0 %v338
    %445 = vmatprep.subr.mxu0 %v342
    %446 = vmatpush1.msra.mxu0 %v341
    %447 = vmatprep.subr.mxu0 %v345
    %448 = vmatpush1.msra.mxu0 %v344
    %449 = vmatprep.subr.mxu0 0.0
    %450 = vmatpush1.msra.mxu0 0.0
    %451 = vmatprep.subr.mxu0 0.0
    %452 = vmatpush1.msra.mxu0 0.0
    %453 = vmatprep.subr.mxu0 0.0
    %454 = vmatpush1.msra.mxu0 0.0
    %455 = vmatprep.subr.mxu0 0.0
    %456 = vmatpush1.msra.mxu0 0.0
    %457 = vmatprep.subr.mxu0 0.0
    %458 = vmatpush1.msra.mxu0 0.0
    %459 = vmatprep.subr.mxu0 0.0
    %460 = vmatpush1.msra.mxu0 0.0
    %461 = vmatprep.subr.mxu0 0.0
    %462 = vmatpush1.msra.mxu0 0.0
    %463 = vmatprep.subr.mxu0 0.0
    %464 = vmatpush1.msra.mxu0 0.0
    %465 = vmatprep.subr.mxu0 0.0
    %466 = vmatpush1.msra.mxu0 0.0
    %467 = vmatprep.subr.mxu0 0.0
    %468 = vmatpush1.msra.mxu0 0.0
    %469 = vmatprep.subr.mxu0 0.0
    %470 = vmatpush1.msra.mxu0 0.0
    %471 = vmatprep.subr.mxu0 0.0
    %472 = vmatpush1.msra.mxu0 0.0
    %473 = vmatprep.subr.mxu0 0.0
    %474 = vmatpush1.msra.mxu0 0.0
    %475 = vmatprep.subr.mxu0 0.0
    %476 = vmatpush1.msra.mxu0 0.0
    %477 = vmatprep.subr.mxu0 0.0
    %478 = vmatpush1.msra.mxu0 0.0
    %479 = vmatprep.subr.mxu0 0.0
    %480 = vmatpush1.msra.mxu0 0.0
    %481 = vmatprep.mubr.f32.mxu0 0.0
    %482 = vmatmul.mubr.f32.gmra.mrb[0].mxu0 %v397
    %v483 = vpop.f32.mrb[0].mxu0
    %v484 = vadd.f32 %v405, %v483
    %v485 = vpop.f32.mrb[0].mxu0
    %v486 = vadd.f32 %v409, %v485
    %487 = vmatprep.mubr.f32.mxu0 0.0
    %488 = vmatmul.mubr.f32.gmra.mrb[0].mxu0 %v398
    %v489 = vpop.f32.mrb[0].mxu0
    %v490 = vadd.f32 %v405, %v489
    %v491 = vpop.f32.mrb[0].mxu0
    %v492 = vadd.f32 %v409, %v491
    %493 = vmatprep.mubr.f32.mxu0 0.0
    %494 = vmatmul.mubr.f32.gmra.mrb[0].mxu0 %v399
    %v495 = vpop.f32.mrb[0].mxu0
    %v496 = vadd.f32 %v405, %v495
    %v497 = vpop.f32.mrb[0].mxu0
    %v498 = vadd.f32 %v409, %v497
    %499 = vmatprep.mubr.f32.mxu0 0.0
    %500 = vmatmul.mubr.f32.gmra.mrb[0].mxu0 %v400
    %v501 = vpop.f32.mrb[0].mxu0
    %v502 = vadd.f32 %v405, %v501
    %v503 = vpop.f32.mrb[0].mxu0
    %v504 = vadd.f32 %v409, %v503
    %505 = vdwg.mxu0
    %506 = vmatprep.subr.mxu0 0.0
    %507 = vmatpush1.msra.mxu0 %v301
    %508 = vmatprep.subr.mxu0 0.0
    %509 = vmatpush1.msra.mxu0 %v304
    %510 = vmatprep.subr.mxu0 0.0
    %511 = vmatpush1.msra.mxu0 %v307
    %512 = vmatprep.subr.mxu0 0.0
    %513 = vmatpush1.msra.mxu0 %v310
    %514 = vmatprep.subr.mxu0 0.0
    %515 = vmatpush1.msra.mxu0 %v313
    %516 = vmatprep.subr.mxu0 0.0
    %517 = vmatpush1.msra.mxu0 %v316
    %518 = vmatprep.subr.mxu0 0.0
    %519 = vmatpush1.msra.mxu0 %v319
    %520 = vmatprep.subr.mxu0 0.0
    %521 = vmatpush1.msra.mxu0 %v322
    %522 = vmatprep.subr.mxu0 0.0
    %523 = vmatpush1.msra.mxu0 %v325
    %524 = vmatprep.subr.mxu0 0.0
    %525 = vmatpush1.msra.mxu0 %v328
    %526 = vmatprep.subr.mxu0 0.0
    %527 = vmatpush1.msra.mxu0 %v331
    %528 = vmatprep.subr.mxu0 0.0
    %529 = vmatpush1.msra.mxu0 %v334
    %530 = vmatprep.subr.mxu0 0.0
    %531 = vmatpush1.msra.mxu0 %v337
    %532 = vmatprep.subr.mxu0 0.0
    %533 = vmatpush1.msra.mxu0 %v340
    %534 = vmatprep.subr.mxu0 0.0
    %535 = vmatpush1.msra.mxu0 %v343
    %536 = vmatprep.subr.mxu0 0.0
    %537 = vmatpush1.msra.mxu0 %v346
    %538 = vmatprep.subr.mxu0 0.0
    %539 = vmatpush1.msra.mxu0 0.0
    %540 = vmatprep.subr.mxu0 0.0
    %541 = vmatpush1.msra.mxu0 0.0
    %542 = vmatprep.subr.mxu0 0.0
    %543 = vmatpush1.msra.mxu0 0.0
    %544 = vmatprep.subr.mxu0 0.0
    %545 = vmatpush1.msra.mxu0 0.0
    %546 = vmatprep.subr.mxu0 0.0
    %547 = vmatpush1.msra.mxu0 0.0
    %548 = vmatprep.subr.mxu0 0.0
    %549 = vmatpush1.msra.mxu0 0.0
    %550 = vmatprep.subr.mxu0 0.0
    %551 = vmatpush1.msra.mxu0 0.0
    %552 = vmatprep.subr.mxu0 0.0
    %553 = vmatpush1.msra.mxu0 0.0
    %554 = vmatprep.subr.mxu0 0.0
    %555 = vmatpush1.msra.mxu0 0.0
    %556 = vmatprep.subr.mxu0 0.0
    %557 = vmatpush1.msra.mxu0 0.0
    %558 = vmatprep.subr.mxu0 0.0
    %559 = vmatpush1.msra.mxu0 0.0
    %560 = vmatprep.subr.mxu0 0.0
    %561 = vmatpush1.msra.mxu0 0.0
    %562 = vmatprep.subr.mxu0 0.0
    %563 = vmatpush1.msra.mxu0 0.0
    %564 = vmatprep.subr.mxu0 0.0
    %565 = vmatpush1.msra.mxu0 0.0
    %566 = vmatprep.subr.mxu0 0.0
    %567 = vmatpush1.msra.mxu0 0.0
    %568 = vmatprep.subr.mxu0 0.0
    %569 = vmatpush1.msra.mxu0 0.0
    %570 = vmatprep.mubr.f32.mxu0 0.0
    %571 = vmatmul.mubr.f32.gmra.mrb[0].mxu0 %v397
    %v572 = vpop.f32.mrb[0].mxu0
    %v573 = vadd.f32 %v413, %v572
    %v574 = vpop.f32.mrb[0].mxu0
    %575 = vmatprep.mubr.f32.mxu0 0.0
    %576 = vmatmul.mubr.f32.gmra.mrb[0].mxu0 %v398
    %v577 = vpop.f32.mrb[0].mxu0
    %v578 = vadd.f32 %v413, %v577
    %v579 = vpop.f32.mrb[0].mxu0
    %580 = vmatprep.mubr.f32.mxu0 0.0
    %581 = vmatmul.mubr.f32.gmra.mrb[0].mxu0 %v399
    %v582 = vpop.f32.mrb[0].mxu0
    %v583 = vadd.f32 %v413, %v582
    %v584 = vpop.f32.mrb[0].mxu0
    %585 = vmatprep.mubr.f32.mxu0 0.0
    %586 = vmatmul.mubr.f32.gmra.mrb[0].mxu0 %v400
    %v587 = vpop.f32.mrb[0].mxu0
    %v588 = vadd.f32 %v413, %v587
    %v589 = vpop.f32.mrb[0].mxu0
    %590 = vdwg.mxu0
    %v591 = vld [vmem:[#allocation4] sm:$0xff]
    %v593 = vlaneseq
    %v594 = vshrl.u32 %v593, 7
    %v595 = vsub.s32 0, %v594
    %v596 = vrot.slane %v396, %v595
    %v597 = vlaneseq
    %v598 = vshrl.u32 %v597, 7
    %v599 = vsub.s32 1, %v598
    %v600 = vrot.slane %v396, %v599
    %v601 = vlaneseq
    %v602 = vshrl.u32 %v601, 7
    %v603 = vsub.s32 2, %v602
    %v604 = vrot.slane %v396, %v603
    %608 = vmatprep.subr.mxu0 %v348
    %609 = vmatpush1.msra.mxu0 %v347
    %610 = vmatprep.subr.mxu0 %v351
    %611 = vmatpush1.msra.mxu0 %v350
    %612 = vmatprep.subr.mxu0 %v354
    %613 = vmatpush1.msra.mxu0 %v353
    %614 = vmatprep.subr.mxu0 %v357
    %615 = vmatpush1.msra.mxu0 %v356
    %616 = vmatprep.subr.mxu0 %v360
    %617 = vmatpush1.msra.mxu0 %v359
    %618 = vmatprep.subr.mxu0 %v363
    %619 = vmatpush1.msra.mxu0 %v362
    %620 = vmatprep.subr.mxu0 %v366
    %621 = vmatpush1.msra.mxu0 %v365
    %622 = vmatprep.subr.mxu0 %v369
    %623 = vmatpush1.msra.mxu0 %v368
    %624 = vmatprep.subr.mxu0 %v372
    %625 = vmatpush1.msra.mxu0 %v371
    %626 = vmatprep.subr.mxu0 %v375
    %627 = vmatpush1.msra.mxu0 %v374
    %628 = vmatprep.subr.mxu0 %v378
    %629 = vmatpush1.msra.mxu0 %v377
    %630 = vmatprep.subr.mxu0 %v381
    %631 = vmatpush1.msra.mxu0 %v380
    %632 = vmatprep.subr.mxu0 %v384
    %633 = vmatpush1.msra.mxu0 %v383
    %634 = vmatprep.subr.mxu0 %v387
    %635 = vmatpush1.msra.mxu0 %v386
    %636 = vmatprep.subr.mxu0 %v390
    %637 = vmatpush1.msra.mxu0 %v389
    %638 = vmatprep.subr.mxu0 %v393
    %639 = vmatpush1.msra.mxu0 %v392
    %640 = vmatprep.subr.mxu0 0.0
    %641 = vmatpush1.msra.mxu0 0.0
    %642 = vmatprep.subr.mxu0 0.0
    %643 = vmatpush1.msra.mxu0 0.0
    %644 = vmatprep.subr.mxu0 0.0
    %645 = vmatpush1.msra.mxu0 0.0
    %646 = vmatprep.subr.mxu0 0.0
    %647 = vmatpush1.msra.mxu0 0.0
    %648 = vmatprep.subr.mxu0 0.0
    %649 = vmatpush1.msra.mxu0 0.0
    %650 = vmatprep.subr.mxu0 0.0
    %651 = vmatpush1.msra.mxu0 0.0
    %652 = vmatprep.subr.mxu0 0.0
    %653 = vmatpush1.msra.mxu0 0.0
    %654 = vmatprep.subr.mxu0 0.0
    %655 = vmatpush1.msra.mxu0 0.0
    %656 = vmatprep.subr.mxu0 0.0
    %657 = vmatpush1.msra.mxu0 0.0
    %658 = vmatprep.subr.mxu0 0.0
    %659 = vmatpush1.msra.mxu0 0.0
    %660 = vmatprep.subr.mxu0 0.0
    %661 = vmatpush1.msra.mxu0 0.0
    %662 = vmatprep.subr.mxu0 0.0
    %663 = vmatpush1.msra.mxu0 0.0
    %664 = vmatprep.subr.mxu0 0.0
    %665 = vmatpush1.msra.mxu0 0.0
    %666 = vmatprep.subr.mxu0 0.0
    %667 = vmatpush1.msra.mxu0 0.0
    %668 = vmatprep.subr.mxu0 0.0
    %669 = vmatpush1.msra.mxu0 0.0
    %670 = vmatprep.subr.mxu0 0.0
    %671 = vmatpush1.msra.mxu0 0.0
    %672 = vmatprep.mubr.f32.mxu0 0.0
    %673 = vmatmul.mubr.f32.gmra.mrb[0].mxu0 %v591
    %v674 = vpop.f32.mrb[0].mxu0
    %v675 = vadd.f32 %v596, %v674
    %v676 = vpop.f32.mrb[0].mxu0
    %v677 = vadd.f32 %v600, %v676
    %678 = vdwg.mxu0
    %679 = vmatprep.subr.mxu0 0.0
    %680 = vmatpush1.msra.mxu0 %v349
    %681 = vmatprep.subr.mxu0 0.0
    %682 = vmatpush1.msra.mxu0 %v352
    %683 = vmatprep.subr.mxu0 0.0
    %684 = vmatpush1.msra.mxu0 %v355
    %685 = vmatprep.subr.mxu0 0.0
    %686 = vmatpush1.msra.mxu0 %v358
    %687 = vmatprep.subr.mxu0 0.0
    %688 = vmatpush1.msra.mxu0 %v361
    %689 = vmatprep.subr.mxu0 0.0
    %690 = vmatpush1.msra.mxu0 %v364
    %691 = vmatprep.subr.mxu0 0.0
    %692 = vmatpush1.msra.mxu0 %v367
    %693 = vmatprep.subr.mxu0 0.0
    %694 = vmatpush1.msra.mxu0 %v370
    %695 = vmatprep.subr.mxu0 0.0
    %696 = vmatpush1.msra.mxu0 %v373
    %697 = vmatprep.subr.mxu0 0.0
    %698 = vmatpush1.msra.mxu0 %v376
    %699 = vmatprep.subr.mxu0 0.0
    %700 = vmatpush1.msra.mxu0 %v379
    %701 = vmatprep.subr.mxu0 0.0
    %702 = vmatpush1.msra.mxu0 %v382
    %703 = vmatprep.subr.mxu0 0.0
    %704 = vmatpush1.msra.mxu0 %v385
    %705 = vmatprep.subr.mxu0 0.0
    %706 = vmatpush1.msra.mxu0 %v388
    %707 = vmatprep.subr.mxu0 0.0
    %708 = vmatpush1.msra.mxu0 %v391
    %709 = vmatprep.subr.mxu0 0.0
    %710 = vmatpush1.msra.mxu0 %v394
    %711 = vmatprep.subr.mxu0 0.0
    %712 = vmatpush1.msra.mxu0 0.0
    %713 = vmatprep.subr.mxu0 0.0
    %714 = vmatpush1.msra.mxu0 0.0
    %715 = vmatprep.subr.mxu0 0.0
    %716 = vmatpush1.msra.mxu0 0.0
    %717 = vmatprep.subr.mxu0 0.0
    %718 = vmatpush1.msra.mxu0 0.0
    %719 = vmatprep.subr.mxu0 0.0
    %720 = vmatpush1.msra.mxu0 0.0
    %721 = vmatprep.subr.mxu0 0.0
    %722 = vmatpush1.msra.mxu0 0.0
    %723 = vmatprep.subr.mxu0 0.0
    %724 = vmatpush1.msra.mxu0 0.0
    %725 = vmatprep.subr.mxu0 0.0
    %726 = vmatpush1.msra.mxu0 0.0
    %727 = vmatprep.subr.mxu0 0.0
    %728 = vmatpush1.msra.mxu0 0.0
    %729 = vmatprep.subr.mxu0 0.0
    %730 = vmatpush1.msra.mxu0 0.0
    %731 = vmatprep.subr.mxu0 0.0
    %732 = vmatpush1.msra.mxu0 0.0
    %733 = vmatprep.subr.mxu0 0.0
    %734 = vmatpush1.msra.mxu0 0.0
    %735 = vmatprep.subr.mxu0 0.0
    %736 = vmatpush1.msra.mxu0 0.0
    %737 = vmatprep.subr.mxu0 0.0
    %738 = vmatpush1.msra.mxu0 0.0
    %739 = vmatprep.subr.mxu0 0.0
    %740 = vmatpush1.msra.mxu0 0.0
    %741 = vmatprep.subr.mxu0 0.0
    %742 = vmatpush1.msra.mxu0 0.0
    %743 = vmatprep.mubr.f32.mxu0 0.0
    %744 = vmatmul.mubr.f32.gmra.mrb[0].mxu0 %v591
    %v745 = vpop.f32.mrb[0].mxu0
    %v746 = vadd.f32 %v604, %v745
    %v747 = vpop.f32.mrb[0].mxu0
    %748 = vdwg.mxu0
    %v749 = vadd.f32 %v484, %v675
    %v750 = vxor.u32 %v749, 2147483648
    %v751 = vmul.f32 %v750, 1.442695
    %v752 = vpow.pop %v751
    %v753 = vadd.f32 %v752, 1.0
    %v754 = vrcp.pop %v753
    %v755 = vmul.f32 1.0, %v754
    %v756 = vadd.f32 %v486, %v677
    %v757 = vxor.u32 %v756, 2147483648
    %v758 = vmul.f32 %v757, 1.442695
    %v759 = vpow.pop %v758
    %v760 = vadd.f32 %v759, 1.0
    %v761 = vrcp.pop %v760
    %v762 = vmul.f32 1.0, %v761
    %v763 = vmul.f32 %v755, %v746
    %v764 = vadd.f32 %v573, %v763
    %v765 = vtanh.pop %v764
    %v766 = vsub.f32 1.0, %v762
    %v767 = vmul.f32 %v766, %v765
    %v768 = vmul.f32 %v762, %v591
    %v769 = vadd.f32 %v767, %v768
    %770 = vmatprep.subr.mxu0 %v348
    %771 = vmatpush1.msra.mxu0 %v347
    %772 = vmatprep.subr.mxu0 %v351
    %773 = vmatpush1.msra.mxu0 %v350
    %774 = vmatprep.subr.mxu0 %v354
    %775 = vmatpush1.msra.mxu0 %v353
    %776 = vmatprep.subr.mxu0 %v357
    %777 = vmatpush1.msra.mxu0 %v356
    %778 = vmatprep.subr.mxu0 %v360
    %779 = vmatpush1.msra.mxu0 %v359
    %780 = vmatprep.subr.mxu0 %v363
    %781 = vmatpush1.msra.mxu0 %v362
    %782 = vmatprep.subr.mxu0 %v366
    %783 = vmatpush1.msra.mxu0 %v365
    %784 = vmatprep.subr.mxu0 %v369
    %785 = vmatpush1.msra.mxu0 %v368
    %786 = vmatprep.subr.mxu0 %v372
    %787 = vmatpush1.msra.mxu0 %v371
    %788 = vmatprep.subr.mxu0 %v375
    %789 = vmatpush1.msra.mxu0 %v374
    %790 = vmatprep.subr.mxu0 %v378
    %791 = vmatpush1.msra.mxu0 %v377
    %792 = vmatprep.subr.mxu0 %v381
    %793 = vmatpush1.msra.mxu0 %v380
    %794 = vmatprep.subr.mxu0 %v384
    %795 = vmatpush1.msra.mxu0 %v383
    %796 = vmatprep.subr.mxu0 %v387
    %797 = vmatpush1.msra.mxu0 %v386
    %798 = vmatprep.subr.mxu0 %v390
    %799 = vmatpush1.msra.mxu0 %v389
    %800 = vmatprep.subr.mxu0 %v393
    %801 = vmatpush1.msra.mxu0 %v392
    %802 = vmatprep.subr.mxu0 0.0
    %803 = vmatpush1.msra.mxu0 0.0
    %804 = vmatprep.subr.mxu0 0.0
    %805 = vmatpush1.msra.mxu0 0.0
    %806 = vmatprep.subr.mxu0 0.0
    %807 = vmatpush1.msra.mxu0 0.0
    %808 = vmatprep.subr.mxu0 0.0
    %809 = vmatpush1.msra.mxu0 0.0
    %810 = vmatprep.subr.mxu0 0.0
    %811 = vmatpush1.msra.mxu0 0.0
    %812 = vmatprep.subr.mxu0 0.0
    %813 = vmatpush1.msra.mxu0 0.0
    %814 = vmatprep.subr.mxu0 0.0
    %815 = vmatpush1.msra.mxu0 0.0
    %816 = vmatprep.subr.mxu0 0.0
    %817 = vmatpush1.msra.mxu0 0.0
    %818 = vmatprep.subr.mxu0 0.0
    %819 = vmatpush1.msra.mxu0 0.0
    %820 = vmatprep.subr.mxu0 0.0
    %821 = vmatpush1.msra.mxu0 0.0
    %822 = vmatprep.subr.mxu0 0.0
    %823 = vmatpush1.msra.mxu0 0.0
    %824 = vmatprep.subr.mxu0 0.0
    %825 = vmatpush1.msra.mxu0 0.0
    %826 = vmatprep.subr.mxu0 0.0
    %827 = vmatpush1.msra.mxu0 0.0
    %828 = vmatprep.subr.mxu0 0.0
    %829 = vmatpush1.msra.mxu0 0.0
    %830 = vmatprep.subr.mxu0 0.0
    %831 = vmatpush1.msra.mxu0 0.0
    %832 = vmatprep.subr.mxu0 0.0
    %833 = vmatpush1.msra.mxu0 0.0
    %834 = vmatprep.mubr.f32.mxu0 0.0
    %835 = vmatmul.mubr.f32.gmra.mrb[0].mxu0 %v769
    %v836 = vpop.f32.mrb[0].mxu0
    %v837 = vadd.f32 %v596, %v836
    %v838 = vpop.f32.mrb[0].mxu0
    %v839 = vadd.f32 %v600, %v838
    %840 = vdwg.mxu0
    %841 = vmatprep.subr.mxu0 0.0
    %842 = vmatpush1.msra.mxu0 %v349
    %843 = vmatprep.subr.mxu0 0.0
    %844 = vmatpush1.msra.mxu0 %v352
    %845 = vmatprep.subr.mxu0 0.0
    %846 = vmatpush1.msra.mxu0 %v355
    %847 = vmatprep.subr.mxu0 0.0
    %848 = vmatpush1.msra.mxu0 %v358
    %849 = vmatprep.subr.mxu0 0.0
    %850 = vmatpush1.msra.mxu0 %v361
    %851 = vmatprep.subr.mxu0 0.0
    %852 = vmatpush1.msra.mxu0 %v364
    %853 = vmatprep.subr.mxu0 0.0
    %854 = vmatpush1.msra.mxu0 %v367
    %855 = vmatprep.subr.mxu0 0.0
    %856 = vmatpush1.msra.mxu0 %v370
    %857 = vmatprep.subr.mxu0 0.0
    %858 = vmatpush1.msra.mxu0 %v373
    %859 = vmatprep.subr.mxu0 0.0
    %860 = vmatpush1.msra.mxu0 %v376
    %861 = vmatprep.subr.mxu0 0.0
    %862 = vmatpush1.msra.mxu0 %v379
    %863 = vmatprep.subr.mxu0 0.0
    %864 = vmatpush1.msra.mxu0 %v382
    %865 = vmatprep.subr.mxu0 0.0
    %866 = vmatpush1.msra.mxu0 %v385
    %867 = vmatprep.subr.mxu0 0.0
    %868 = vmatpush1.msra.mxu0 %v388
    %869 = vmatprep.subr.mxu0 0.0
    %870 = vmatpush1.msra.mxu0 %v391
    %871 = vmatprep.subr.mxu0 0.0
    %872 = vmatpush1.msra.mxu0 %v394
    %873 = vmatprep.subr.mxu0 0.0
    %874 = vmatpush1.msra.mxu0 0.0
    %875 = vmatprep.subr.mxu0 0.0
    %876 = vmatpush1.msra.mxu0 0.0
    %877 = vmatprep.subr.mxu0 0.0
    %878 = vmatpush1.msra.mxu0 0.0
    %879 = vmatprep.subr.mxu0 0.0
    %880 = vmatpush1.msra.mxu0 0.0
    %881 = vmatprep.subr.mxu0 0.0
    %882 = vmatpush1.msra.mxu0 0.0
    %883 = vmatprep.subr.mxu0 0.0
    %884 = vmatpush1.msra.mxu0 0.0
    %885 = vmatprep.subr.mxu0 0.0
    %886 = vmatpush1.msra.mxu0 0.0
    %887 = vmatprep.subr.mxu0 0.0
    %888 = vmatpush1.msra.mxu0 0.0
    %889 = vmatprep.subr.mxu0 0.0
    %890 = vmatpush1.msra.mxu0 0.0
    %891 = vmatprep.subr.mxu0 0.0
    %892 = vmatpush1.msra.mxu0 0.0
    %893 = vmatprep.subr.mxu0 0.0
    %894 = vmatpush1.msra.mxu0 0.0
    %895 = vmatprep.subr.mxu0 0.0
    %896 = vmatpush1.msra.mxu0 0.0
    %897 = vmatprep.subr.mxu0 0.0
    %898 = vmatpush1.msra.mxu0 0.0
    %899 = vmatprep.subr.mxu0 0.0
    %900 = vmatpush1.msra.mxu0 0.0
    %901 = vmatprep.subr.mxu0 0.0
    %902 = vmatpush1.msra.mxu0 0.0
    %903 = vmatprep.subr.mxu0 0.0
    %904 = vmatpush1.msra.mxu0 0.0
    %905 = vmatprep.mubr.f32.mxu0 0.0
    %906 = vmatmul.mubr.f32.gmra.mrb[0].mxu0 %v769
    %v907 = vpop.f32.mrb[0].mxu0
    %v908 = vadd.f32 %v604, %v907
    %v909 = vpop.f32.mrb[0].mxu0
    %910 = vdwg.mxu0
    %v911 = vadd.f32 %v490, %v837
    %v912 = vxor.u32 %v911, 2147483648
    %v913 = vmul.f32 %v912, 1.442695
    %v914 = vpow.pop %v913
    %v915 = vadd.f32 %v914, 1.0
    %v916 = vrcp.pop %v915
    %v917 = vmul.f32 1.0, %v916
    %v918 = vadd.f32 %v492, %v839
    %v919 = vxor.u32 %v918, 2147483648
    %v920 = vmul.f32 %v919, 1.442695
    %v921 = vpow.pop %v920
    %v922 = vadd.f32 %v921, 1.0
    %v923 = vrcp.pop %v922
    %v924 = vmul.f32 1.0, %v923
    %v925 = vmul.f32 %v917, %v908
    %v926 = vadd.f32 %v578, %v925
    %v927 = vtanh.pop %v926
    %v928 = vsub.f32 1.0, %v924
    %v929 = vmul.f32 %v928, %v927
    %v930 = vmul.f32 %v924, %v769
    %v931 = vadd.f32 %v929, %v930
    %932 = vmatprep.subr.mxu0 %v348
    %933 = vmatpush1.msra.mxu0 %v347
    %934 = vmatprep.subr.mxu0 %v351
    %935 = vmatpush1.msra.mxu0 %v350
    %936 = vmatprep.subr.mxu0 %v354
    %937 = vmatpush1.msra.mxu0 %v353
    %938 = vmatprep.subr.mxu0 %v357
    %939 = vmatpush1.msra.mxu0 %v356
    %940 = vmatprep.subr.mxu0 %v360
    %941 = vmatpush1.msra.mxu0 %v359
    %942 = vmatprep.subr.mxu0 %v363
    %943 = vmatpush1.msra.mxu0 %v362
    %944 = vmatprep.subr.mxu0 %v366
    %945 = vmatpush1.msra.mxu0 %v365
    %946 = vmatprep.subr.mxu0 %v369
    %947 = vmatpush1.msra.mxu0 %v368
    %948 = vmatprep.subr.mxu0 %v372
    %949 = vmatpush1.msra.mxu0 %v371
    %950 = vmatprep.subr.mxu0 %v375
    %951 = vmatpush1.msra.mxu0 %v374
    %952 = vmatprep.subr.mxu0 %v378
    %953 = vmatpush1.msra.mxu0 %v377
    %954 = vmatprep.subr.mxu0 %v381
    %955 = vmatpush1.msra.mxu0 %v380
    %956 = vmatprep.subr.mxu0 %v384
    %957 = vmatpush1.msra.mxu0 %v383
    %958 = vmatprep.subr.mxu0 %v387
    %959 = vmatpush1.msra.mxu0 %v386
    %960 = vmatprep.subr.mxu0 %v390
    %961 = vmatpush1.msra.mxu0 %v389
    %962 = vmatprep.subr.mxu0 %v393
    %963 = vmatpush1.msra.mxu0 %v392
    %964 = vmatprep.subr.mxu0 0.0
    %965 = vmatpush1.msra.mxu0 0.0
    %966 = vmatprep.subr.mxu0 0.0
    %967 = vmatpush1.msra.mxu0 0.0
    %968 = vmatprep.subr.mxu0 0.0
    %969 = vmatpush1.msra.mxu0 0.0
    %970 = vmatprep.subr.mxu0 0.0
    %971 = vmatpush1.msra.mxu0 0.0
    %972 = vmatprep.subr.mxu0 0.0
    %973 = vmatpush1.msra.mxu0 0.0
    %974 = vmatprep.subr.mxu0 0.0
    %975 = vmatpush1.msra.mxu0 0.0
    %976 = vmatprep.subr.mxu0 0.0
    %977 = vmatpush1.msra.mxu0 0.0
    %978 = vmatprep.subr.mxu0 0.0
    %979 = vmatpush1.msra.mxu0 0.0
    %980 = vmatprep.subr.mxu0 0.0
    %981 = vmatpush1.msra.mxu0 0.0
    %982 = vmatprep.subr.mxu0 0.0
    %983 = vmatpush1.msra.mxu0 0.0
    %984 = vmatprep.subr.mxu0 0.0
    %985 = vmatpush1.msra.mxu0 0.0
    %986 = vmatprep.subr.mxu0 0.0
    %987 = vmatpush1.msra.mxu0 0.0
    %988 = vmatprep.subr.mxu0 0.0
    %989 = vmatpush1.msra.mxu0 0.0
    %990 = vmatprep.subr.mxu0 0.0
    %991 = vmatpush1.msra.mxu0 0.0
    %992 = vmatprep.subr.mxu0 0.0
    %993 = vmatpush1.msra.mxu0 0.0
    %994 = vmatprep.subr.mxu0 0.0
    %995 = vmatpush1.msra.mxu0 0.0
    %996 = vmatprep.mubr.f32.mxu0 0.0
    %997 = vmatmul.mubr.f32.gmra.mrb[0].mxu0 %v931
    %v998 = vpop.f32.mrb[0].mxu0
    %v999 = vadd.f32 %v596, %v998
    %v1000 = vpop.f32.mrb[0].mxu0
    %v1001 = vadd.f32 %v600, %v1000
    %1002 = vdwg.mxu0
    %1003 = vmatprep.subr.mxu0 0.0
    %1004 = vmatpush1.msra.mxu0 %v349
    %1005 = vmatprep.subr.mxu0 0.0
    %1006 = vmatpush1.msra.mxu0 %v352
    %1007 = vmatprep.subr.mxu0 0.0
    %1008 = vmatpush1.msra.mxu0 %v355
    %1009 = vmatprep.subr.mxu0 0.0
    %1010 = vmatpush1.msra.mxu0 %v358
    %1011 = vmatprep.subr.mxu0 0.0
    %1012 = vmatpush1.msra.mxu0 %v361
    %1013 = vmatprep.subr.mxu0 0.0
    %1014 = vmatpush1.msra.mxu0 %v364
    %1015 = vmatprep.subr.mxu0 0.0
    %1016 = vmatpush1.msra.mxu0 %v367
    %1017 = vmatprep.subr.mxu0 0.0
    %1018 = vmatpush1.msra.mxu0 %v370
    %1019 = vmatprep.subr.mxu0 0.0
    %1020 = vmatpush1.msra.mxu0 %v373
    %1021 = vmatprep.subr.mxu0 0.0
    %1022 = vmatpush1.msra.mxu0 %v376
    %1023 = vmatprep.subr.mxu0 0.0
    %1024 = vmatpush1.msra.mxu0 %v379
    %1025 = vmatprep.subr.mxu0 0.0
    %1026 = vmatpush1.msra.mxu0 %v382
    %1027 = vmatprep.subr.mxu0 0.0
    %1028 = vmatpush1.msra.mxu0 %v385
    %1029 = vmatprep.subr.mxu0 0.0
    %1030 = vmatpush1.msra.mxu0 %v388
    %1031 = vmatprep.subr.mxu0 0.0
    %1032 = vmatpush1.msra.mxu0 %v391
    %1033 = vmatprep.subr.mxu0 0.0
    %1034 = vmatpush1.msra.mxu0 %v394
    %1035 = vmatprep.subr.mxu0 0.0
    %1036 = vmatpush1.msra.mxu0 0.0
    %1037 = vmatprep.subr.mxu0 0.0
    %1038 = vmatpush1.msra.mxu0 0.0
    %1039 = vmatprep.subr.mxu0 0.0
    %1040 = vmatpush1.msra.mxu0 0.0
    %1041 = vmatprep.subr.mxu0 0.0
    %1042 = vmatpush1.msra.mxu0 0.0
    %1043 = vmatprep.subr.mxu0 0.0
    %1044 = vmatpush1.msra.mxu0 0.0
    %1045 = vmatprep.subr.mxu0 0.0
    %1046 = vmatpush1.msra.mxu0 0.0
    %1047 = vmatprep.subr.mxu0 0.0
    %1048 = vmatpush1.msra.mxu0 0.0
    %1049 = vmatprep.subr.mxu0 0.0
    %1050 = vmatpush1.msra.mxu0 0.0
    %1051 = vmatprep.subr.mxu0 0.0
    %1052 = vmatpush1.msra.mxu0 0.0
    %1053 = vmatprep.subr.mxu0 0.0
    %1054 = vmatpush1.msra.mxu0 0.0
    %1055 = vmatprep.subr.mxu0 0.0
    %1056 = vmatpush1.msra.mxu0 0.0
    %1057 = vmatprep.subr.mxu0 0.0
    %1058 = vmatpush1.msra.mxu0 0.0
    %1059 = vmatprep.subr.mxu0 0.0
    %1060 = vmatpush1.msra.mxu0 0.0
    %1061 = vmatprep.subr.mxu0 0.0
    %1062 = vmatpush1.msra.mxu0 0.0
    %1063 = vmatprep.subr.mxu0 0.0
    %1064 = vmatpush1.msra.mxu0 0.0
    %1065 = vmatprep.subr.mxu0 0.0
    %1066 = vmatpush1.msra.mxu0 0.0
    %1067 = vmatprep.mubr.f32.mxu0 0.0
    %1068 = vmatmul.mubr.f32.gmra.mrb[0].mxu0 %v931
    %v1069 = vpop.f32.mrb[0].mxu0
    %v1070 = vadd.f32 %v604, %v1069
    %v1071 = vpop.f32.mrb[0].mxu0
    %1072 = vdwg.mxu0
    %v1073 = vadd.f32 %v496, %v999
    %v1074 = vxor.u32 %v1073, 2147483648
    %v1075 = vmul.f32 %v1074, 1.442695
    %v1076 = vpow.pop %v1075
    %v1077 = vadd.f32 %v1076, 1.0
    %v1078 = vrcp.pop %v1077
    %v1079 = vmul.f32 1.0, %v1078
    %v1080 = vadd.f32 %v498, %v1001
    %v1081 = vxor.u32 %v1080, 2147483648
    %v1082 = vmul.f32 %v1081, 1.442695
    %v1083 = vpow.pop %v1082
    %v1084 = vadd.f32 %v1083, 1.0
    %v1085 = vrcp.pop %v1084
    %v1086 = vmul.f32 1.0, %v1085
    %v1087 = vmul.f32 %v1079, %v1070
    %v1088 = vadd.f32 %v583, %v1087
    %v1089 = vtanh.pop %v1088
    %v1090 = vsub.f32 1.0, %v1086
    %v1091 = vmul.f32 %v1090, %v1089
    %v1092 = vmul.f32 %v1086, %v931
    %v1093 = vadd.f32 %v1091, %v1092
    %1094 = vmatprep.subr.mxu0 %v348
    %1095 = vmatpush1.msra.mxu0 %v347
    %1096 = vmatprep.subr.mxu0 %v351
    %1097 = vmatpush1.msra.mxu0 %v350
    %1098 = vmatprep.subr.mxu0 %v354
    %1099 = vmatpush1.msra.mxu0 %v353
    %1100 = vmatprep.subr.mxu0 %v357
    %1101 = vmatpush1.msra.mxu0 %v356
    %1102 = vmatprep.subr.mxu0 %v360
    %1103 = vmatpush1.msra.mxu0 %v359
    %1104 = vmatprep.subr.mxu0 %v363
    %1105 = vmatpush1.msra.mxu0 %v362
    %1106 = vmatprep.subr.mxu0 %v366
    %1107 = vmatpush1.msra.mxu0 %v365
    %1108 = vmatprep.subr.mxu0 %v369
    %1109 = vmatpush1.msra.mxu0 %v368
    %1110 = vmatprep.subr.mxu0 %v372
    %1111 = vmatpush1.msra.mxu0 %v371
    %1112 = vmatprep.subr.mxu0 %v375
    %1113 = vmatpush1.msra.mxu0 %v374
    %1114 = vmatprep.subr.mxu0 %v378
    %1115 = vmatpush1.msra.mxu0 %v377
    %1116 = vmatprep.subr.mxu0 %v381
    %1117 = vmatpush1.msra.mxu0 %v380
    %1118 = vmatprep.subr.mxu0 %v384
    %1119 = vmatpush1.msra.mxu0 %v383
    %1120 = vmatprep.subr.mxu0 %v387
    %1121 = vmatpush1.msra.mxu0 %v386
    %1122 = vmatprep.subr.mxu0 %v390
    %1123 = vmatpush1.msra.mxu0 %v389
    %1124 = vmatprep.subr.mxu0 %v393
    %1125 = vmatpush1.msra.mxu0 %v392
    %1126 = vmatprep.subr.mxu0 0.0
    %1127 = vmatpush1.msra.mxu0 0.0
    %1128 = vmatprep.subr.mxu0 0.0
    %1129 = vmatpush1.msra.mxu0 0.0
    %1130 = vmatprep.subr.mxu0 0.0
    %1131 = vmatpush1.msra.mxu0 0.0
    %1132 = vmatprep.subr.mxu0 0.0
    %1133 = vmatpush1.msra.mxu0 0.0
    %1134 = vmatprep.subr.mxu0 0.0
    %1135 = vmatpush1.msra.mxu0 0.0
    %1136 = vmatprep.subr.mxu0 0.0
    %1137 = vmatpush1.msra.mxu0 0.0
    %1138 = vmatprep.subr.mxu0 0.0
    %1139 = vmatpush1.msra.mxu0 0.0
    %1140 = vmatprep.subr.mxu0 0.0
    %1141 = vmatpush1.msra.mxu0 0.0
    %1142 = vmatprep.subr.mxu0 0.0
    %1143 = vmatpush1.msra.mxu0 0.0
    %1144 = vmatprep.subr.mxu0 0.0
    %1145 = vmatpush1.msra.mxu0 0.0
    %1146 = vmatprep.subr.mxu0 0.0
    %1147 = vmatpush1.msra.mxu0 0.0
    %1148 = vmatprep.subr.mxu0 0.0
    %1149 = vmatpush1.msra.mxu0 0.0
    %1150 = vmatprep.subr.mxu0 0.0
    %1151 = vmatpush1.msra.mxu0 0.0
    %1152 = vmatprep.subr.mxu0 0.0
    %1153 = vmatpush1.msra.mxu0 0.0
    %1154 = vmatprep.subr.mxu0 0.0
    %1155 = vmatpush1.msra.mxu0 0.0
    %1156 = vmatprep.subr.mxu0 0.0
    %1157 = vmatpush1.msra.mxu0 0.0
    %1158 = vmatprep.mubr.f32.mxu0 0.0
    %1159 = vmatmul.mubr.f32.gmra.mrb[0].mxu0 %v1093
    %v1160 = vpop.f32.mrb[0].mxu0
    %v1161 = vadd.f32 %v596, %v1160
    %v1162 = vpop.f32.mrb[0].mxu0
    %v1163 = vadd.f32 %v600, %v1162
    %1164 = vdwg.mxu0
    %1165 = vmatprep.subr.mxu0 0.0
    %1166 = vmatpush1.msra.mxu0 %v349
    %1167 = vmatprep.subr.mxu0 0.0
    %1168 = vmatpush1.msra.mxu0 %v352
    %1169 = vmatprep.subr.mxu0 0.0
    %1170 = vmatpush1.msra.mxu0 %v355
    %1171 = vmatprep.subr.mxu0 0.0
    %1172 = vmatpush1.msra.mxu0 %v358
    %1173 = vmatprep.subr.mxu0 0.0
    %1174 = vmatpush1.msra.mxu0 %v361
    %1175 = vmatprep.subr.mxu0 0.0
    %1176 = vmatpush1.msra.mxu0 %v364
    %1177 = vmatprep.subr.mxu0 0.0
    %1178 = vmatpush1.msra.mxu0 %v367
    %1179 = vmatprep.subr.mxu0 0.0
    %1180 = vmatpush1.msra.mxu0 %v370
    %1181 = vmatprep.subr.mxu0 0.0
    %1182 = vmatpush1.msra.mxu0 %v373
    %1183 = vmatprep.subr.mxu0 0.0
    %1184 = vmatpush1.msra.mxu0 %v376
    %1185 = vmatprep.subr.mxu0 0.0
    %1186 = vmatpush1.msra.mxu0 %v379
    %1187 = vmatprep.subr.mxu0 0.0
    %1188 = vmatpush1.msra.mxu0 %v382
    %1189 = vmatprep.subr.mxu0 0.0
    %1190 = vmatpush1.msra.mxu0 %v385
    %1191 = vmatprep.subr.mxu0 0.0
    %1192 = vmatpush1.msra.mxu0 %v388
    %1193 = vmatprep.subr.mxu0 0.0
    %1194 = vmatpush1.msra.mxu0 %v391
    %1195 = vmatprep.subr.mxu0 0.0
    %1196 = vmatpush1.msra.mxu0 %v394
    %1197 = vmatprep.subr.mxu0 0.0
    %1198 = vmatpush1.msra.mxu0 0.0
    %1199 = vmatprep.subr.mxu0 0.0
    %1200 = vmatpush1.msra.mxu0 0.0
    %1201 = vmatprep.subr.mxu0 0.0
    %1202 = vmatpush1.msra.mxu0 0.0
    %1203 = vmatprep.subr.mxu0 0.0
    %1204 = vmatpush1.msra.mxu0 0.0
    %1205 = vmatprep.subr.mxu0 0.0
    %1206 = vmatpush1.msra.mxu0 0.0
    %1207 = vmatprep.subr.mxu0 0.0
    %1208 = vmatpush1.msra.mxu0 0.0
    %1209 = vmatprep.subr.mxu0 0.0
    %1210 = vmatpush1.msra.mxu0 0.0
    %1211 = vmatprep.subr.mxu0 0.0
    %1212 = vmatpush1.msra.mxu0 0.0
    %1213 = vmatprep.subr.mxu0 0.0
    %1214 = vmatpush1.msra.mxu0 0.0
    %1215 = vmatprep.subr.mxu0 0.0
    %1216 = vmatpush1.msra.mxu0 0.0
    %1217 = vmatprep.subr.mxu0 0.0
    %1218 = vmatpush1.msra.mxu0 0.0
    %1219 = vmatprep.subr.mxu0 0.0
    %1220 = vmatpush1.msra.mxu0 0.0
    %1221 = vmatprep.subr.mxu0 0.0
    %1222 = vmatpush1.msra.mxu0 0.0
    %1223 = vmatprep.subr.mxu0 0.0
    %1224 = vmatpush1.msra.mxu0 0.0
    %1225 = vmatprep.subr.mxu0 0.0
    %1226 = vmatpush1.msra.mxu0 0.0
    %1227 = vmatprep.subr.mxu0 0.0
    %1228 = vmatpush1.msra.mxu0 0.0
    %1229 = vmatprep.mubr.f32.mxu0 0.0
    %1230 = vmatmul.mubr.f32.gmra.mrb[0].mxu0 %v1093
    %v1231 = vpop.f32.mrb[0].mxu0
    %v1232 = vadd.f32 %v604, %v1231
    %v1233 = vpop.f32.mrb[0].mxu0
    %1234 = vdwg.mxu0
    %v1235 = vadd.f32 %v502, %v1161
    %v1236 = vxor.u32 %v1235, 2147483648
    %v1237 = vmul.f32 %v1236, 1.442695
    %v1238 = vpow.pop %v1237
    %v1239 = vadd.f32 %v1238, 1.0
    %v1240 = vrcp.pop %v1239
    %v1241 = vmul.f32 1.0, %v1240
    %v1242 = vadd.f32 %v504, %v1163
    %v1243 = vxor.u32 %v1242, 2147483648
    %v1244 = vmul.f32 %v1243, 1.442695
    %v1245 = vpow.pop %v1244
    %v1246 = vadd.f32 %v1245, 1.0
    %v1247 = vrcp.pop %v1246
    %v1248 = vmul.f32 1.0, %v1247
    %v1249 = vmul.f32 %v1241, %v1232
    %v1250 = vadd.f32 %v588, %v1249
    %v1251 = vtanh.pop %v1250
    %v1252 = vsub.f32 1.0, %v1248
    %v1253 = vmul.f32 %v1252, %v1251
    %v1254 = vmul.f32 %v1248, %v1093
    %v1255 = vadd.f32 %v1253, %v1254
    %v1256 = vld [vmem:[#allocation3] sm:$0x3]
    %v1257 = vld [vmem:[#allocation3 + $0x2] sm:$0x3]
    %v1258 = vld [vmem:[#allocation3 + $0x4] sm:$0x3]
    %v1259 = vld [vmem:[#allocation3 + $0x6] sm:$0x3]
    %v1260 = vld [vmem:[#allocation3 + $0x8] sm:$0x3]
    %v1261 = vld [vmem:[#allocation3 + $0xa] sm:$0x3]
    %v1262 = vld [vmem:[#allocation3 + $0xc] sm:$0x3]
    %v1263 = vld [vmem:[#allocation3 + $0xe] sm:$0x3]
    %v1265 = vcombine.high %v1255, %v1255
    %v1267 = vunpack.c.l.s4 1966171168
    %v1268 = vunpack.c.0.s8 %v1267
    %v1269 = vlaneseq
    %v1270 = vshrl.u32 %v1269, 7
    %v1271 = vsub.s32 %v1268, %v1270
    %v1272 = vrot.slane %v1255, %v1271
    %v1274 = vunpack.c.l.s4 1966171168
    %v1275 = vunpack.c.0.s8 %v1274
    %v1276 = vlaneseq
    %v1277 = vshrl.u32 %v1276, 7
    %v1278 = vsub.s32 %v1275, %v1277
    %v1279 = vrot.slane %v1265, %v1278
    %v1280 = vcombine.high %v1272, %v1272
    %v1281 = vcombine.high %v1279, %v1279
    %v1283 = vunpack.c.l.s4 1966171168
    %v1284 = vunpack.c.0.s8 %v1283
    %v1285 = vlaneseq
    %v1286 = vshrl.u32 %v1285, 7
    %v1287 = vsub.s32 %v1284, %v1286
    %v1288 = vrot.slane %v1272, %v1287
    %v1290 = vunpack.c.l.s4 1966171168
    %v1291 = vunpack.c.0.s8 %v1290
    %v1292 = vlaneseq
    %v1293 = vshrl.u32 %v1292, 7
    %v1294 = vsub.s32 %v1291, %v1293
    %v1295 = vrot.slane %v1279, %v1294
    %v1297 = vunpack.c.l.s4 1966171168
    %v1298 = vunpack.c.0.s8 %v1297
    %v1299 = vlaneseq
    %v1300 = vshrl.u32 %v1299, 7
    %v1301 = vsub.s32 %v1298, %v1300
    %v1302 = vrot.slane %v1280, %v1301
    %v1304 = vunpack.c.l.s4 1966171168
    %v1305 = vunpack.c.0.s8 %v1304
    %v1306 = vlaneseq
    %v1307 = vshrl.u32 %v1306, 7
    %v1308 = vsub.s32 %v1305, %v1307
    %v1309 = vrot.slane %v1281, %v1308
    %v1310 = vcombine.high %v1288, %v1288
    %v1311 = vcombine.high %v1295, %v1295
    %v1312 = vcombine.high %v1302, %v1302
    %v1313 = vcombine.high %v1309, %v1309
    %v1314 = vlaneseq
    %v1315 = vshrl.u32 %v1314, 7
    %v1316 = vsub.s32 0, %v1315
    %v1317 = vrot.slane %v1288, %v1316
    %v1318 = vlaneseq
    %v1319 = vshrl.u32 %v1318, 7
    %v1320 = vsub.s32 0, %v1319
    %v1321 = vrot.slane %v1302, %v1320
    %v1322 = vlaneseq
    %v1323 = vshrl.u32 %v1322, 7
    %v1324 = vsub.s32 0, %v1323
    %v1325 = vrot.slane %v1310, %v1324
    %v1326 = vlaneseq
    %v1327 = vshrl.u32 %v1326, 7
    %v1328 = vsub.s32 0, %v1327
    %v1329 = vrot.slane %v1312, %v1328
    %v1330 = vlaneseq
    %v1331 = vshrl.u32 %v1330, 7
    %v1332 = vsub.s32 0, %v1331
    %v1333 = vrot.slane %v1295, %v1332
    %v1334 = vlaneseq
    %v1335 = vshrl.u32 %v1334, 7
    %v1336 = vsub.s32 0, %v1335
    %v1337 = vrot.slane %v1309, %v1336
    %v1338 = vlaneseq
    %v1339 = vshrl.u32 %v1338, 7
    %v1340 = vsub.s32 0, %v1339
    %v1341 = vrot.slane %v1311, %v1340
    %v1342 = vlaneseq
    %v1343 = vshrl.u32 %v1342, 7
    %v1344 = vsub.s32 0, %v1343
    %v1345 = vrot.slane %v1313, %v1344
    %v1354 = vmul.f32 %v1256, %v1317
    %v1355 = vmul.f32 %v1257, %v1321
    %v1356 = vmul.f32 %v1258, %v1325
    %v1357 = vmul.f32 %v1259, %v1329
    %v1358 = vmul.f32 %v1260, %v1333
    %v1359 = vmul.f32 %v1261, %v1337
    %v1360 = vmul.f32 %v1262, %v1341
    %v1361 = vmul.f32 %v1263, %v1345
    %vm1362 = vcmask 1041408
    %v1363 = vsel %vm1362, %v1354, 0.0
    %1364 = vadd.xlane.f32.xlu0 %v1363
    %v1365 = vpop.xlane.xlu0 %1364
    %v1366 = vsel %vm1362, %v1355, 0.0
    %1367 = vadd.xlane.f32.xlu0 %v1366
    %v1368 = vpop.xlane.xlu0 %1367
    %v1369 = vsel %vm1362, %v1356, 0.0
    %1370 = vadd.xlane.f32.xlu0 %v1369
    %v1371 = vpop.xlane.xlu0 %1370
    %v1372 = vsel %vm1362, %v1357, 0.0
    %1373 = vadd.xlane.f32.xlu0 %v1372
    %v1374 = vpop.xlane.xlu0 %1373
    %v1375 = vsel %vm1362, %v1358, 0.0
    %1376 = vadd.xlane.f32.xlu0 %v1375
    %v1377 = vpop.xlane.xlu0 %1376
    %v1378 = vsel %vm1362, %v1359, 0.0
    %1379 = vadd.xlane.f32.xlu0 %v1378
    %v1380 = vpop.xlane.xlu0 %1379
    %v1381 = vsel %vm1362, %v1360, 0.0
    %1382 = vadd.xlane.f32.xlu0 %v1381
    %v1383 = vpop.xlane.xlu0 %1382
    %v1384 = vsel %vm1362, %v1361, 0.0
    %1385 = vadd.xlane.f32.xlu0 %v1384
    %v1386 = vpop.xlane.xlu0 %1385
    %v1395 = vlaneseq
    %v1396 = vand.u32 %v1395, 127
    %v1397 = vlaneseq
    %v1398 = vshrl.u32 %v1397, 7
    %v1399 = vsub.s32 %v1396, %v1398
    %v1400 = vrot.slane %v1365, %v1399
    %v1401 = vlaneseq
    %v1402 = vshrl.u32 %v1401, 7
    %v1403 = vsub.s32 %v1396, %v1402
    %v1404 = vrot.slane %v1368, %v1403
    %v1405 = vlaneseq
    %v1406 = vshrl.u32 %v1405, 7
    %v1407 = vsub.s32 %v1396, %v1406
    %v1408 = vrot.slane %v1371, %v1407
    %v1409 = vlaneseq
    %v1410 = vshrl.u32 %v1409, 7
    %v1411 = vsub.s32 %v1396, %v1410
    %v1412 = vrot.slane %v1374, %v1411
    %v1413 = vlaneseq
    %v1414 = vshrl.u32 %v1413, 7
    %v1415 = vsub.s32 %v1396, %v1414
    %v1416 = vrot.slane %v1377, %v1415
    %v1417 = vlaneseq
    %v1418 = vshrl.u32 %v1417, 7
    %v1419 = vsub.s32 %v1396, %v1418
    %v1420 = vrot.slane %v1380, %v1419
    %v1421 = vlaneseq
    %v1422 = vshrl.u32 %v1421, 7
    %v1423 = vsub.s32 %v1396, %v1422
    %v1424 = vrot.slane %v1383, %v1423
    %v1425 = vlaneseq
    %v1426 = vshrl.u32 %v1425, 7
    %v1427 = vsub.s32 %v1396, %v1426
    %v1428 = vrot.slane %v1386, %v1427
    %vm1429 = vcmask 1041409
    %v1430 = vsel %vm1429, %v1404, %v1400
    %vm1431 = vcmask 1042434
    %v1432 = vsel %vm1431, %v1408, %v1430
    %vm1433 = vcmask 1043459
    %v1434 = vsel %vm1433, %v1412, %v1432
    %vm1435 = vcmask 1044484
    %v1436 = vsel %vm1435, %v1416, %v1434
    %vm1437 = vcmask 1045509
    %v1438 = vsel %vm1437, %v1420, %v1436
    %vm1439 = vcmask 1046534
    %v1440 = vsel %vm1439, %v1424, %v1438
    %vm1441 = vcmask 1047559
    %v1442 = vsel %vm1441, %v1428, %v1440
    %vm1444 = vcmask 15360
    %1445 = vst.msk [vmem:[%s9] sm:$0xff] %vm1444, %v1442
    // Predicated region
    $region50: #{lstur_forward.3} parent=1 // pred_check
      _
    $region51: #{lstur_forward.3} parent=1 // pred_check_branch
      %1447 = sbr.rel (0) target = $region53
    $region52: #{lstur_forward.3} parent=1 // pred_region
      _
    $region53: #{lstur_forward.3} parent=1 // pred_fallthru
      _
    // Predicated region
    $region54: #{lstur_forward.3} parent=1 // pred_check
      _
    $region55: #{lstur_forward.3} parent=1 // pred_check_branch
      %1449 = sbr.rel (0) target = $region57
    $region56: #{lstur_forward.3} parent=1 // pred_region
      _
    $region57: #{lstur_forward.3} parent=1 // pred_fallthru
      _
    %1450 = vsyncpa [#allocation6], 1
    %1451 = vsyncpa [#allocation8], 1

</llo_original>
